<compile_context>
chip_gen: v6e
topology: v6e:2x2x1
jax: 0.10.0
libtpu: 0.0.40
codegen_flags: <defaults>
</compile_context>

<pallas_src>
import functools

import jax
import jax.numpy as jnp
from jax.experimental import pallas as pl
from jax.experimental.pallas import tpu as pltpu

_LANE = 128          # lane width  -> pad GEMM N to a multiple of this
_ROW_ALIGN = 16      # sublane alignment for bf16-packed row tiles
_MAX_TM = 512        # M-tile rows: pipelines well and fits every TPU gen's VMEM
_VMEM_LIMIT = 32 * 1024 * 1024   # explicit scoped-VMEM limit (v5e default is 16 MiB)


def _round_up(x, m):
    return (x + m - 1) // m * m


def _pad2d(x, rows, cols):
    r, c = x.shape
    return jnp.pad(x, ((0, rows - r), (0, cols - c)))


# ---------------------------------------------------------------------------
# Pallas kernels
# ---------------------------------------------------------------------------
def _apply_act(x, act):
    if act == "relu":
        return jnp.maximum(x, 0.0)
    if act == "sigmoid":
        # exp + reciprocal both go to the EUP slot; clip keeps the exact
        # sigmoid output range despite the approximate reciprocal.
        s = pl.reciprocal(1.0 + jnp.exp(-x), approx=True)
        return jnp.clip(s, 0.0, 1.0)
    return x


def _gemm_bias_act_kernel(a_ref, b_ref, bias_ref, o_ref, *, act):
    acc = jnp.dot(a_ref[...], b_ref[...], preferred_element_type=jnp.float32)
    acc = acc + bias_ref[...]             # (1, N) bias broadcasts over rows
    acc = _apply_act(acc, act)
    o_ref[...] = acc.astype(o_ref.dtype)


def _bottleneck_kernel(a_ref, w1_ref, b1_ref, w2_ref, b2_ref, o_ref):
    # enc2: Conv2d(32, 64, 7) on the full 7x7 window  (no activation)
    h = jnp.dot(a_ref[...], w1_ref[...], preferred_element_type=jnp.float32)
    h = h + b1_ref[...]
    # dec0: ConvTranspose2d(64, 32, 7) on a 1x1 map + ReLU
    h = h.astype(w2_ref.dtype)            # bf16 for the second MXU pass
    y = jnp.dot(h, w2_ref[...], preferred_element_type=jnp.float32)
    y = jnp.maximum(y + b2_ref[...], 0.0)
    o_ref[...] = y.astype(o_ref.dtype)


def _gemm_compiler_params():
    return pltpu.CompilerParams(
        dimension_semantics=("parallel",),      # shard M tiles across TCs (v7x)
        vmem_limit_bytes=_VMEM_LIMIT,
    )


# ---------------------------------------------------------------------------
# GEMM wrapper: bf16 operands, lane-dense padded N, M-tiled pipelined grid
# ---------------------------------------------------------------------------
def gemm_bias_act(a, w, bias, act):
    """act(a @ w + bias). a:(M,K), w:(K,N), bias:(N,). Returns (M,N) f32."""
    M, K = a.shape
    K2, N = w.shape
    assert K == K2
    Np = _round_up(N, _LANE)                       # lane-dense output
    tm = min(_MAX_TM, _round_up(M, _ROW_ALIGN))    # M-tile (fits all VMEM gens)
    Mp = _round_up(M, tm)

    a_p = _pad2d(a.astype(jnp.bfloat16), Mp, K)
    w_p = _pad2d(w.astype(jnp.bfloat16), K, Np)
    b_p = _pad2d(bias.reshape(1, N).astype(jnp.float32), 1, Np)

    out = pl.pallas_call(
        functools.partial(_gemm_bias_act_kernel, act=act),
        out_shape=jax.ShapeDtypeStruct((Mp, Np), jnp.float32),
        grid=(Mp // tm,),
        in_specs=[
            pl.BlockSpec((tm, K), lambda i: (i, 0)),
            pl.BlockSpec((K, Np), lambda i: (0, 0)),
            pl.BlockSpec((1, Np), lambda i: (0, 0)),
        ],
        out_specs=pl.BlockSpec((tm, Np), lambda i: (i, 0)),
        compiler_params=_gemm_compiler_params(),
    )(a_p, w_p, b_p)
    return out[:M, :N]


# ---------------------------------------------------------------------------
# im2col glue (pure XLA slicing, no compute)
# ---------------------------------------------------------------------------
def _im2col(x, kh, kw, stride):
    B, H, W, C = x.shape
    OH = (H - kh) // stride + 1
    OW = (W - kw) // stride + 1
    cols = []
    for i in range(kh):
        for j in range(kw):
            cols.append(x[:, i:i + stride * (OH - 1) + 1:stride,
                             j:j + stride * (OW - 1) + 1:stride, :])
    patches = jnp.concatenate(cols, axis=-1)       # (B, OH, OW, kh*kw*C)
    return patches.reshape(B * OH * OW, kh * kw * C), OH, OW


def conv2d(x, w_oihw, bias, *, stride, padding, act):
    """PyTorch-semantics Conv2d via im2col + fused GEMM. w: (Cout,Cin,kh,kw)."""
    B = x.shape[0]
    Cout, Cin, kh, kw = w_oihw.shape
    xp = jnp.pad(x, ((0, 0), (padding, padding), (padding, padding), (0, 0)))
    patches, OH, OW = _im2col(xp, kh, kw, stride)
    # K-order of patches is (i*kw + j)*Cin + ci -> matching weight matrix:
    w_mat = jnp.transpose(w_oihw, (2, 3, 1, 0)).reshape(kh * kw * Cin, Cout)
    out = gemm_bias_act(patches, w_mat, bias, act)
    return out.reshape(B, OH, OW, Cout)


# ---------------------------------------------------------------------------
# ConvTranspose2d(k=3, stride=2, padding=1, output_padding=1):
# sub-pixel decomposition -> single stride-1 2x2-tap GEMM + pixel shuffle.
# ---------------------------------------------------------------------------
# (output parity d, input offset a) -> contributing kernel tap k; (0,1) -> none
_K_MAP = {(0, 0): 1, (1, 0): 2, (1, 1): 0}


def conv_transpose2d_s2(x, w_iohw, bias, *, act):
    B, H, W, Cin = x.shape
    Cin2, Cout, kh, kw = w_iohw.shape
    assert Cin == Cin2 and (kh, kw) == (3, 3)

    # Gathered weight: rows = (ay, ax, ci) 2x2 taps, cols = (dy, dx, co) phases
    wm = jnp.zeros((4 * Cin, 4 * Cout), jnp.float32)
    for dy in (0, 1):
        for dx in (0, 1):
            for ay in (0, 1):
                for ax in (0, 1):
                    if (dy, ay) in _K_MAP and (dx, ax) in _K_MAP:
                        ky, kx = _K_MAP[(dy, ay)], _K_MAP[(dx, ax)]
                        wm = wm.at[(ay * 2 + ax) * Cin:(ay * 2 + ax + 1) * Cin,
                                   (dy * 2 + dx) * Cout:(dy * 2 + dx + 1) * Cout
                                   ].set(w_iohw[:, :, ky, kx])
    bias4 = jnp.tile(bias, 4)

    xp = jnp.pad(x, ((0, 0), (0, 1), (0, 1), (0, 0)))    # bottom/right halo
    patches, _, _ = _im2col(xp, 2, 2, 1)                 # (B*H*W, 4*Cin)
    y = gemm_bias_act(patches, wm, bias4, act)           # (B*H*W, 4*Cout)
    # pixel shuffle: (B,H,W,2,2,Cout) -> (B, 2H, 2W, Cout)
    y = y.reshape(B, H, W, 2, 2, Cout)
    y = jnp.transpose(y, (0, 1, 3, 2, 4, 5)).reshape(B, 2 * H, 2 * W, Cout)
    return y


# ---------------------------------------------------------------------------
# Fused bottleneck: Conv2d(32,64,7) + ConvTranspose2d(64,32,7) + ReLU
# ---------------------------------------------------------------------------
def bottleneck(x, w_enc, b_enc, w_dec, b_dec):
    B, H, W, Cin = x.shape                       # (B, 7, 7, 32)
    Cmid = w_enc.shape[0]                        # 64
    Cmid2, Cout, kh, kw = w_dec.shape            # (64, 32, 7, 7)
    assert Cmid == Cmid2 and (H, W) == (kh, kw)
    assert (w_enc.shape[2], w_enc.shape[3]) == (H, W)

    K1 = H * W * Cin
    a = x.reshape(B, K1)                                            # (b, (h*W+w)*Cin+ci)
    w1 = jnp.transpose(w_enc, (2, 3, 1, 0)).reshape(K1, Cmid)       # matches that order
    N2 = kh * kw * Cout
    w2 = jnp.transpose(w_dec, (0, 2, 3, 1)).reshape(Cmid, N2)       # (ci, (ky*kw+kx)*Cout+co)
    b2 = jnp.tile(b_dec, kh * kw)

    Hpad = _round_up(Cmid, _LANE)
    Npad = _round_up(N2, _LANE)
    tm = min(_MAX_TM, _round_up(B, _ROW_ALIGN))
    Mp = _round_up(B, tm)

    a_p = _pad2d(a.astype(jnp.bfloat16), Mp, K1)
    w1_p = _pad2d(w1.astype(jnp.bfloat16), K1, Hpad)
    b1_p = _pad2d(b_enc.reshape(1, Cmid).astype(jnp.float32), 1, Hpad)
    w2_p = _pad2d(w2.astype(jnp.bfloat16), Hpad, Npad)
    b2_p = _pad2d(b2.reshape(1, N2).astype(jnp.float32), 1, Npad)

    out = pl.pallas_call(
        _bottleneck_kernel,
        out_shape=jax.ShapeDtypeStruct((Mp, Npad), jnp.float32),
        grid=(Mp // tm,),
        in_specs=[
            pl.BlockSpec((tm, K1), lambda i: (i, 0)),
            pl.BlockSpec((K1, Hpad), lambda i: (0, 0)),
            pl.BlockSpec((1, Hpad), lambda i: (0, 0)),
            pl.BlockSpec((Hpad, Npad), lambda i: (0, 0)),
            pl.BlockSpec((1, Npad), lambda i: (0, 0)),
        ],
        out_specs=pl.BlockSpec((tm, Npad), lambda i: (i, 0)),
        compiler_params=_gemm_compiler_params(),
    )(a_p, w1_p, b1_p, w2_p, b2_p)
    return out[:B, :N2].reshape(B, kh, kw, Cout)


# ---------------------------------------------------------------------------
# Parameter construction (deterministic, PyTorch-default-style uniform init)
# ---------------------------------------------------------------------------
def _uniform(key, shape, bound):
    return jax.random.uniform(key, shape, jnp.float32, -bound, bound)


def init_params(key):
    params = {}

    def conv_p(key, cout, cin, kh, kw):
        kw_, kb = jax.random.split(key)
        b = 1.0 / jnp.sqrt(cin * kh * kw)
        return {"w": _uniform(kw_, (cout, cin, kh, kw), b),
                "b": _uniform(kb, (cout,), b)}

    def convT_p(key, cin, cout, kh, kw):
        kw_, kb = jax.random.split(key)
        b = 1.0 / jnp.sqrt(cout * kh * kw)
        return {"w": _uniform(kw_, (cin, cout, kh, kw), b),
                "b": _uniform(kb, (cout,), b)}

    keys = jax.random.split(key, 6)
    params["enc0"] = conv_p(keys[0], 16, 1, 3, 3)     # Conv2d(1, 16, 3, s2, p1)
    params["enc1"] = conv_p(keys[1], 32, 16, 3, 3)    # Conv2d(16, 32, 3, s2, p1)
    params["enc2"] = conv_p(keys[2], 64, 32, 7, 7)    # Conv2d(32, 64, 7)
    params["dec0"] = convT_p(keys[3], 64, 32, 7, 7)   # ConvT(64, 32, 7)
    params["dec1"] = convT_p(keys[4], 32, 16, 3, 3)   # ConvT(32,16,3,s2,p1,op1)
    params["dec2"] = convT_p(keys[5], 16, 1, 3, 3)    # ConvT(16, 1,3,s2,p1,op1)
    return params


# ---------------------------------------------------------------------------
# Forward pass (matches the PyTorch Autoencoder.forward)
# ---------------------------------------------------------------------------
def autoencoder_forward(params, x_nchw):
    x = jnp.transpose(x_nchw, (0, 2, 3, 1))  # NCHW -> NHWC

    # encoder
    x = conv2d(x, params["enc0"]["w"], params["enc0"]["b"],
               stride=2, padding=1, act="relu")                      # 28 -> 14
    x = conv2d(x, params["enc1"]["w"], params["enc1"]["b"],
               stride=2, padding=1, act="relu")                      # 14 -> 7

    # bottleneck: Conv2d(32,64,7) (no act) + ConvT(64,32,7) + ReLU, one kernel
    x = bottleneck(x, params["enc2"]["w"], params["enc2"]["b"],
                   params["dec0"]["w"], params["dec0"]["b"])         # 7 -> 1 -> 7

    # decoder tail: stride-2 transposed convs via sub-pixel decomposition
    x = conv_transpose2d_s2(x, params["dec1"]["w"], params["dec1"]["b"],
                            act="relu")                              # 7 -> 14
    x = conv_transpose2d_s2(x, params["dec2"]["w"], params["dec2"]["b"],
                            act="sigmoid")                           # 14 -> 28

    return jnp.transpose(x, (0, 3, 1, 2))  # NHWC -> NCHW


if __name__ == "__main__":
    key = jax.random.PRNGKey(0)
    kx, kp = jax.random.split(key)

    # Input consistent with the module: 1 channel, 28x28 (the 7x7 encoder conv
    # implies a 7x7 feature map, i.e. 28x28 input). Small batch of 2.
    x = jax.random.uniform(kx, (2, 1, 28, 28), jnp.float32)
    params = init_params(kp)

    fwd = jax.jit(autoencoder_forward)
    y = fwd(params, x)
    y = jax.block_until_ready(y)

    assert y.shape == (2, 1, 28, 28), y.shape
    assert bool(jnp.all(jnp.isfinite(y)))
    assert bool(jnp.all((y >= 0.0) & (y <= 1.0)))   # sigmoid output range
    print("KERNEL_OK")
</pallas_src>

<mosaic_0001>
module attributes {stable_mosaic.version = 11 : i64} {
  func.func @_gemm_bias_act_kernel(%arg0: i32, %arg1: memref<400x9xbf16, #tpu.memory_space<vmem>>, %arg2: memref<9x128xbf16, #tpu.memory_space<vmem>>, %arg3: memref<1x128xf32, #tpu.memory_space<vmem>>, %arg4: memref<400x128xf32, #tpu.memory_space<vmem>>) attributes {dimension_semantics = [#tpu.dimension_semantics<parallel>], iteration_bounds = array<i64: 1>, scalar_prefetch = 0 : i64, scratch_operands = 0 : i64, tpu.core_type = #tpu.core_type<tc>, window_params = [{transform_indices = @transform_0, window_bounds = array<i64: 400, 9>}, {pipeline_mode = #tpu.pipeline_mode<synchronous>, transform_indices = @transform_1, window_bounds = array<i64: 9, 128>}, {pipeline_mode = #tpu.pipeline_mode<synchronous>, transform_indices = @transform_2, window_bounds = array<i64: 1, 128>}, {transform_indices = @transform_3, window_bounds = array<i64: 400, 128>}]} {
    %c0 = arith.constant 0 : index
    %c0_0 = arith.constant 0 : index
    %0 = vector.load %arg1[%c0, %c0_0] : memref<400x9xbf16, #tpu.memory_space<vmem>>, vector<400x9xbf16>
    %c0_1 = arith.constant 0 : index
    %c0_2 = arith.constant 0 : index
    %1 = vector.load %arg2[%c0_1, %c0_2] : memref<9x128xbf16, #tpu.memory_space<vmem>>, vector<9x128xbf16>
    %cst = arith.constant dense<0.000000e+00> : vector<400x128xf32>
    %2 = tpu.matmul %0, %1, %cst {dimension_numbers = #tpu.dot_dimension_numbers<[1], [0], [0], [1], [0, 0, 1, 1], [], []>} : vector<400x9xbf16>, vector<9x128xbf16>, vector<400x128xf32> -> vector<400x128xf32>
    %c0_3 = arith.constant 0 : index
    %c0_4 = arith.constant 0 : index
    %3 = vector.load %arg3[%c0_3, %c0_4] : memref<1x128xf32, #tpu.memory_space<vmem>>, vector<1x128xf32>
    %4 = vector.broadcast %3 : vector<1x128xf32> to vector<400x128xf32>
    %5 = arith.addf %2, %4 : vector<400x128xf32>
    %cst_5 = arith.constant 0.000000e+00 : f32
    %6 = vector.broadcast %cst_5 : f32 to vector<400x128xf32>
    %7 = arith.maximumf %5, %6 : vector<400x128xf32>
    %c0_6 = arith.constant 0 : index
    %c0_7 = arith.constant 0 : index
    %8 = vector.load %arg4[%c0_6, %c0_7] : memref<400x128xf32, #tpu.memory_space<vmem>>, vector<400x128xf32>
    tpu.vector_store %arg4[%c0_6, %c0_7], %7 {strides = array<i32>} : memref<400x128xf32, #tpu.memory_space<vmem>>, vector<400x128xf32>,
    return
  }
  func.func @transform_0(%arg0: i32) -> (i32, i32) {
    %c0_i32 = arith.constant 0 : i32
    %c0_i32_0 = arith.constant 0 : i32
    return %arg0, %c0_i32 : i32, i32
  }
  func.func @transform_1(%arg0: i32) -> (i32, i32) {
    %c0_i32 = arith.constant 0 : i32
    %c0_i32_0 = arith.constant 0 : i32
    %c0_i32_1 = arith.constant 0 : i32
    return %c0_i32, %c0_i32_0 : i32, i32
  }
  func.func @transform_2(%arg0: i32) -> (i32, i32) {
    %c0_i32 = arith.constant 0 : i32
    %c0_i32_0 = arith.constant 0 : i32
    %c0_i32_1 = arith.constant 0 : i32
    return %c0_i32, %c0_i32_0 : i32, i32
  }
  func.func @transform_3(%arg0: i32) -> (i32, i32) {
    %c0_i32 = arith.constant 0 : i32
    %c0_i32_0 = arith.constant 0 : i32
    return %arg0, %c0_i32 : i32, i32
  }
}

module attributes {stable_mosaic.version = 11 : i64} {
  func.func @_gemm_bias_act_kernel(%arg0: i32, %arg1: memref<112x144xbf16, #tpu.memory_space<vmem>>, %arg2: memref<144x128xbf16, #tpu.memory_space<vmem>>, %arg3: memref<1x128xf32, #tpu.memory_space<vmem>>, %arg4: memref<112x128xf32, #tpu.memory_space<vmem>>) attributes {dimension_semantics = [#tpu.dimension_semantics<parallel>], iteration_bounds = array<i64: 1>, scalar_prefetch = 0 : i64, scratch_operands = 0 : i64, tpu.core_type = #tpu.core_type<tc>, window_params = [{transform_indices = @transform_0, window_bounds = array<i64: 112, 144>}, {pipeline_mode = #tpu.pipeline_mode<synchronous>, transform_indices = @transform_1, window_bounds = array<i64: 144, 128>}, {pipeline_mode = #tpu.pipeline_mode<synchronous>, transform_indices = @transform_2, window_bounds = array<i64: 1, 128>}, {transform_indices = @transform_3, window_bounds = array<i64: 112, 128>}]} {
    %c0 = arith.constant 0 : index
    %c0_0 = arith.constant 0 : index
    %0 = vector.load %arg1[%c0, %c0_0] : memref<112x144xbf16, #tpu.memory_space<vmem>>, vector<112x144xbf16>
    %c0_1 = arith.constant 0 : index
    %c0_2 = arith.constant 0 : index
    %1 = vector.load %arg2[%c0_1, %c0_2] : memref<144x128xbf16, #tpu.memory_space<vmem>>, vector<144x128xbf16>
    %cst = arith.constant dense<0.000000e+00> : vector<112x128xf32>
    %2 = tpu.matmul %0, %1, %cst {dimension_numbers = #tpu.dot_dimension_numbers<[1], [0], [0], [1], [0, 0, 1, 1], [], []>} : vector<112x144xbf16>, vector<144x128xbf16>, vector<112x128xf32> -> vector<112x128xf32>
    %c0_3 = arith.constant 0 : index
    %c0_4 = arith.constant 0 : index
    %3 = vector.load %arg3[%c0_3, %c0_4] : memref<1x128xf32, #tpu.memory_space<vmem>>, vector<1x128xf32>
    %4 = vector.broadcast %3 : vector<1x128xf32> to vector<112x128xf32>
    %5 = arith.addf %2, %4 : vector<112x128xf32>
    %cst_5 = arith.constant 0.000000e+00 : f32
    %6 = vector.broadcast %cst_5 : f32 to vector<112x128xf32>
    %7 = arith.maximumf %5, %6 : vector<112x128xf32>
    %c0_6 = arith.constant 0 : index
    %c0_7 = arith.constant 0 : index
    %8 = vector.load %arg4[%c0_6, %c0_7] : memref<112x128xf32, #tpu.memory_space<vmem>>, vector<112x128xf32>
    tpu.vector_store %arg4[%c0_6, %c0_7], %7 {strides = array<i32>} : memref<112x128xf32, #tpu.memory_space<vmem>>, vector<112x128xf32>,
    return
  }
  func.func @transform_0(%arg0: i32) -> (i32, i32) {
    %c0_i32 = arith.constant 0 : i32
    %c0_i32_0 = arith.constant 0 : i32
    return %arg0, %c0_i32 : i32, i32
  }
  func.func @transform_1(%arg0: i32) -> (i32, i32) {
    %c0_i32 = arith.constant 0 : i32
    %c0_i32_0 = arith.constant 0 : i32
    %c0_i32_1 = arith.constant 0 : i32
    return %c0_i32, %c0_i32_0 : i32, i32
  }
  func.func @transform_2(%arg0: i32) -> (i32, i32) {
    %c0_i32 = arith.constant 0 : i32
    %c0_i32_0 = arith.constant 0 : i32
    %c0_i32_1 = arith.constant 0 : i32
    return %c0_i32, %c0_i32_0 : i32, i32
  }
  func.func @transform_3(%arg0: i32) -> (i32, i32) {
    %c0_i32 = arith.constant 0 : i32
    %c0_i32_0 = arith.constant 0 : i32
    return %arg0, %c0_i32 : i32, i32
  }
}

module attributes {stable_mosaic.version = 11 : i64} {
  func.func @_bottleneck_kernel(%arg0: i32, %arg1: memref<16x1568xbf16, #tpu.memory_space<vmem>>, %arg2: memref<1568x128xbf16, #tpu.memory_space<vmem>>, %arg3: memref<1x128xf32, #tpu.memory_space<vmem>>, %arg4: memref<128x1664xbf16, #tpu.memory_space<vmem>>, %arg5: memref<1x1664xf32, #tpu.memory_space<vmem>>, %arg6: memref<16x1664xf32, #tpu.memory_space<vmem>>) attributes {dimension_semantics = [#tpu.dimension_semantics<parallel>], iteration_bounds = array<i64: 1>, scalar_prefetch = 0 : i64, scratch_operands = 0 : i64, tpu.core_type = #tpu.core_type<tc>, window_params = [{transform_indices = @transform_0, window_bounds = array<i64: 16, 1568>}, {pipeline_mode = #tpu.pipeline_mode<synchronous>, transform_indices = @transform_1, window_bounds = array<i64: 1568, 128>}, {pipeline_mode = #tpu.pipeline_mode<synchronous>, transform_indices = @transform_2, window_bounds = array<i64: 1, 128>}, {pipeline_mode = #tpu.pipeline_mode<synchronous>, transform_indices = @transform_3, window_bounds = array<i64: 128, 1664>}, {pipeline_mode = #tpu.pipeline_mode<synchronous>, transform_indices = @transform_4, window_bounds = array<i64: 1, 1664>}, {transform_indices = @transform_5, window_bounds = array<i64: 16, 1664>}]} {
    %c0 = arith.constant 0 : index
    %c0_0 = arith.constant 0 : index
    %0 = vector.load %arg1[%c0, %c0_0] : memref<16x1568xbf16, #tpu.memory_space<vmem>>, vector<16x1568xbf16>
    %c0_1 = arith.constant 0 : index
    %c0_2 = arith.constant 0 : index
    %1 = vector.load %arg2[%c0_1, %c0_2] : memref<1568x128xbf16, #tpu.memory_space<vmem>>, vector<1568x128xbf16>
    %cst = arith.constant dense<0.000000e+00> : vector<16x128xf32>
    %2 = tpu.matmul %0, %1, %cst {dimension_numbers = #tpu.dot_dimension_numbers<[1], [0], [0], [1], [0, 0, 1, 1], [], []>} : vector<16x1568xbf16>, vector<1568x128xbf16>, vector<16x128xf32> -> vector<16x128xf32>
    %c0_3 = arith.constant 0 : index
    %c0_4 = arith.constant 0 : index
    %3 = vector.load %arg3[%c0_3, %c0_4] : memref<1x128xf32, #tpu.memory_space<vmem>>, vector<1x128xf32>
    %4 = vector.broadcast %3 : vector<1x128xf32> to vector<16x128xf32>
    %5 = arith.addf %2, %4 : vector<16x128xf32>
    %6 = arith.truncf %5 : vector<16x128xf32> to vector<16x128xbf16>
    %c0_5 = arith.constant 0 : index
    %c0_6 = arith.constant 0 : index
    %7 = vector.load %arg4[%c0_5, %c0_6] : memref<128x1664xbf16, #tpu.memory_space<vmem>>, vector<128x1664xbf16>
    %cst_7 = arith.constant dense<0.000000e+00> : vector<16x1664xf32>
    %8 = tpu.matmul %6, %7, %cst_7 {dimension_numbers = #tpu.dot_dimension_numbers<[1], [0], [0], [1], [0, 0, 1, 1], [], []>} : vector<16x128xbf16>, vector<128x1664xbf16>, vector<16x1664xf32> -> vector<16x1664xf32>
    %c0_8 = arith.constant 0 : index
    %c0_9 = arith.constant 0 : index
    %9 = vector.load %arg5[%c0_8, %c0_9] : memref<1x1664xf32, #tpu.memory_space<vmem>>, vector<1x1664xf32>
    %10 = vector.broadcast %9 : vector<1x1664xf32> to vector<16x1664xf32>
    %11 = arith.addf %8, %10 : vector<16x1664xf32>
    %cst_10 = arith.constant 0.000000e+00 : f32
    %12 = vector.broadcast %cst_10 : f32 to vector<16x1664xf32>
    %13 = arith.maximumf %11, %12 : vector<16x1664xf32>
    %c0_11 = arith.constant 0 : index
    %c0_12 = arith.constant 0 : index
    %14 = vector.load %arg6[%c0_11, %c0_12] : memref<16x1664xf32, #tpu.memory_space<vmem>>, vector<16x1664xf32>
    tpu.vector_store %arg6[%c0_11, %c0_12], %13 {strides = array<i32>} : memref<16x1664xf32, #tpu.memory_space<vmem>>, vector<16x1664xf32>,
    return
  }
  func.func @transform_0(%arg0: i32) -> (i32, i32) {
    %c0_i32 = arith.constant 0 : i32
    %c0_i32_0 = arith.constant 0 : i32
    return %arg0, %c0_i32 : i32, i32
  }
  func.func @transform_1(%arg0: i32) -> (i32, i32) {
    %c0_i32 = arith.constant 0 : i32
    %c0_i32_0 = arith.constant 0 : i32
    %c0_i32_1 = arith.constant 0 : i32
    return %c0_i32, %c0_i32_0 : i32, i32
  }
  func.func @transform_2(%arg0: i32) -> (i32, i32) {
    %c0_i32 = arith.constant 0 : i32
    %c0_i32_0 = arith.constant 0 : i32
    %c0_i32_1 = arith.constant 0 : i32
    return %c0_i32, %c0_i32_0 : i32, i32
  }
  func.func @transform_3(%arg0: i32) -> (i32, i32) {
    %c0_i32 = arith.constant 0 : i32
    %c0_i32_0 = arith.constant 0 : i32
    %c0_i32_1 = arith.constant 0 : i32
    return %c0_i32, %c0_i32_0 : i32, i32
  }
  func.func @transform_4(%arg0: i32) -> (i32, i32) {
    %c0_i32 = arith.constant 0 : i32
    %c0_i32_0 = arith.constant 0 : i32
    %c0_i32_1 = arith.constant 0 : i32
    return %c0_i32, %c0_i32_0 : i32, i32
  }
  func.func @transform_5(%arg0: i32) -> (i32, i32) {
    %c0_i32 = arith.constant 0 : i32
    %c0_i32_0 = arith.constant 0 : i32
    return %arg0, %c0_i32 : i32, i32
  }
}

module attributes {stable_mosaic.version = 11 : i64} {
  func.func @_gemm_bias_act_kernel(%arg0: i32, %arg1: memref<112x128xbf16, #tpu.memory_space<vmem>>, %arg2: memref<128x128xbf16, #tpu.memory_space<vmem>>, %arg3: memref<1x128xf32, #tpu.memory_space<vmem>>, %arg4: memref<112x128xf32, #tpu.memory_space<vmem>>) attributes {dimension_semantics = [#tpu.dimension_semantics<parallel>], iteration_bounds = array<i64: 1>, scalar_prefetch = 0 : i64, scratch_operands = 0 : i64, tpu.core_type = #tpu.core_type<tc>, window_params = [{transform_indices = @transform_0, window_bounds = array<i64: 112, 128>}, {pipeline_mode = #tpu.pipeline_mode<synchronous>, transform_indices = @transform_1, window_bounds = array<i64: 128, 128>}, {pipeline_mode = #tpu.pipeline_mode<synchronous>, transform_indices = @transform_2, window_bounds = array<i64: 1, 128>}, {transform_indices = @transform_3, window_bounds = array<i64: 112, 128>}]} {
    %c0 = arith.constant 0 : index
    %c0_0 = arith.constant 0 : index
    %0 = vector.load %arg1[%c0, %c0_0] : memref<112x128xbf16, #tpu.memory_space<vmem>>, vector<112x128xbf16>
    %c0_1 = arith.constant 0 : index
    %c0_2 = arith.constant 0 : index
    %1 = vector.load %arg2[%c0_1, %c0_2] : memref<128x128xbf16, #tpu.memory_space<vmem>>, vector<128x128xbf16>
    %cst = arith.constant dense<0.000000e+00> : vector<112x128xf32>
    %2 = tpu.matmul %0, %1, %cst {dimension_numbers = #tpu.dot_dimension_numbers<[1], [0], [0], [1], [0, 0, 1, 1], [], []>} : vector<112x128xbf16>, vector<128x128xbf16>, vector<112x128xf32> -> vector<112x128xf32>
    %c0_3 = arith.constant 0 : index
    %c0_4 = arith.constant 0 : index
    %3 = vector.load %arg3[%c0_3, %c0_4] : memref<1x128xf32, #tpu.memory_space<vmem>>, vector<1x128xf32>
    %4 = vector.broadcast %3 : vector<1x128xf32> to vector<112x128xf32>
    %5 = arith.addf %2, %4 : vector<112x128xf32>
    %cst_5 = arith.constant 0.000000e+00 : f32
    %6 = vector.broadcast %cst_5 : f32 to vector<112x128xf32>
    %7 = arith.maximumf %5, %6 : vector<112x128xf32>
    %c0_6 = arith.constant 0 : index
    %c0_7 = arith.constant 0 : index
    %8 = vector.load %arg4[%c0_6, %c0_7] : memref<112x128xf32, #tpu.memory_space<vmem>>, vector<112x128xf32>
    tpu.vector_store %arg4[%c0_6, %c0_7], %7 {strides = array<i32>} : memref<112x128xf32, #tpu.memory_space<vmem>>, vector<112x128xf32>,
    return
  }
  func.func @transform_0(%arg0: i32) -> (i32, i32) {
    %c0_i32 = arith.constant 0 : i32
    %c0_i32_0 = arith.constant 0 : i32
    return %arg0, %c0_i32 : i32, i32
  }
  func.func @transform_1(%arg0: i32) -> (i32, i32) {
    %c0_i32 = arith.constant 0 : i32
    %c0_i32_0 = arith.constant 0 : i32
    %c0_i32_1 = arith.constant 0 : i32
    return %c0_i32, %c0_i32_0 : i32, i32
  }
  func.func @transform_2(%arg0: i32) -> (i32, i32) {
    %c0_i32 = arith.constant 0 : i32
    %c0_i32_0 = arith.constant 0 : i32
    %c0_i32_1 = arith.constant 0 : i32
    return %c0_i32, %c0_i32_0 : i32, i32
  }
  func.func @transform_3(%arg0: i32) -> (i32, i32) {
    %c0_i32 = arith.constant 0 : i32
    %c0_i32_0 = arith.constant 0 : i32
    return %arg0, %c0_i32 : i32, i32
  }
}

module attributes {stable_mosaic.version = 11 : i64} {
  func.func @_gemm_bias_act_kernel(%arg0: i32, %arg1: memref<400x64xbf16, #tpu.memory_space<vmem>>, %arg2: memref<64x128xbf16, #tpu.memory_space<vmem>>, %arg3: memref<1x128xf32, #tpu.memory_space<vmem>>, %arg4: memref<400x128xf32, #tpu.memory_space<vmem>>) attributes {dimension_semantics = [#tpu.dimension_semantics<parallel>], iteration_bounds = array<i64: 1>, scalar_prefetch = 0 : i64, scratch_operands = 0 : i64, tpu.core_type = #tpu.core_type<tc>, window_params = [{transform_indices = @transform_0, window_bounds = array<i64: 400, 64>}, {pipeline_mode = #tpu.pipeline_mode<synchronous>, transform_indices = @transform_1, window_bounds = array<i64: 64, 128>}, {pipeline_mode = #tpu.pipeline_mode<synchronous>, transform_indices = @transform_2, window_bounds = array<i64: 1, 128>}, {transform_indices = @transform_3, window_bounds = array<i64: 400, 128>}]} {
    %c0 = arith.constant 0 : index
    %c0_0 = arith.constant 0 : index
    %0 = vector.load %arg1[%c0, %c0_0] : memref<400x64xbf16, #tpu.memory_space<vmem>>, vector<400x64xbf16>
    %c0_1 = arith.constant 0 : index
    %c0_2 = arith.constant 0 : index
    %1 = vector.load %arg2[%c0_1, %c0_2] : memref<64x128xbf16, #tpu.memory_space<vmem>>, vector<64x128xbf16>
    %cst = arith.constant dense<0.000000e+00> : vector<400x128xf32>
    %2 = tpu.matmul %0, %1, %cst {dimension_numbers = #tpu.dot_dimension_numbers<[1], [0], [0], [1], [0, 0, 1, 1], [], []>} : vector<400x64xbf16>, vector<64x128xbf16>, vector<400x128xf32> -> vector<400x128xf32>
    %c0_3 = arith.constant 0 : index
    %c0_4 = arith.constant 0 : index
    %3 = vector.load %arg3[%c0_3, %c0_4] : memref<1x128xf32, #tpu.memory_space<vmem>>, vector<1x128xf32>
    %4 = vector.broadcast %3 : vector<1x128xf32> to vector<400x128xf32>
    %5 = arith.addf %2, %4 : vector<400x128xf32>
    %cst_5 = arith.constant 0.000000e+00 : f32
    %6 = vector.broadcast %cst_5 : f32 to vector<400x128xf32>
    %7 = arith.subf %6, %5 : vector<400x128xf32>
    %8 = math.exp %7 : vector<400x128xf32>
    %cst_6 = arith.constant 1.000000e+00 : f32
    %9 = vector.broadcast %cst_6 : f32 to vector<400x128xf32>
    %10 = arith.addf %9, %8 : vector<400x128xf32>
    %11 = tpu.reciprocal %10 {approx = true} : vector<400x128xf32> -> vector<400x128xf32>
    %cst_7 = arith.constant 0.000000e+00 : f32
    %cst_8 = arith.constant 1.000000e+00 : f32
    %12 = vector.broadcast %cst_7 : f32 to vector<400x128xf32>
    %13 = arith.maximumf %12, %11 : vector<400x128xf32>
    %14 = vector.broadcast %cst_8 : f32 to vector<400x128xf32>
    %15 = arith.minimumf %14, %13 : vector<400x128xf32>
    %c0_9 = arith.constant 0 : index
    %c0_10 = arith.constant 0 : index
    %16 = vector.load %arg4[%c0_9, %c0_10] : memref<400x128xf32, #tpu.memory_space<vmem>>, vector<400x128xf32>
    tpu.vector_store %arg4[%c0_9, %c0_10], %15 {strides = array<i32>} : memref<400x128xf32, #tpu.memory_space<vmem>>, vector<400x128xf32>,
    return
  }
  func.func @transform_0(%arg0: i32) -> (i32, i32) {
    %c0_i32 = arith.constant 0 : i32
    %c0_i32_0 = arith.constant 0 : i32
    return %arg0, %c0_i32 : i32, i32
  }
  func.func @transform_1(%arg0: i32) -> (i32, i32) {
    %c0_i32 = arith.constant 0 : i32
    %c0_i32_0 = arith.constant 0 : i32
    %c0_i32_1 = arith.constant 0 : i32
    return %c0_i32, %c0_i32_0 : i32, i32
  }
  func.func @transform_2(%arg0: i32) -> (i32, i32) {
    %c0_i32 = arith.constant 0 : i32
    %c0_i32_0 = arith.constant 0 : i32
    %c0_i32_1 = arith.constant 0 : i32
    return %c0_i32, %c0_i32_0 : i32, i32
  }
  func.func @transform_3(%arg0: i32) -> (i32, i32) {
    %c0_i32 = arith.constant 0 : i32
    %c0_i32_0 = arith.constant 0 : i32
    return %arg0, %c0_i32 : i32, i32
  }
}

</mosaic_0001>

<llo_original>
// kernel: autoencoder_forward.5
$region0: #{autoencoder_forward.5}
  #allocation0 [shape = 'u32[]', space=smem, size = 0x4, offset = 0x4, fixed_abs, tag = 'smem constant byte address 0x4 - core index']
  #allocation1 [shape = 'u32[144,128]{1,0:T(1,128)}', space=vmem, size = 0x12000, scoped, tag = 'internal scratch']
  %s0 = inlined_call_operand.vmem [shape: bf16[400,9], index: 0, kind: input, shape index: {}]
  %s1 = inlined_call_operand.vmem [shape: bf16[9,128], index: 1, kind: input, shape index: {}]
  %s2 = inlined_call_operand.vmem [shape: f32[1,128], index: 2, kind: input, shape index: {}]
  %s3 = inlined_call_operand.vmem [shape: f32[400,128], index: 3, kind: output, shape index: {}]
  %s4 = sld [smem:[#allocation0]]
  $region22: #{autoencoder_forward.5} parent=0
    _
  %s6 = ssub.s32 1, %s4
  %s7 = scalar_select 0, %s6, %s4
  // Predicated region
  $region2: #{autoencoder_forward.5} parent=0 // pred_check
    _
  $region3: #{autoencoder_forward.5} parent=0 // pred_check_branch
    %9 = sbr.rel (0) target = $region5
  $region4: #{autoencoder_forward.5} parent=0 // pred_region
    _
  $region5: #{autoencoder_forward.5} parent=0 // pred_fallthru
    _
  // Predicated region
  $region6: #{autoencoder_forward.5} parent=0 // pred_check
    _
  $region7: #{autoencoder_forward.5} parent=0 // pred_check_branch
    %11 = sbr.rel (0) target = $region9
  $region8: #{autoencoder_forward.5} parent=0 // pred_region
    _
  $region9: #{autoencoder_forward.5} parent=0 // pred_fallthru
    _
  // Predicated region
  $region10: #{autoencoder_forward.5} parent=0 // pred_check
    _
  $region11: #{autoencoder_forward.5} parent=0 // pred_check_branch
    %13 = sbr.rel (0) target = $region13
  $region12: #{autoencoder_forward.5} parent=0 // pred_region
    _
  $region13: #{autoencoder_forward.5} parent=0 // pred_fallthru
    _
  %v15 = vld [vmem:[%s0] sm:$0xf]
  %v16 = vld [vmem:[%s0 + $0x4] sm:$0xf]
  %v17 = vld [vmem:[%s0 + $0x8] sm:$0xf]
  %v18 = vld [vmem:[%s0 + $0xc] sm:$0xf]
  %v19 = vld [vmem:[%s0 + $0x10] sm:$0xf]
  %v20 = vld [vmem:[%s0 + $0x14] sm:$0xf]
  %v21 = vld [vmem:[%s0 + $0x18] sm:$0xf]
  %v22 = vld [vmem:[%s0 + $0x1c] sm:$0xf]
  %v23 = vld [vmem:[%s0 + $0x20] sm:$0xf]
  %v24 = vld [vmem:[%s0 + $0x24] sm:$0xf]
  %v25 = vld [vmem:[%s0 + $0x28] sm:$0xf]
  %v26 = vld [vmem:[%s0 + $0x2c] sm:$0xf]
  %v27 = vld [vmem:[%s0 + $0x30] sm:$0xf]
  %v28 = vld [vmem:[%s0 + $0x34] sm:$0xf]
  %v29 = vld [vmem:[%s0 + $0x38] sm:$0xf]
  %v30 = vld [vmem:[%s0 + $0x3c] sm:$0xf]
  %v31 = vld [vmem:[%s0 + $0x40] sm:$0xf]
  %v32 = vld [vmem:[%s0 + $0x44] sm:$0xf]
  %v33 = vld [vmem:[%s0 + $0x48] sm:$0xf]
  %v34 = vld [vmem:[%s0 + $0x4c] sm:$0xf]
  %v35 = vld [vmem:[%s0 + $0x50] sm:$0xf]
  %v36 = vld [vmem:[%s0 + $0x54] sm:$0xf]
  %v37 = vld [vmem:[%s0 + $0x58] sm:$0xf]
  %v38 = vld [vmem:[%s0 + $0x5c] sm:$0xf]
  %v39 = vld [vmem:[%s0 + $0x60] sm:$0xf]
  %v40 = vld [vmem:[%s0 + $0x64] sm:$0xf]
  %v41 = vld [vmem:[%s0 + $0x68] sm:$0xf]
  %v42 = vld [vmem:[%s0 + $0x6c] sm:$0xf]
  %v43 = vld [vmem:[%s0 + $0x70] sm:$0xf]
  %v44 = vld [vmem:[%s0 + $0x74] sm:$0xf]
  %v45 = vld [vmem:[%s0 + $0x78] sm:$0xf]
  %v46 = vld [vmem:[%s0 + $0x7c] sm:$0xf]
  %v47 = vld [vmem:[%s0 + $0x80] sm:$0xf]
  %v48 = vld [vmem:[%s0 + $0x84] sm:$0xf]
  %v49 = vld [vmem:[%s0 + $0x88] sm:$0xf]
  %v50 = vld [vmem:[%s0 + $0x8c] sm:$0xf]
  %v51 = vld [vmem:[%s0 + $0x90] sm:$0xf]
  %v52 = vld [vmem:[%s0 + $0x94] sm:$0xf]
  %v53 = vld [vmem:[%s0 + $0x98] sm:$0xf]
  %v54 = vld [vmem:[%s0 + $0x9c] sm:$0xf]
  %v55 = vld [vmem:[%s0 + $0xa0] sm:$0xf]
  %v56 = vld [vmem:[%s0 + $0xa4] sm:$0xf]
  %v57 = vld [vmem:[%s0 + $0xa8] sm:$0xf]
  %v58 = vld [vmem:[%s0 + $0xac] sm:$0xf]
  %v59 = vld [vmem:[%s0 + $0xb0] sm:$0xf]
  %v60 = vld [vmem:[%s0 + $0xb4] sm:$0xf]
  %v61 = vld [vmem:[%s0 + $0xb8] sm:$0xf]
  %v62 = vld [vmem:[%s0 + $0xbc] sm:$0xf]
  %v63 = vld [vmem:[%s0 + $0xc0] sm:$0xf]
  %v64 = vld [vmem:[%s0 + $0xc4] sm:$0xf]
  %v65 = vld [vmem:[%s1] sm:$0xf]
  %v66 = vld [vmem:[%s1 + $0x4] sm:$0x1]
  %v67 = vld [vmem:[%s2] sm:$0x1]
  %v69 = vlaneseq
  %v70 = vshrl.u32 %v69, 7
  %v71 = vsub.s32 0, %v70
  %v72 = vrot.slane %v67, %v71
  %v124 = vunpack.c.l.b16 %v15
  %v125 = vunpack.c.l.b16 %v16
  %v126 = vunpack.c.l.b16 %v17
  %v127 = vunpack.c.l.b16 %v18
  %v128 = vunpack.c.l.b16 %v19
  %v129 = vunpack.c.l.b16 %v20
  %v130 = vunpack.c.l.b16 %v21
  %v131 = vunpack.c.l.b16 %v22
  %v132 = vunpack.c.l.b16 %v23
  %v133 = vunpack.c.l.b16 %v24
  %v134 = vunpack.c.l.b16 %v25
  %v135 = vunpack.c.l.b16 %v26
  %v136 = vunpack.c.l.b16 %v27
  %v137 = vunpack.c.l.b16 %v28
  %v138 = vunpack.c.l.b16 %v29
  %v139 = vunpack.c.l.b16 %v30
  %v140 = vunpack.c.l.b16 %v31
  %v141 = vunpack.c.l.b16 %v32
  %v142 = vunpack.c.l.b16 %v33
  %v143 = vunpack.c.l.b16 %v34
  %v144 = vunpack.c.l.b16 %v35
  %v145 = vunpack.c.l.b16 %v36
  %v146 = vunpack.c.l.b16 %v37
  %v147 = vunpack.c.l.b16 %v38
  %v148 = vunpack.c.l.b16 %v39
  %v149 = vunpack.c.l.b16 %v40
  %v150 = vunpack.c.l.b16 %v41
  %v151 = vunpack.c.l.b16 %v42
  %v152 = vunpack.c.l.b16 %v43
  %v153 = vunpack.c.l.b16 %v44
  %v154 = vunpack.c.l.b16 %v45
  %v155 = vunpack.c.l.b16 %v46
  %v156 = vunpack.c.l.b16 %v47
  %v157 = vunpack.c.l.b16 %v48
  %v158 = vunpack.c.l.b16 %v49
  %v159 = vunpack.c.l.b16 %v50
  %v160 = vunpack.c.l.b16 %v51
  %v161 = vunpack.c.l.b16 %v52
  %v162 = vunpack.c.l.b16 %v53
  %v163 = vunpack.c.l.b16 %v54
  %v164 = vunpack.c.l.b16 %v55
  %v165 = vunpack.c.l.b16 %v56
  %v166 = vunpack.c.l.b16 %v57
  %v167 = vunpack.c.l.b16 %v58
  %v168 = vunpack.c.l.b16 %v59
  %v169 = vunpack.c.l.b16 %v60
  %v170 = vunpack.c.l.b16 %v61
  %v171 = vunpack.c.l.b16 %v62
  %v172 = vunpack.c.l.b16 %v63
  %v173 = vunpack.c.l.b16 %v64
  %v174 = vpack.c.b16 %v125, %v124
  %v175 = vpack.c.b16 %v127, %v126
  %v176 = vpack.c.b16 %v129, %v128
  %v177 = vpack.c.b16 %v131, %v130
  %v178 = vpack.c.b16 %v133, %v132
  %v179 = vpack.c.b16 %v135, %v134
  %v180 = vpack.c.b16 %v137, %v136
  %v181 = vpack.c.b16 %v139, %v138
  %v182 = vpack.c.b16 %v141, %v140
  %v183 = vpack.c.b16 %v143, %v142
  %v184 = vpack.c.b16 %v145, %v144
  %v185 = vpack.c.b16 %v147, %v146
  %v186 = vpack.c.b16 %v149, %v148
  %v187 = vpack.c.b16 %v151, %v150
  %v188 = vpack.c.b16 %v153, %v152
  %v189 = vpack.c.b16 %v155, %v154
  %v190 = vpack.c.b16 %v157, %v156
  %v191 = vpack.c.b16 %v159, %v158
  %v192 = vpack.c.b16 %v161, %v160
  %v193 = vpack.c.b16 %v163, %v162
  %v194 = vpack.c.b16 %v165, %v164
  %v195 = vpack.c.b16 %v167, %v166
  %v196 = vpack.c.b16 %v169, %v168
  %v197 = vpack.c.b16 %v171, %v170
  %v198 = vpack.c.b16 %v173, %v172
  %v201 = vunpack.c.l.b16 %v65
  %v202 = vunpack.c.l.b16 %v66
  %v203 = vpack.c.b16 %v202, %v201
  %vm204 = vcmask 72704
  %v206 = vsel %vm204, %v174, 0
  %v209 = vsel %vm204, %v175, 0
  %v212 = vsel %vm204, %v176, 0
  %v215 = vsel %vm204, %v177, 0
  %v218 = vsel %vm204, %v178, 0
  %v221 = vsel %vm204, %v179, 0
  %v224 = vsel %vm204, %v180, 0
  %v227 = vsel %vm204, %v181, 0
  %v230 = vsel %vm204, %v182, 0
  %v233 = vsel %vm204, %v183, 0
  %v236 = vsel %vm204, %v184, 0
  %v239 = vsel %vm204, %v185, 0
  %v242 = vsel %vm204, %v186, 0
  %v245 = vsel %vm204, %v187, 0
  %v248 = vsel %vm204, %v188, 0
  %v251 = vsel %vm204, %v189, 0
  %v254 = vsel %vm204, %v190, 0
  %v257 = vsel %vm204, %v191, 0
  %v260 = vsel %vm204, %v192, 0
  %v263 = vsel %vm204, %v193, 0
  %v266 = vsel %vm204, %v194, 0
  %v269 = vsel %vm204, %v195, 0
  %v272 = vsel %vm204, %v196, 0
  %v275 = vsel %vm204, %v197, 0
  %v278 = vsel %vm204, %v198, 0
  %vm280 = vcmask 1043456
  %vm281 = vcmask 1044480
  %v282 = vsel %vm280, 4294967295, 65535
  %v283 = vsel %vm281, %v282, 0
  %v285 = vand.u32 %v203, %v283
  %287 = vmatprep.subr.bf16.mxu0 0
  %288 = vmatpush1.bf16.msra.mxu0 0
  %289 = vmatprep.subr.bf16.mxu0 0
  %290 = vmatpush1.bf16.msra.mxu0 0
  %291 = vmatprep.subr.bf16.mxu0 0
  %292 = vmatpush1.bf16.msra.mxu0 0
  %293 = vmatprep.subr.bf16.mxu0 0
  %294 = vmatpush1.bf16.msra.mxu0 0
  %295 = vmatprep.subr.bf16.mxu0 0
  %296 = vmatpush1.bf16.msra.mxu0 0
  %297 = vmatprep.subr.bf16.mxu0 0
  %298 = vmatpush1.bf16.msra.mxu0 0
  %299 = vmatprep.subr.bf16.mxu0 0
  %300 = vmatpush1.bf16.msra.mxu0 0
  %301 = vmatprep.subr.bf16.mxu0 0
  %302 = vmatpush1.bf16.msra.mxu0 %v285
  %303 = vmatprep.subr.bf16.mxu0 0
  %304 = vmatpush2.bf16.msra.mxu0 0
  %305 = vmatprep.subr.bf16.mxu0 0
  %306 = vmatpush2.bf16.msra.mxu0 0
  %307 = vmatprep.subr.bf16.mxu0 0
  %308 = vmatpush2.bf16.msra.mxu0 0
  %309 = vmatprep.subr.bf16.mxu0 0
  %310 = vmatpush2.bf16.msra.mxu0 0
  %311 = vmatprep.subr.bf16.mxu0 0
  %312 = vmatpush2.bf16.msra.mxu0 0
  %313 = vmatprep.subr.bf16.mxu0 0
  %314 = vmatpush2.bf16.msra.mxu0 0
  %315 = vmatprep.subr.bf16.mxu0 0
  %316 = vmatpush2.bf16.msra.mxu0 0
  %317 = vmatprep.subr.bf16.mxu0 0
  %318 = vmatpush2.bf16.msra.mxu0 0
  %319 = vmatprep.mubr.bf16.mxu0 0
  %320 = vmatmul.mubr.bf16.gmra.mxu0 %v206
  %v321 = vpop.f32.mrf.mxu0
  %v322 = vadd.f32 %v72, %v321
  %v323 = vpop.f32.mrf.mxu0
  %v324 = vpop.f32.mrf.mxu0
  %v325 = vadd.f32 %v72, %v324
  %v326 = vpop.f32.mrf.mxu0
  %327 = vmatprep.mubr.bf16.mxu0 0
  %328 = vmatmul.mubr.bf16.gmra.mxu0 %v209
  %v329 = vpop.f32.mrf.mxu0
  %v330 = vadd.f32 %v72, %v329
  %v331 = vpop.f32.mrf.mxu0
  %v332 = vpop.f32.mrf.mxu0
  %v333 = vadd.f32 %v72, %v332
  %v334 = vpop.f32.mrf.mxu0
  %335 = vmatprep.mubr.bf16.mxu0 0
  %336 = vmatmul.mubr.bf16.gmra.mxu0 %v212
  %v337 = vpop.f32.mrf.mxu0
  %v338 = vadd.f32 %v72, %v337
  %v339 = vpop.f32.mrf.mxu0
  %v340 = vpop.f32.mrf.mxu0
  %v341 = vadd.f32 %v72, %v340
  %v342 = vpop.f32.mrf.mxu0
  %343 = vmatprep.mubr.bf16.mxu0 0
  %344 = vmatmul.mubr.bf16.gmra.mxu0 %v215
  %v345 = vpop.f32.mrf.mxu0
  %v346 = vadd.f32 %v72, %v345
  %v347 = vpop.f32.mrf.mxu0
  %v348 = vpop.f32.mrf.mxu0
  %v349 = vadd.f32 %v72, %v348
  %v350 = vpop.f32.mrf.mxu0
  %351 = vmatprep.mubr.bf16.mxu0 0
  %352 = vmatmul.mubr.bf16.gmra.mxu0 %v218
  %v353 = vpop.f32.mrf.mxu0
  %v354 = vadd.f32 %v72, %v353
  %v355 = vpop.f32.mrf.mxu0
  %v356 = vpop.f32.mrf.mxu0
  %v357 = vadd.f32 %v72, %v356
  %v358 = vpop.f32.mrf.mxu0
  %359 = vmatprep.mubr.bf16.mxu0 0
  %360 = vmatmul.mubr.bf16.gmra.mxu0 %v221
  %v361 = vpop.f32.mrf.mxu0
  %v362 = vadd.f32 %v72, %v361
  %v363 = vpop.f32.mrf.mxu0
  %v364 = vpop.f32.mrf.mxu0
  %v365 = vadd.f32 %v72, %v364
  %v366 = vpop.f32.mrf.mxu0
  %367 = vmatprep.mubr.bf16.mxu0 0
  %368 = vmatmul.mubr.bf16.gmra.mxu0 %v224
  %v369 = vpop.f32.mrf.mxu0
  %v370 = vadd.f32 %v72, %v369
  %v371 = vpop.f32.mrf.mxu0
  %v372 = vpop.f32.mrf.mxu0
  %v373 = vadd.f32 %v72, %v372
  %v374 = vpop.f32.mrf.mxu0
  %375 = vmatprep.mubr.bf16.mxu0 0
  %376 = vmatmul.mubr.bf16.gmra.mxu0 %v227
  %v377 = vpop.f32.mrf.mxu0
  %v378 = vadd.f32 %v72, %v377
  %v379 = vpop.f32.mrf.mxu0
  %v380 = vpop.f32.mrf.mxu0
  %v381 = vadd.f32 %v72, %v380
  %v382 = vpop.f32.mrf.mxu0
  %383 = vmatprep.mubr.bf16.mxu0 0
  %384 = vmatmul.mubr.bf16.gmra.mxu0 %v230
  %v385 = vpop.f32.mrf.mxu0
  %v386 = vadd.f32 %v72, %v385
  %v387 = vpop.f32.mrf.mxu0
  %v388 = vpop.f32.mrf.mxu0
  %v389 = vadd.f32 %v72, %v388
  %v390 = vpop.f32.mrf.mxu0
  %391 = vmatprep.mubr.bf16.mxu0 0
  %392 = vmatmul.mubr.bf16.gmra.mxu0 %v233
  %v393 = vpop.f32.mrf.mxu0
  %v394 = vadd.f32 %v72, %v393
  %v395 = vpop.f32.mrf.mxu0
  %v396 = vpop.f32.mrf.mxu0
  %v397 = vadd.f32 %v72, %v396
  %v398 = vpop.f32.mrf.mxu0
  %399 = vmatprep.mubr.bf16.mxu0 0
  %400 = vmatmul.mubr.bf16.gmra.mxu0 %v236
  %v401 = vpop.f32.mrf.mxu0
  %v402 = vadd.f32 %v72, %v401
  %v403 = vpop.f32.mrf.mxu0
  %v404 = vpop.f32.mrf.mxu0
  %v405 = vadd.f32 %v72, %v404
  %v406 = vpop.f32.mrf.mxu0
  %407 = vmatprep.mubr.bf16.mxu0 0
  %408 = vmatmul.mubr.bf16.gmra.mxu0 %v239
  %v409 = vpop.f32.mrf.mxu0
  %v410 = vadd.f32 %v72, %v409
  %v411 = vpop.f32.mrf.mxu0
  %v412 = vpop.f32.mrf.mxu0
  %v413 = vadd.f32 %v72, %v412
  %v414 = vpop.f32.mrf.mxu0
  %415 = vmatprep.mubr.bf16.mxu0 0
  %416 = vmatmul.mubr.bf16.gmra.mxu0 %v242
  %v417 = vpop.f32.mrf.mxu0
  %v418 = vadd.f32 %v72, %v417
  %v419 = vpop.f32.mrf.mxu0
  %v420 = vpop.f32.mrf.mxu0
  %v421 = vadd.f32 %v72, %v420
  %v422 = vpop.f32.mrf.mxu0
  %423 = vmatprep.mubr.bf16.mxu0 0
  %424 = vmatmul.mubr.bf16.gmra.mxu0 %v245
  %v425 = vpop.f32.mrf.mxu0
  %v426 = vadd.f32 %v72, %v425
  %v427 = vpop.f32.mrf.mxu0
  %v428 = vpop.f32.mrf.mxu0
  %v429 = vadd.f32 %v72, %v428
  %v430 = vpop.f32.mrf.mxu0
  %431 = vmatprep.mubr.bf16.mxu0 0
  %432 = vmatmul.mubr.bf16.gmra.mxu0 %v248
  %v433 = vpop.f32.mrf.mxu0
  %v434 = vadd.f32 %v72, %v433
  %v435 = vpop.f32.mrf.mxu0
  %v436 = vpop.f32.mrf.mxu0
  %v437 = vadd.f32 %v72, %v436
  %v438 = vpop.f32.mrf.mxu0
  %439 = vmatprep.mubr.bf16.mxu0 0
  %440 = vmatmul.mubr.bf16.gmra.mxu0 %v251
  %v441 = vpop.f32.mrf.mxu0
  %v442 = vadd.f32 %v72, %v441
  %v443 = vpop.f32.mrf.mxu0
  %v444 = vpop.f32.mrf.mxu0
  %v445 = vadd.f32 %v72, %v444
  %v446 = vpop.f32.mrf.mxu0
  %447 = vmatprep.mubr.bf16.mxu0 0
  %448 = vmatmul.mubr.bf16.gmra.mxu0 %v254
  %v449 = vpop.f32.mrf.mxu0
  %v450 = vadd.f32 %v72, %v449
  %v451 = vpop.f32.mrf.mxu0
  %v452 = vpop.f32.mrf.mxu0
  %v453 = vadd.f32 %v72, %v452
  %v454 = vpop.f32.mrf.mxu0
  %455 = vmatprep.mubr.bf16.mxu0 0
  %456 = vmatmul.mubr.bf16.gmra.mxu0 %v257
  %v457 = vpop.f32.mrf.mxu0
  %v458 = vadd.f32 %v72, %v457
  %v459 = vpop.f32.mrf.mxu0
  %v460 = vpop.f32.mrf.mxu0
  %v461 = vadd.f32 %v72, %v460
  %v462 = vpop.f32.mrf.mxu0
  %463 = vmatprep.mubr.bf16.mxu0 0
  %464 = vmatmul.mubr.bf16.gmra.mxu0 %v260
  %v465 = vpop.f32.mrf.mxu0
  %v466 = vadd.f32 %v72, %v465
  %v467 = vpop.f32.mrf.mxu0
  %v468 = vpop.f32.mrf.mxu0
  %v469 = vadd.f32 %v72, %v468
  %v470 = vpop.f32.mrf.mxu0
  %471 = vmatprep.mubr.bf16.mxu0 0
  %472 = vmatmul.mubr.bf16.gmra.mxu0 %v263
  %v473 = vpop.f32.mrf.mxu0
  %v474 = vadd.f32 %v72, %v473
  %v475 = vpop.f32.mrf.mxu0
  %v476 = vpop.f32.mrf.mxu0
  %v477 = vadd.f32 %v72, %v476
  %v478 = vpop.f32.mrf.mxu0
  %479 = vmatprep.mubr.bf16.mxu0 0
  %480 = vmatmul.mubr.bf16.gmra.mxu0 %v266
  %v481 = vpop.f32.mrf.mxu0
  %v482 = vadd.f32 %v72, %v481
  %v483 = vpop.f32.mrf.mxu0
  %v484 = vpop.f32.mrf.mxu0
  %v485 = vadd.f32 %v72, %v484
  %v486 = vpop.f32.mrf.mxu0
  %487 = vmatprep.mubr.bf16.mxu0 0
  %488 = vmatmul.mubr.bf16.gmra.mxu0 %v269
  %v489 = vpop.f32.mrf.mxu0
  %v490 = vadd.f32 %v72, %v489
  %v491 = vpop.f32.mrf.mxu0
  %v492 = vpop.f32.mrf.mxu0
  %v493 = vadd.f32 %v72, %v492
  %v494 = vpop.f32.mrf.mxu0
  %495 = vmatprep.mubr.bf16.mxu0 0
  %496 = vmatmul.mubr.bf16.gmra.mxu0 %v272
  %v497 = vpop.f32.mrf.mxu0
  %v498 = vadd.f32 %v72, %v497
  %v499 = vpop.f32.mrf.mxu0
  %v500 = vpop.f32.mrf.mxu0
  %v501 = vadd.f32 %v72, %v500
  %v502 = vpop.f32.mrf.mxu0
  %503 = vmatprep.mubr.bf16.mxu0 0
  %504 = vmatmul.mubr.bf16.gmra.mxu0 %v275
  %v505 = vpop.f32.mrf.mxu0
  %v506 = vadd.f32 %v72, %v505
  %v507 = vpop.f32.mrf.mxu0
  %v508 = vpop.f32.mrf.mxu0
  %v509 = vadd.f32 %v72, %v508
  %v510 = vpop.f32.mrf.mxu0
  %511 = vmatprep.mubr.bf16.mxu0 0
  %512 = vmatmul.mubr.bf16.gmra.mxu0 %v278
  %v513 = vpop.f32.mrf.mxu0
  %v514 = vadd.f32 %v72, %v513
  %v515 = vpop.f32.mrf.mxu0
  %v516 = vpop.f32.mrf.mxu0
  %v517 = vadd.f32 %v72, %v516
  %v518 = vpop.f32.mrf.mxu0
  %519 = vdwg.mxu0
  %v520 = vmax.f32 %v322, 0.0
  %v521 = vmax.f32 %v325, 0.0
  %v522 = vmax.f32 %v330, 0.0
  %v523 = vmax.f32 %v333, 0.0
  %v524 = vmax.f32 %v338, 0.0
  %v525 = vmax.f32 %v341, 0.0
  %v526 = vmax.f32 %v346, 0.0
  %v527 = vmax.f32 %v349, 0.0
  %v528 = vmax.f32 %v354, 0.0
  %v529 = vmax.f32 %v357, 0.0
  %v530 = vmax.f32 %v362, 0.0
  %v531 = vmax.f32 %v365, 0.0
  %v532 = vmax.f32 %v370, 0.0
  %v533 = vmax.f32 %v373, 0.0
  %v534 = vmax.f32 %v378, 0.0
  %v535 = vmax.f32 %v381, 0.0
  %v536 = vmax.f32 %v386, 0.0
  %v537 = vmax.f32 %v389, 0.0
  %v538 = vmax.f32 %v394, 0.0
  %v539 = vmax.f32 %v397, 0.0
  %v540 = vmax.f32 %v402, 0.0
  %v541 = vmax.f32 %v405, 0.0
  %v542 = vmax.f32 %v410, 0.0
  %v543 = vmax.f32 %v413, 0.0
  %v544 = vmax.f32 %v418, 0.0
  %v545 = vmax.f32 %v421, 0.0
  %v546 = vmax.f32 %v426, 0.0
  %v547 = vmax.f32 %v429, 0.0
  %v548 = vmax.f32 %v434, 0.0
  %v549 = vmax.f32 %v437, 0.0
  %v550 = vmax.f32 %v442, 0.0
  %v551 = vmax.f32 %v445, 0.0
  %v552 = vmax.f32 %v450, 0.0
  %v553 = vmax.f32 %v453, 0.0
  %v554 = vmax.f32 %v458, 0.0
  %v555 = vmax.f32 %v461, 0.0
  %v556 = vmax.f32 %v466, 0.0
  %v557 = vmax.f32 %v469, 0.0
  %v558 = vmax.f32 %v474, 0.0
  %v559 = vmax.f32 %v477, 0.0
  %v560 = vmax.f32 %v482, 0.0
  %v561 = vmax.f32 %v485, 0.0
  %v562 = vmax.f32 %v490, 0.0
  %v563 = vmax.f32 %v493, 0.0
  %v564 = vmax.f32 %v498, 0.0
  %v565 = vmax.f32 %v501, 0.0
  %v566 = vmax.f32 %v506, 0.0
  %v567 = vmax.f32 %v509, 0.0
  %v568 = vmax.f32 %v514, 0.0
  %v569 = vmax.f32 %v517, 0.0
  %570 = vst [vmem:[%s3] sm:$0xff] %v520
  %571 = vst [vmem:[%s3 + $0x8] sm:$0xff] %v521
  %572 = vst [vmem:[%s3 + $0x10] sm:$0xff] %v522
  %573 = vst [vmem:[%s3 + $0x18] sm:$0xff] %v523
  %574 = vst [vmem:[%s3 + $0x20] sm:$0xff] %v524
  %575 = vst [vmem:[%s3 + $0x28] sm:$0xff] %v525
  %576 = vst [vmem:[%s3 + $0x30] sm:$0xff] %v526
  %577 = vst [vmem:[%s3 + $0x38] sm:$0xff] %v527
  %578 = vst [vmem:[%s3 + $0x40] sm:$0xff] %v528
  %579 = vst [vmem:[%s3 + $0x48] sm:$0xff] %v529
  %580 = vst [vmem:[%s3 + $0x50] sm:$0xff] %v530
  %581 = vst [vmem:[%s3 + $0x58] sm:$0xff] %v531
  %582 = vst [vmem:[%s3 + $0x60] sm:$0xff] %v532
  %583 = vst [vmem:[%s3 + $0x68] sm:$0xff] %v533
  %584 = vst [vmem:[%s3 + $0x70] sm:$0xff] %v534
  %585 = vst [vmem:[%s3 + $0x78] sm:$0xff] %v535
  %586 = vst [vmem:[%s3 + $0x80] sm:$0xff] %v536
  %587 = vst [vmem:[%s3 + $0x88] sm:$0xff] %v537
  %588 = vst [vmem:[%s3 + $0x90] sm:$0xff] %v538
  %589 = vst [vmem:[%s3 + $0x98] sm:$0xff] %v539
  %590 = vst [vmem:[%s3 + $0xa0] sm:$0xff] %v540
  %591 = vst [vmem:[%s3 + $0xa8] sm:$0xff] %v541
  %592 = vst [vmem:[%s3 + $0xb0] sm:$0xff] %v542
  %593 = vst [vmem:[%s3 + $0xb8] sm:$0xff] %v543
  %594 = vst [vmem:[%s3 + $0xc0] sm:$0xff] %v544
  %595 = vst [vmem:[%s3 + $0xc8] sm:$0xff] %v545
  %596 = vst [vmem:[%s3 + $0xd0] sm:$0xff] %v546
  %597 = vst [vmem:[%s3 + $0xd8] sm:$0xff] %v547
  %598 = vst [vmem:[%s3 + $0xe0] sm:$0xff] %v548
  %599 = vst [vmem:[%s3 + $0xe8] sm:$0xff] %v549
  %600 = vst [vmem:[%s3 + $0xf0] sm:$0xff] %v550
  %601 = vst [vmem:[%s3 + $0xf8] sm:$0xff] %v551
  %602 = vst [vmem:[%s3 + $0x100] sm:$0xff] %v552
  %603 = vst [vmem:[%s3 + $0x108] sm:$0xff] %v553
  %604 = vst [vmem:[%s3 + $0x110] sm:$0xff] %v554
  %605 = vst [vmem:[%s3 + $0x118] sm:$0xff] %v555
  %606 = vst [vmem:[%s3 + $0x120] sm:$0xff] %v556
  %607 = vst [vmem:[%s3 + $0x128] sm:$0xff] %v557
  %608 = vst [vmem:[%s3 + $0x130] sm:$0xff] %v558
  %609 = vst [vmem:[%s3 + $0x138] sm:$0xff] %v559
  %610 = vst [vmem:[%s3 + $0x140] sm:$0xff] %v560
  %611 = vst [vmem:[%s3 + $0x148] sm:$0xff] %v561
  %612 = vst [vmem:[%s3 + $0x150] sm:$0xff] %v562
  %613 = vst [vmem:[%s3 + $0x158] sm:$0xff] %v563
  %614 = vst [vmem:[%s3 + $0x160] sm:$0xff] %v564
  %615 = vst [vmem:[%s3 + $0x168] sm:$0xff] %v565
  %616 = vst [vmem:[%s3 + $0x170] sm:$0xff] %v566
  %617 = vst [vmem:[%s3 + $0x178] sm:$0xff] %v567
  %618 = vst [vmem:[%s3 + $0x180] sm:$0xff] %v568
  %619 = vst [vmem:[%s3 + $0x188] sm:$0xff] %v569
  // Predicated region
  $region14: #{autoencoder_forward.5} parent=0 // pred_check
    _
  $region15: #{autoencoder_forward.5} parent=0 // pred_check_branch
    %621 = sbr.rel (0) target = $region17
  $region16: #{autoencoder_forward.5} parent=0 // pred_region
    _
  $region17: #{autoencoder_forward.5} parent=0 // pred_fallthru
    _
  // Predicated region
  $region18: #{autoencoder_forward.5} parent=0 // pred_check
    _
  $region19: #{autoencoder_forward.5} parent=0 // pred_check_branch
    %623 = sbr.rel (0) target = $region21
  $region20: #{autoencoder_forward.5} parent=0 // pred_region
    _
  $region21: #{autoencoder_forward.5} parent=0 // pred_fallthru
    _

// kernel: autoencoder_forward.6
$region0: #{autoencoder_forward.6}
  #allocation0 [shape = 'u32[]', space=smem, size = 0x4, offset = 0x4, fixed_abs, tag = 'smem constant byte address 0x4 - core index']
  #allocation1 [shape = 'u32[144,128]{1,0:T(1,128)}', space=vmem, size = 0x12000, scoped, tag = 'internal scratch']
  %s0 = inlined_call_operand.vmem [shape: bf16[112,144], index: 0, kind: input, shape index: {}]
  %s1 = inlined_call_operand.vmem [shape: bf16[144,128], index: 1, kind: input, shape index: {}]
  %s2 = inlined_call_operand.vmem [shape: f32[1,128], index: 2, kind: input, shape index: {}]
  %s3 = inlined_call_operand.vmem [shape: f32[112,128], index: 3, kind: output, shape index: {}]
  %s4 = sld [smem:[#allocation0]]
  $region22: #{autoencoder_forward.6} parent=0
    _
  %s6 = ssub.s32 1, %s4
  %s7 = scalar_select 0, %s6, %s4
  // Predicated region
  $region2: #{autoencoder_forward.6} parent=0 // pred_check
    _
  $region3: #{autoencoder_forward.6} parent=0 // pred_check_branch
    %9 = sbr.rel (0) target = $region5
  $region4: #{autoencoder_forward.6} parent=0 // pred_region
    _
  $region5: #{autoencoder_forward.6} parent=0 // pred_fallthru
    _
  // Predicated region
  $region6: #{autoencoder_forward.6} parent=0 // pred_check
    _
  $region7: #{autoencoder_forward.6} parent=0 // pred_check_branch
    %11 = sbr.rel (0) target = $region9
  $region8: #{autoencoder_forward.6} parent=0 // pred_region
    _
  $region9: #{autoencoder_forward.6} parent=0 // pred_fallthru
    _
  // Predicated region
  $region10: #{autoencoder_forward.6} parent=0 // pred_check
    _
  $region11: #{autoencoder_forward.6} parent=0 // pred_check_branch
    %13 = sbr.rel (0) target = $region13
  $region12: #{autoencoder_forward.6} parent=0 // pred_region
    _
  $region13: #{autoencoder_forward.6} parent=0 // pred_fallthru
    _
  %v15 = vld [vmem:[%s0] sm:$0xff]
  %v16 = vld [vmem:[%s0 + $0x8] sm:$0xff]
  %v17 = vld [vmem:[%s0 + $0x10] sm:$0xff]
  %v18 = vld [vmem:[%s0 + $0x18] sm:$0xff]
  %v19 = vld [vmem:[%s0 + $0x20] sm:$0xff]
  %v20 = vld [vmem:[%s0 + $0x28] sm:$0xff]
  %v21 = vld [vmem:[%s0 + $0x30] sm:$0xff]
  %v22 = vld [vmem:[%s0 + $0x38] sm:$0xff]
  %v23 = vld [vmem:[%s0 + $0x40] sm:$0xff]
  %v24 = vld [vmem:[%s0 + $0x48] sm:$0xff]
  %v25 = vld [vmem:[%s0 + $0x50] sm:$0xff]
  %v26 = vld [vmem:[%s0 + $0x58] sm:$0xff]
  %v27 = vld [vmem:[%s0 + $0x60] sm:$0xff]
  %v28 = vld [vmem:[%s0 + $0x68] sm:$0xff]
  %v29 = vld [vmem:[%s1] sm:$0xf]
  %v30 = vld [vmem:[%s1 + $0x4] sm:$0xf]
  %v31 = vld [vmem:[%s1 + $0x8] sm:$0xf]
  %v32 = vld [vmem:[%s1 + $0xc] sm:$0xf]
  %v33 = vld [vmem:[%s1 + $0x10] sm:$0xf]
  %v34 = vld [vmem:[%s1 + $0x14] sm:$0xf]
  %v35 = vld [vmem:[%s1 + $0x18] sm:$0xf]
  %v36 = vld [vmem:[%s1 + $0x1c] sm:$0xf]
  %v37 = vld [vmem:[%s1 + $0x20] sm:$0xf]
  %v38 = vld [vmem:[%s1 + $0x24] sm:$0xf]
  %v39 = vld [vmem:[%s1 + $0x28] sm:$0xf]
  %v40 = vld [vmem:[%s1 + $0x2c] sm:$0xf]
  %v41 = vld [vmem:[%s1 + $0x30] sm:$0xf]
  %v42 = vld [vmem:[%s1 + $0x34] sm:$0xf]
  %v43 = vld [vmem:[%s1 + $0x38] sm:$0xf]
  %v44 = vld [vmem:[%s1 + $0x3c] sm:$0xf]
  %v45 = vld [vmem:[%s1 + $0x40] sm:$0xf]
  %v46 = vld [vmem:[%s1 + $0x44] sm:$0xf]
  %v47 = vld [vmem:[%s2] sm:$0x1]
  %v49 = vlaneseq
  %v50 = vshrl.u32 %v49, 7
  %v51 = vsub.s32 0, %v50
  %v52 = vrot.slane %v47, %v51
  %v68 = vunpack.c.l.b16 %v15
  %v69 = vunpack.c.h.b16 %v15
  %v70 = vunpack.c.l.b16 %v16
  %v71 = vunpack.c.h.b16 %v16
  %v72 = vunpack.c.l.b16 %v17
  %v73 = vunpack.c.h.b16 %v17
  %v74 = vunpack.c.l.b16 %v18
  %v75 = vunpack.c.h.b16 %v18
  %v76 = vunpack.c.l.b16 %v19
  %v77 = vunpack.c.h.b16 %v19
  %v78 = vunpack.c.l.b16 %v20
  %v79 = vunpack.c.h.b16 %v20
  %v80 = vunpack.c.l.b16 %v21
  %v81 = vunpack.c.h.b16 %v21
  %v82 = vunpack.c.l.b16 %v22
  %v83 = vunpack.c.h.b16 %v22
  %v84 = vunpack.c.l.b16 %v23
  %v85 = vunpack.c.h.b16 %v23
  %v86 = vunpack.c.l.b16 %v24
  %v87 = vunpack.c.h.b16 %v24
  %v88 = vunpack.c.l.b16 %v25
  %v89 = vunpack.c.h.b16 %v25
  %v90 = vunpack.c.l.b16 %v26
  %v91 = vunpack.c.h.b16 %v26
  %v92 = vunpack.c.l.b16 %v27
  %v93 = vunpack.c.h.b16 %v27
  %v94 = vunpack.c.l.b16 %v28
  %v95 = vunpack.c.h.b16 %v28
  %v96 = vpack.c.b16 %v70, %v68
  %v97 = vpack.c.b16 %v71, %v69
  %v98 = vpack.c.b16 %v74, %v72
  %v99 = vpack.c.b16 %v75, %v73
  %v100 = vpack.c.b16 %v78, %v76
  %v101 = vpack.c.b16 %v79, %v77
  %v102 = vpack.c.b16 %v82, %v80
  %v103 = vpack.c.b16 %v83, %v81
  %v104 = vpack.c.b16 %v86, %v84
  %v105 = vpack.c.b16 %v87, %v85
  %v106 = vpack.c.b16 %v90, %v88
  %v107 = vpack.c.b16 %v91, %v89
  %v108 = vpack.c.b16 %v94, %v92
  %v109 = vpack.c.b16 %v95, %v93
  %v135 = vunpack.c.l.b16 %v29
  %v136 = vunpack.c.l.b16 %v30
  %v137 = vunpack.c.l.b16 %v31
  %v138 = vunpack.c.l.b16 %v32
  %v139 = vunpack.c.l.b16 %v33
  %v140 = vunpack.c.l.b16 %v34
  %v141 = vunpack.c.l.b16 %v35
  %v142 = vunpack.c.l.b16 %v36
  %v143 = vunpack.c.l.b16 %v37
  %v144 = vunpack.c.l.b16 %v38
  %v145 = vunpack.c.l.b16 %v39
  %v146 = vunpack.c.l.b16 %v40
  %v147 = vunpack.c.l.b16 %v41
  %v148 = vunpack.c.l.b16 %v42
  %v149 = vunpack.c.l.b16 %v43
  %v150 = vunpack.c.l.b16 %v44
  %v151 = vunpack.c.l.b16 %v45
  %v152 = vunpack.c.l.b16 %v46
  %v153 = vpack.c.b16 %v136, %v135
  %v154 = vpack.c.b16 %v138, %v137
  %v155 = vpack.c.b16 %v140, %v139
  %v156 = vpack.c.b16 %v142, %v141
  %v157 = vpack.c.b16 %v144, %v143
  %v158 = vpack.c.b16 %v146, %v145
  %v159 = vpack.c.b16 %v148, %v147
  %v160 = vpack.c.b16 %v150, %v149
  %v161 = vpack.c.b16 %v152, %v151
  %vm171 = vcmask 130048
  %v173 = vsel %vm171, %v97, 0
  %v176 = vsel %vm171, %v99, 0
  %v179 = vsel %vm171, %v101, 0
  %v182 = vsel %vm171, %v103, 0
  %v185 = vsel %vm171, %v105, 0
  %v188 = vsel %vm171, %v107, 0
  %v191 = vsel %vm171, %v109, 0
  %193 = vmatprep.subr.bf16.mxu0 0
  %194 = vmatpush1.bf16.msra.mxu0 %v160
  %195 = vmatprep.subr.bf16.mxu0 0
  %196 = vmatpush1.bf16.msra.mxu0 %v159
  %197 = vmatprep.subr.bf16.mxu0 0
  %198 = vmatpush1.bf16.msra.mxu0 %v158
  %199 = vmatprep.subr.bf16.mxu0 0
  %200 = vmatpush1.bf16.msra.mxu0 %v157
  %201 = vmatprep.subr.bf16.mxu0 0
  %202 = vmatpush1.bf16.msra.mxu0 %v156
  %203 = vmatprep.subr.bf16.mxu0 0
  %204 = vmatpush1.bf16.msra.mxu0 %v155
  %205 = vmatprep.subr.bf16.mxu0 0
  %206 = vmatpush1.bf16.msra.mxu0 %v154
  %207 = vmatprep.subr.bf16.mxu0 0
  %208 = vmatpush1.bf16.msra.mxu0 %v153
  %209 = vmatprep.subr.bf16.mxu0 0
  %210 = vmatpush2.bf16.msra.mxu0 0
  %211 = vmatprep.subr.bf16.mxu0 0
  %212 = vmatpush2.bf16.msra.mxu0 0
  %213 = vmatprep.subr.bf16.mxu0 0
  %214 = vmatpush2.bf16.msra.mxu0 0
  %215 = vmatprep.subr.bf16.mxu0 0
  %216 = vmatpush2.bf16.msra.mxu0 0
  %217 = vmatprep.subr.bf16.mxu0 0
  %218 = vmatpush2.bf16.msra.mxu0 0
  %219 = vmatprep.subr.bf16.mxu0 0
  %220 = vmatpush2.bf16.msra.mxu0 0
  %221 = vmatprep.subr.bf16.mxu0 0
  %222 = vmatpush2.bf16.msra.mxu0 0
  %223 = vmatprep.subr.bf16.mxu0 0
  %224 = vmatpush2.bf16.msra.mxu0 %v161
  %225 = vmatprep.mubr.bf16.mxu0 %v173
  %226 = vmatmul.mubr.bf16.gmra.mxu0 %v96
  %v227 = vpop.f32.mrf.mxu0
  %v228 = vadd.f32 %v52, %v227
  %v229 = vpop.f32.mrf.mxu0
  %v230 = vpop.f32.mrf.mxu0
  %v231 = vadd.f32 %v52, %v230
  %v232 = vpop.f32.mrf.mxu0
  %233 = vmatprep.mubr.bf16.mxu0 %v176
  %234 = vmatmul.mubr.bf16.gmra.mxu0 %v98
  %v235 = vpop.f32.mrf.mxu0
  %v236 = vadd.f32 %v52, %v235
  %v237 = vpop.f32.mrf.mxu0
  %v238 = vpop.f32.mrf.mxu0
  %v239 = vadd.f32 %v52, %v238
  %v240 = vpop.f32.mrf.mxu0
  %241 = vmatprep.mubr.bf16.mxu0 %v179
  %242 = vmatmul.mubr.bf16.gmra.mxu0 %v100
  %v243 = vpop.f32.mrf.mxu0
  %v244 = vadd.f32 %v52, %v243
  %v245 = vpop.f32.mrf.mxu0
  %v246 = vpop.f32.mrf.mxu0
  %v247 = vadd.f32 %v52, %v246
  %v248 = vpop.f32.mrf.mxu0
  %249 = vmatprep.mubr.bf16.mxu0 %v182
  %250 = vmatmul.mubr.bf16.gmra.mxu0 %v102
  %v251 = vpop.f32.mrf.mxu0
  %v252 = vadd.f32 %v52, %v251
  %v253 = vpop.f32.mrf.mxu0
  %v254 = vpop.f32.mrf.mxu0
  %v255 = vadd.f32 %v52, %v254
  %v256 = vpop.f32.mrf.mxu0
  %257 = vmatprep.mubr.bf16.mxu0 %v185
  %258 = vmatmul.mubr.bf16.gmra.mxu0 %v104
  %v259 = vpop.f32.mrf.mxu0
  %v260 = vadd.f32 %v52, %v259
  %v261 = vpop.f32.mrf.mxu0
  %v262 = vpop.f32.mrf.mxu0
  %v263 = vadd.f32 %v52, %v262
  %v264 = vpop.f32.mrf.mxu0
  %265 = vmatprep.mubr.bf16.mxu0 %v188
  %266 = vmatmul.mubr.bf16.gmra.mxu0 %v106
  %v267 = vpop.f32.mrf.mxu0
  %v268 = vadd.f32 %v52, %v267
  %v269 = vpop.f32.mrf.mxu0
  %v270 = vpop.f32.mrf.mxu0
  %v271 = vadd.f32 %v52, %v270
  %v272 = vpop.f32.mrf.mxu0
  %273 = vmatprep.mubr.bf16.mxu0 %v191
  %274 = vmatmul.mubr.bf16.gmra.mxu0 %v108
  %v275 = vpop.f32.mrf.mxu0
  %v276 = vadd.f32 %v52, %v275
  %v277 = vpop.f32.mrf.mxu0
  %v278 = vpop.f32.mrf.mxu0
  %v279 = vadd.f32 %v52, %v278
  %v280 = vpop.f32.mrf.mxu0
  %281 = vdwg.mxu0
  %v282 = vmax.f32 %v228, 0.0
  %v283 = vmax.f32 %v231, 0.0
  %v284 = vmax.f32 %v236, 0.0
  %v285 = vmax.f32 %v239, 0.0
  %v286 = vmax.f32 %v244, 0.0
  %v287 = vmax.f32 %v247, 0.0
  %v288 = vmax.f32 %v252, 0.0
  %v289 = vmax.f32 %v255, 0.0
  %v290 = vmax.f32 %v260, 0.0
  %v291 = vmax.f32 %v263, 0.0
  %v292 = vmax.f32 %v268, 0.0
  %v293 = vmax.f32 %v271, 0.0
  %v294 = vmax.f32 %v276, 0.0
  %v295 = vmax.f32 %v279, 0.0
  %296 = vst [vmem:[%s3] sm:$0xff] %v282
  %297 = vst [vmem:[%s3 + $0x8] sm:$0xff] %v283
  %298 = vst [vmem:[%s3 + $0x10] sm:$0xff] %v284
  %299 = vst [vmem:[%s3 + $0x18] sm:$0xff] %v285
  %300 = vst [vmem:[%s3 + $0x20] sm:$0xff] %v286
  %301 = vst [vmem:[%s3 + $0x28] sm:$0xff] %v287
  %302 = vst [vmem:[%s3 + $0x30] sm:$0xff] %v288
  %303 = vst [vmem:[%s3 + $0x38] sm:$0xff] %v289
  %304 = vst [vmem:[%s3 + $0x40] sm:$0xff] %v290
  %305 = vst [vmem:[%s3 + $0x48] sm:$0xff] %v291
  %306 = vst [vmem:[%s3 + $0x50] sm:$0xff] %v292
  %307 = vst [vmem:[%s3 + $0x58] sm:$0xff] %v293
  %308 = vst [vmem:[%s3 + $0x60] sm:$0xff] %v294
  %309 = vst [vmem:[%s3 + $0x68] sm:$0xff] %v295
  // Predicated region
  $region14: #{autoencoder_forward.6} parent=0 // pred_check
    _
  $region15: #{autoencoder_forward.6} parent=0 // pred_check_branch
    %311 = sbr.rel (0) target = $region17
  $region16: #{autoencoder_forward.6} parent=0 // pred_region
    _
  $region17: #{autoencoder_forward.6} parent=0 // pred_fallthru
    _
  // Predicated region
  $region18: #{autoencoder_forward.6} parent=0 // pred_check
    _
  $region19: #{autoencoder_forward.6} parent=0 // pred_check_branch
    %313 = sbr.rel (0) target = $region21
  $region20: #{autoencoder_forward.6} parent=0 // pred_region
    _
  $region21: #{autoencoder_forward.6} parent=0 // pred_fallthru
    _

// kernel: tile.18
$region0: #{tile.18}
  #allocation0 [shape = 's32[1]{0}', space=sflag, size = 0x4, scoped, tag = 'scoped memory for tile.18']
  %s0 = inlined_call_operand.vmem [shape: f32[32], index: 0, kind: input, shape index: {}]
  %s1 = inlined_call_operand.vmem [shape: f32[49,32], index: 1, kind: output, shape index: {}]
  // Predicated region
  $region2: #{tile.18} parent=0 // pred_check
    _
  $region3: #{tile.18} parent=0 // pred_check_branch
    %3 = sbr.rel (0) target = $region5
  $region4: #{tile.18} parent=0 // pred_region
    _
  $region5: #{tile.18} parent=0 // pred_fallthru
    _
  %v4 = vld [vmem:[%s0] ss:$0 sm:$0xff]
  %5 = vst [vmem:[%s1] sm:$0xff] %v4
  %s6 = scalar_lea.vmem %s1, 8
  %7 = vst [vmem:[%s6] sm:$0xff] %v4
  %s8 = scalar_lea.vmem %s1, 16
  %9 = vst [vmem:[%s8] sm:$0xff] %v4
  %s10 = scalar_lea.vmem %s1, 24
  %11 = vst [vmem:[%s10] sm:$0xff] %v4
  %s12 = scalar_lea.vmem %s1, 32
  %13 = vst [vmem:[%s12] sm:$0xff] %v4
  %s14 = scalar_lea.vmem %s1, 40
  %15 = vst [vmem:[%s14] sm:$0xff] %v4
  %s16 = scalar_lea.vmem %s1, 48
  %17 = vst [vmem:[%s16] sm:$0xff] %v4

// kernel: tile.19
$region0: #{tile.19}
  %s0 = inlined_call_operand.vmem [shape: f32[49,32], index: 0, kind: input, shape index: {}]
  %s1 = inlined_call_operand.vmem [shape: f32[1,1568], index: 1, kind: output, shape index: {}]
  $region1: #{tile.19} parent=0
    #allocation0 [shape = 'u8[53248]{0}', space=vmem, size = 0xd000, scoped, tag = 'scoped mem for output reshape']
    %v2 = vld [vmem:[%s0] ss:$4 sm:$0xff]
    %vm3 = vcmask 261120
    %4 = vst.msk [vmem:[#allocation0] ss:$8 sm:$0xf] %vm3, %v2
    %5 = vst.msk [vmem:[#allocation0] ss:$8 sm:$0xf0] %vm3, %v2
    %s6 = scalar_lea.vmem %s0, 32
    %v7 = vld [vmem:[%s6] ss:$4 sm:$0x1f]
    %vm8 = vcmask 261120
    %s9 = scalar_lea.vmem [#allocation0], 64
    %10 = vst.msk [vmem:[%s9] ss:$8 sm:$0xf] %vm8, %v7
    %s11 = scalar_lea.vmem [#allocation0], 92
    %12 = vst.msk [vmem:[%s11] sm:$0x10] %vm8, %v7
    %s13 = scalar_lea.vmem %s0, 3
    %v14 = vld [vmem:[%s13] ss:$4 sm:$0xff]
    %15 = vrot.lane.b32.xlu0 %v14, 96
    %v16 = vpop.permute.xlu0 %15
    %vm17 = vcmask 1048320
    %18 = vst.msk [vmem:[#allocation0] ss:$8 sm:$0xf] %vm17, %v16
    %19 = vst.msk [vmem:[#allocation0] ss:$8 sm:$0xf0] %vm17, %v16
    %s20 = scalar_lea.vmem %s0, 35
    %v21 = vld [vmem:[%s20] ss:$4 sm:$0xf]
    %22 = vrot.lane.b32.xlu0 %v21, 96
    %v23 = vpop.permute.xlu0 %22
    %vm24 = vcmask 1048320
    %s25 = scalar_lea.vmem [#allocation0], 64
    %26 = vst.msk [vmem:[%s25] ss:$8 sm:$0xf] %vm24, %v23
    %s27 = scalar_lea.vmem %s0, 2
    %v28 = vld [vmem:[%s27] ss:$4 sm:$0xff]
    %29 = vrot.lane.b32.xlu0 %v28, 64
    %v30 = vpop.permute.xlu0 %29
    %vm31 = vcmask 785920
    %32 = vst.msk [vmem:[#allocation0] ss:$8 sm:$0xf] %vm31, %v30
    %33 = vst.msk [vmem:[#allocation0] ss:$8 sm:$0xf0] %vm31, %v30
    %s34 = scalar_lea.vmem %s0, 34
    %v35 = vld [vmem:[%s34] ss:$4 sm:$0xf]
    %36 = vrot.lane.b32.xlu0 %v35, 64
    %v37 = vpop.permute.xlu0 %36
    %vm38 = vcmask 785920
    %s39 = scalar_lea.vmem [#allocation0], 64
    %40 = vst.msk [vmem:[%s39] ss:$8 sm:$0xf] %vm38, %v37
    %s41 = scalar_lea.vmem %s0, 1
    %v42 = vld [vmem:[%s41] ss:$4 sm:$0xff]
    %43 = vrot.lane.b32.xlu0 %v42, 32
    %v44 = vpop.permute.xlu0 %43
    %vm45 = vcmask 523520
    %46 = vst.msk [vmem:[#allocation0] ss:$8 sm:$0xf] %vm45, %v44
    %47 = vst.msk [vmem:[#allocation0] ss:$8 sm:$0xf0] %vm45, %v44
    %s48 = scalar_lea.vmem %s0, 33
    %v49 = vld [vmem:[%s48] ss:$4 sm:$0xf]
    %50 = vrot.lane.b32.xlu0 %v49, 32
    %v51 = vpop.permute.xlu0 %50
    %vm52 = vcmask 523520
    %s53 = scalar_lea.vmem [#allocation0], 64
    %54 = vst.msk [vmem:[%s53] ss:$8 sm:$0xf] %vm52, %v51
    %s56 = sshll.u32 1, 1
    %s57 = ssub.s32 %s56, 1
    %v59 = vld [vmem:[#allocation0] sm:%s57]
    %s60 = sshll.u32 1, 1
    %s61 = ssub.s32 %s60, 1
    %62 = vst [vmem:[%s1] sm:%s61] %v59
    %s63 = scalar_lea.vmem [#allocation0], 8
    %v64 = vld [vmem:[%s63] sm:%s57]
    %s65 = sshll.u32 1, 1
    %s66 = ssub.s32 %s65, 1
    %s67 = scalar_lea.vmem %s1, 1
    %68 = vst [vmem:[%s67] sm:%s66] %v64
    %s69 = scalar_lea.vmem [#allocation0], 16
    %v70 = vld [vmem:[%s69] sm:%s57]
    %s71 = sshll.u32 1, 1
    %s72 = ssub.s32 %s71, 1
    %s73 = smul.addr 1, 2
    %s74 = scalar_lea.vmem %s1, %s73
    %75 = vst [vmem:[%s74] sm:%s72] %v70
    %s76 = scalar_lea.vmem [#allocation0], 24
    %v77 = vld [vmem:[%s76] sm:%s57]
    %s78 = sshll.u32 1, 1
    %s79 = ssub.s32 %s78, 1
    %s80 = smul.addr 1, 3
    %s81 = scalar_lea.vmem %s1, %s80
    %82 = vst [vmem:[%s81] sm:%s79] %v77
    %s83 = scalar_lea.vmem [#allocation0], 32
    %v84 = vld [vmem:[%s83] sm:%s57]
    %s85 = sshll.u32 1, 1
    %s86 = ssub.s32 %s85, 1
    %s87 = smul.addr 1, 4
    %s88 = scalar_lea.vmem %s1, %s87
    %89 = vst [vmem:[%s88] sm:%s86] %v84
    %s90 = scalar_lea.vmem [#allocation0], 40
    %v91 = vld [vmem:[%s90] sm:%s57]
    %s92 = sshll.u32 1, 1
    %s93 = ssub.s32 %s92, 1
    %s94 = smul.addr 1, 5
    %s95 = scalar_lea.vmem %s1, %s94
    %96 = vst [vmem:[%s95] sm:%s93] %v91
    %s97 = scalar_lea.vmem [#allocation0], 48
    %v98 = vld [vmem:[%s97] sm:%s57]
    %s99 = sshll.u32 1, 1
    %s100 = ssub.s32 %s99, 1
    %s101 = smul.addr 1, 6
    %s102 = scalar_lea.vmem %s1, %s101
    %103 = vst [vmem:[%s102] sm:%s100] %v98
    %s104 = scalar_lea.vmem [#allocation0], 56
    %v105 = vld [vmem:[%s104] sm:%s57]
    %s106 = sshll.u32 1, 1
    %s107 = ssub.s32 %s106, 1
    %s108 = smul.addr 1, 7
    %s109 = scalar_lea.vmem %s1, %s108
    %110 = vst [vmem:[%s109] sm:%s107] %v105
    %s111 = scalar_lea.vmem [#allocation0], 64
    %v112 = vld [vmem:[%s111] sm:%s57]
    %s113 = sshll.u32 1, 1
    %s114 = ssub.s32 %s113, 1
    %s115 = smul.addr 1, 8
    %s116 = scalar_lea.vmem %s1, %s115
    %117 = vst [vmem:[%s116] sm:%s114] %v112
    %s118 = scalar_lea.vmem [#allocation0], 72
    %v119 = vld [vmem:[%s118] sm:%s57]
    %s120 = sshll.u32 1, 1
    %s121 = ssub.s32 %s120, 1
    %s122 = smul.addr 1, 9
    %s123 = scalar_lea.vmem %s1, %s122
    %124 = vst [vmem:[%s123] sm:%s121] %v119
    %s125 = scalar_lea.vmem [#allocation0], 80
    %v126 = vld [vmem:[%s125] sm:%s57]
    %s127 = sshll.u32 1, 1
    %s128 = ssub.s32 %s127, 1
    %s129 = smul.addr 1, 10
    %s130 = scalar_lea.vmem %s1, %s129
    %131 = vst [vmem:[%s130] sm:%s128] %v126
    %s132 = scalar_lea.vmem [#allocation0], 88
    %v133 = vld [vmem:[%s132] sm:%s57]
    %s134 = sshll.u32 1, 1
    %s135 = ssub.s32 %s134, 1
    %s136 = smul.addr 1, 11
    %s137 = scalar_lea.vmem %s1, %s136
    %138 = vst [vmem:[%s137] sm:%s135] %v133
    %s139 = scalar_lea.vmem [#allocation0], 96
    %v140 = vld [vmem:[%s139] sm:%s57]
    %s141 = sshll.u32 1, 1
    %s142 = ssub.s32 %s141, 1
    %s143 = smul.addr 1, 12
    %s144 = scalar_lea.vmem %s1, %s143
    %145 = vst [vmem:[%s144] sm:%s142] %v140

// kernel: autoencoder_forward.7
$region0: #{autoencoder_forward.7}
  #allocation0 [shape = 'u32[]', space=smem, size = 0x4, offset = 0x4, fixed_abs, tag = 'smem constant byte address 0x4 - core index']
  #allocation1 [shape = 'u32[144,128]{1,0:T(1,128)}', space=vmem, size = 0x12000, scoped, tag = 'internal scratch']
  %s0 = inlined_call_operand.vmem [shape: bf16[16,1568], index: 0, kind: input, shape index: {}]
  %s1 = inlined_call_operand.vmem [shape: bf16[1568,128], index: 1, kind: input, shape index: {}]
  %s2 = inlined_call_operand.vmem [shape: f32[1,128], index: 2, kind: input, shape index: {}]
  %s3 = inlined_call_operand.vmem [shape: bf16[128,1664], index: 3, kind: input, shape index: {}]
  %s4 = inlined_call_operand.vmem [shape: f32[1,1664], index: 4, kind: input, shape index: {}]
  %s5 = inlined_call_operand.vmem [shape: f32[16,1664], index: 5, kind: output, shape index: {}]
  %s6 = sld [smem:[#allocation0]]
  $region30: #{autoencoder_forward.7} parent=0
    _
  %s8 = ssub.s32 1, %s6
  %s9 = scalar_select 0, %s8, %s6
  // Predicated region
  $region2: #{autoencoder_forward.7} parent=0 // pred_check
    _
  $region3: #{autoencoder_forward.7} parent=0 // pred_check_branch
    %11 = sbr.rel (0) target = $region5
  $region4: #{autoencoder_forward.7} parent=0 // pred_region
    _
  $region5: #{autoencoder_forward.7} parent=0 // pred_fallthru
    _
  // Predicated region
  $region6: #{autoencoder_forward.7} parent=0 // pred_check
    _
  $region7: #{autoencoder_forward.7} parent=0 // pred_check_branch
    %13 = sbr.rel (0) target = $region9
  $region8: #{autoencoder_forward.7} parent=0 // pred_region
    _
  $region9: #{autoencoder_forward.7} parent=0 // pred_fallthru
    _
  // Predicated region
  $region10: #{autoencoder_forward.7} parent=0 // pred_check
    _
  $region11: #{autoencoder_forward.7} parent=0 // pred_check_branch
    %15 = sbr.rel (0) target = $region13
  $region12: #{autoencoder_forward.7} parent=0 // pred_region
    _
  $region13: #{autoencoder_forward.7} parent=0 // pred_fallthru
    _
  // Predicated region
  $region14: #{autoencoder_forward.7} parent=0 // pred_check
    _
  $region15: #{autoencoder_forward.7} parent=0 // pred_check_branch
    %17 = sbr.rel (0) target = $region17
  $region16: #{autoencoder_forward.7} parent=0 // pred_region
    _
  $region17: #{autoencoder_forward.7} parent=0 // pred_fallthru
    _
  // Predicated region
  $region18: #{autoencoder_forward.7} parent=0 // pred_check
    _
  $region19: #{autoencoder_forward.7} parent=0 // pred_check_branch
    %19 = sbr.rel (0) target = $region21
  $region20: #{autoencoder_forward.7} parent=0 // pred_region
    _
  $region21: #{autoencoder_forward.7} parent=0 // pred_fallthru
    _
  %v21 = vld [vmem:[%s0] sm:$0xff]
  %v22 = vld [vmem:[%s0 + $0x8] sm:$0xff]
  %v23 = vld [vmem:[%s0 + $0x10] sm:$0xff]
  %v24 = vld [vmem:[%s0 + $0x18] sm:$0xff]
  %v25 = vld [vmem:[%s0 + $0x20] sm:$0xff]
  %v26 = vld [vmem:[%s0 + $0x28] sm:$0xff]
  %v27 = vld [vmem:[%s0 + $0x30] sm:$0xf]
  %v28 = vld [vmem:[%s0 + $0x34] sm:$0xff]
  %v29 = vld [vmem:[%s0 + $0x3c] sm:$0xff]
  %v30 = vld [vmem:[%s0 + $0x44] sm:$0xff]
  %v31 = vld [vmem:[%s0 + $0x4c] sm:$0xff]
  %v32 = vld [vmem:[%s0 + $0x54] sm:$0xff]
  %v33 = vld [vmem:[%s0 + $0x5c] sm:$0xff]
  %v34 = vld [vmem:[%s0 + $0x64] sm:$0xf]
  %v35 = vld [vmem:[%s1] sm:$0xf]
  %v36 = vld [vmem:[%s1 + $0x4] sm:$0xf]
  %v37 = vld [vmem:[%s1 + $0x8] sm:$0xf]
  %v38 = vld [vmem:[%s1 + $0xc] sm:$0xf]
  %v39 = vld [vmem:[%s1 + $0x10] sm:$0xf]
  %v40 = vld [vmem:[%s1 + $0x14] sm:$0xf]
  %v41 = vld [vmem:[%s1 + $0x18] sm:$0xf]
  %v42 = vld [vmem:[%s1 + $0x1c] sm:$0xf]
  %v43 = vld [vmem:[%s1 + $0x20] sm:$0xf]
  %v44 = vld [vmem:[%s1 + $0x24] sm:$0xf]
  %v45 = vld [vmem:[%s1 + $0x28] sm:$0xf]
  %v46 = vld [vmem:[%s1 + $0x2c] sm:$0xf]
  %v47 = vld [vmem:[%s1 + $0x30] sm:$0xf]
  %v48 = vld [vmem:[%s1 + $0x34] sm:$0xf]
  %v49 = vld [vmem:[%s1 + $0x38] sm:$0xf]
  %v50 = vld [vmem:[%s1 + $0x3c] sm:$0xf]
  %v51 = vld [vmem:[%s1 + $0x40] sm:$0xf]
  %v52 = vld [vmem:[%s1 + $0x44] sm:$0xf]
  %v53 = vld [vmem:[%s1 + $0x48] sm:$0xf]
  %v54 = vld [vmem:[%s1 + $0x4c] sm:$0xf]
  %v55 = vld [vmem:[%s1 + $0x50] sm:$0xf]
  %v56 = vld [vmem:[%s1 + $0x54] sm:$0xf]
  %v57 = vld [vmem:[%s1 + $0x58] sm:$0xf]
  %v58 = vld [vmem:[%s1 + $0x5c] sm:$0xf]
  %v59 = vld [vmem:[%s1 + $0x60] sm:$0xf]
  %v60 = vld [vmem:[%s1 + $0x64] sm:$0xf]
  %v61 = vld [vmem:[%s1 + $0x68] sm:$0xf]
  %v62 = vld [vmem:[%s1 + $0x6c] sm:$0xf]
  %v63 = vld [vmem:[%s1 + $0x70] sm:$0xf]
  %v64 = vld [vmem:[%s1 + $0x74] sm:$0xf]
  %v65 = vld [vmem:[%s1 + $0x78] sm:$0xf]
  %v66 = vld [vmem:[%s1 + $0x7c] sm:$0xf]
  %v67 = vld [vmem:[%s1 + $0x80] sm:$0xf]
  %v68 = vld [vmem:[%s1 + $0x84] sm:$0xf]
  %v69 = vld [vmem:[%s1 + $0x88] sm:$0xf]
  %v70 = vld [vmem:[%s1 + $0x8c] sm:$0xf]
  %v71 = vld [vmem:[%s1 + $0x90] sm:$0xf]
  %v72 = vld [vmem:[%s1 + $0x94] sm:$0xf]
  %v73 = vld [vmem:[%s1 + $0x98] sm:$0xf]
  %v74 = vld [vmem:[%s1 + $0x9c] sm:$0xf]
  %v75 = vld [vmem:[%s1 + $0xa0] sm:$0xf]
  %v76 = vld [vmem:[%s1 + $0xa4] sm:$0xf]
  %v77 = vld [vmem:[%s1 + $0xa8] sm:$0xf]
  %v78 = vld [vmem:[%s1 + $0xac] sm:$0xf]
  %v79 = vld [vmem:[%s1 + $0xb0] sm:$0xf]
  %v80 = vld [vmem:[%s1 + $0xb4] sm:$0xf]
  %v81 = vld [vmem:[%s1 + $0xb8] sm:$0xf]
  %v82 = vld [vmem:[%s1 + $0xbc] sm:$0xf]
  %v83 = vld [vmem:[%s1 + $0xc0] sm:$0xf]
  %v84 = vld [vmem:[%s1 + $0xc4] sm:$0xf]
  %v85 = vld [vmem:[%s1 + $0xc8] sm:$0xf]
  %v86 = vld [vmem:[%s1 + $0xcc] sm:$0xf]
  %v87 = vld [vmem:[%s1 + $0xd0] sm:$0xf]
  %v88 = vld [vmem:[%s1 + $0xd4] sm:$0xf]
  %v89 = vld [vmem:[%s1 + $0xd8] sm:$0xf]
  %v90 = vld [vmem:[%s1 + $0xdc] sm:$0xf]
  %v91 = vld [vmem:[%s1 + $0xe0] sm:$0xf]
  %v92 = vld [vmem:[%s1 + $0xe4] sm:$0xf]
  %v93 = vld [vmem:[%s1 + $0xe8] sm:$0xf]
  %v94 = vld [vmem:[%s1 + $0xec] sm:$0xf]
  %v95 = vld [vmem:[%s1 + $0xf0] sm:$0xf]
  %v96 = vld [vmem:[%s1 + $0xf4] sm:$0xf]
  %v97 = vld [vmem:[%s1 + $0xf8] sm:$0xf]
  %v98 = vld [vmem:[%s1 + $0xfc] sm:$0xf]
  %v99 = vld [vmem:[%s1 + $0x100] sm:$0xf]
  %v100 = vld [vmem:[%s1 + $0x104] sm:$0xf]
  %v101 = vld [vmem:[%s1 + $0x108] sm:$0xf]
  %v102 = vld [vmem:[%s1 + $0x10c] sm:$0xf]
  %v103 = vld [vmem:[%s1 + $0x110] sm:$0xf]
  %v104 = vld [vmem:[%s1 + $0x114] sm:$0xf]
  %v105 = vld [vmem:[%s1 + $0x118] sm:$0xf]
  %v106 = vld [vmem:[%s1 + $0x11c] sm:$0xf]
  %v107 = vld [vmem:[%s1 + $0x120] sm:$0xf]
  %v108 = vld [vmem:[%s1 + $0x124] sm:$0xf]
  %v109 = vld [vmem:[%s1 + $0x128] sm:$0xf]
  %v110 = vld [vmem:[%s1 + $0x12c] sm:$0xf]
  %v111 = vld [vmem:[%s1 + $0x130] sm:$0xf]
  %v112 = vld [vmem:[%s1 + $0x134] sm:$0xf]
  %v113 = vld [vmem:[%s1 + $0x138] sm:$0xf]
  %v114 = vld [vmem:[%s1 + $0x13c] sm:$0xf]
  %v115 = vld [vmem:[%s1 + $0x140] sm:$0xf]
  %v116 = vld [vmem:[%s1 + $0x144] sm:$0xf]
  %v117 = vld [vmem:[%s1 + $0x148] sm:$0xf]
  %v118 = vld [vmem:[%s1 + $0x14c] sm:$0xf]
  %v119 = vld [vmem:[%s1 + $0x150] sm:$0xf]
  %v120 = vld [vmem:[%s1 + $0x154] sm:$0xf]
  %v121 = vld [vmem:[%s1 + $0x158] sm:$0xf]
  %v122 = vld [vmem:[%s1 + $0x15c] sm:$0xf]
  %v123 = vld [vmem:[%s1 + $0x160] sm:$0xf]
  %v124 = vld [vmem:[%s1 + $0x164] sm:$0xf]
  %v125 = vld [vmem:[%s1 + $0x168] sm:$0xf]
  %v126 = vld [vmem:[%s1 + $0x16c] sm:$0xf]
  %v127 = vld [vmem:[%s1 + $0x170] sm:$0xf]
  %v128 = vld [vmem:[%s1 + $0x174] sm:$0xf]
  %v129 = vld [vmem:[%s1 + $0x178] sm:$0xf]
  %v130 = vld [vmem:[%s1 + $0x17c] sm:$0xf]
  %v131 = vld [vmem:[%s1 + $0x180] sm:$0xf]
  %v132 = vld [vmem:[%s1 + $0x184] sm:$0xf]
  %v133 = vld [vmem:[%s1 + $0x188] sm:$0xf]
  %v134 = vld [vmem:[%s1 + $0x18c] sm:$0xf]
  %v135 = vld [vmem:[%s1 + $0x190] sm:$0xf]
  %v136 = vld [vmem:[%s1 + $0x194] sm:$0xf]
  %v137 = vld [vmem:[%s1 + $0x198] sm:$0xf]
  %v138 = vld [vmem:[%s1 + $0x19c] sm:$0xf]
  %v139 = vld [vmem:[%s1 + $0x1a0] sm:$0xf]
  %v140 = vld [vmem:[%s1 + $0x1a4] sm:$0xf]
  %v141 = vld [vmem:[%s1 + $0x1a8] sm:$0xf]
  %v142 = vld [vmem:[%s1 + $0x1ac] sm:$0xf]
  %v143 = vld [vmem:[%s1 + $0x1b0] sm:$0xf]
  %v144 = vld [vmem:[%s1 + $0x1b4] sm:$0xf]
  %v145 = vld [vmem:[%s1 + $0x1b8] sm:$0xf]
  %v146 = vld [vmem:[%s1 + $0x1bc] sm:$0xf]
  %v147 = vld [vmem:[%s1 + $0x1c0] sm:$0xf]
  %v148 = vld [vmem:[%s1 + $0x1c4] sm:$0xf]
  %v149 = vld [vmem:[%s1 + $0x1c8] sm:$0xf]
  %v150 = vld [vmem:[%s1 + $0x1cc] sm:$0xf]
  %v151 = vld [vmem:[%s1 + $0x1d0] sm:$0xf]
  %v152 = vld [vmem:[%s1 + $0x1d4] sm:$0xf]
  %v153 = vld [vmem:[%s1 + $0x1d8] sm:$0xf]
  %v154 = vld [vmem:[%s1 + $0x1dc] sm:$0xf]
  %v155 = vld [vmem:[%s1 + $0x1e0] sm:$0xf]
  %v156 = vld [vmem:[%s1 + $0x1e4] sm:$0xf]
  %v157 = vld [vmem:[%s1 + $0x1e8] sm:$0xf]
  %v158 = vld [vmem:[%s1 + $0x1ec] sm:$0xf]
  %v159 = vld [vmem:[%s1 + $0x1f0] sm:$0xf]
  %v160 = vld [vmem:[%s1 + $0x1f4] sm:$0xf]
  %v161 = vld [vmem:[%s1 + $0x1f8] sm:$0xf]
  %v162 = vld [vmem:[%s1 + $0x1fc] sm:$0xf]
  %v163 = vld [vmem:[%s1 + $0x200] sm:$0xf]
  %v164 = vld [vmem:[%s1 + $0x204] sm:$0xf]
  %v165 = vld [vmem:[%s1 + $0x208] sm:$0xf]
  %v166 = vld [vmem:[%s1 + $0x20c] sm:$0xf]
  %v167 = vld [vmem:[%s1 + $0x210] sm:$0xf]
  %v168 = vld [vmem:[%s1 + $0x214] sm:$0xf]
  %v169 = vld [vmem:[%s1 + $0x218] sm:$0xf]
  %v170 = vld [vmem:[%s1 + $0x21c] sm:$0xf]
  %v171 = vld [vmem:[%s1 + $0x220] sm:$0xf]
  %v172 = vld [vmem:[%s1 + $0x224] sm:$0xf]
  %v173 = vld [vmem:[%s1 + $0x228] sm:$0xf]
  %v174 = vld [vmem:[%s1 + $0x22c] sm:$0xf]
  %v175 = vld [vmem:[%s1 + $0x230] sm:$0xf]
  %v176 = vld [vmem:[%s1 + $0x234] sm:$0xf]
  %v177 = vld [vmem:[%s1 + $0x238] sm:$0xf]
  %v178 = vld [vmem:[%s1 + $0x23c] sm:$0xf]
  %v179 = vld [vmem:[%s1 + $0x240] sm:$0xf]
  %v180 = vld [vmem:[%s1 + $0x244] sm:$0xf]
  %v181 = vld [vmem:[%s1 + $0x248] sm:$0xf]
  %v182 = vld [vmem:[%s1 + $0x24c] sm:$0xf]
  %v183 = vld [vmem:[%s1 + $0x250] sm:$0xf]
  %v184 = vld [vmem:[%s1 + $0x254] sm:$0xf]
  %v185 = vld [vmem:[%s1 + $0x258] sm:$0xf]
  %v186 = vld [vmem:[%s1 + $0x25c] sm:$0xf]
  %v187 = vld [vmem:[%s1 + $0x260] sm:$0xf]
  %v188 = vld [vmem:[%s1 + $0x264] sm:$0xf]
  %v189 = vld [vmem:[%s1 + $0x268] sm:$0xf]
  %v190 = vld [vmem:[%s1 + $0x26c] sm:$0xf]
  %v191 = vld [vmem:[%s1 + $0x270] sm:$0xf]
  %v192 = vld [vmem:[%s1 + $0x274] sm:$0xf]
  %v193 = vld [vmem:[%s1 + $0x278] sm:$0xf]
  %v194 = vld [vmem:[%s1 + $0x27c] sm:$0xf]
  %v195 = vld [vmem:[%s1 + $0x280] sm:$0xf]
  %v196 = vld [vmem:[%s1 + $0x284] sm:$0xf]
  %v197 = vld [vmem:[%s1 + $0x288] sm:$0xf]
  %v198 = vld [vmem:[%s1 + $0x28c] sm:$0xf]
  %v199 = vld [vmem:[%s1 + $0x290] sm:$0xf]
  %v200 = vld [vmem:[%s1 + $0x294] sm:$0xf]
  %v201 = vld [vmem:[%s1 + $0x298] sm:$0xf]
  %v202 = vld [vmem:[%s1 + $0x29c] sm:$0xf]
  %v203 = vld [vmem:[%s1 + $0x2a0] sm:$0xf]
  %v204 = vld [vmem:[%s1 + $0x2a4] sm:$0xf]
  %v205 = vld [vmem:[%s1 + $0x2a8] sm:$0xf]
  %v206 = vld [vmem:[%s1 + $0x2ac] sm:$0xf]
  %v207 = vld [vmem:[%s1 + $0x2b0] sm:$0xf]
  %v208 = vld [vmem:[%s1 + $0x2b4] sm:$0xf]
  %v209 = vld [vmem:[%s1 + $0x2b8] sm:$0xf]
  %v210 = vld [vmem:[%s1 + $0x2bc] sm:$0xf]
  %v211 = vld [vmem:[%s1 + $0x2c0] sm:$0xf]
  %v212 = vld [vmem:[%s1 + $0x2c4] sm:$0xf]
  %v213 = vld [vmem:[%s1 + $0x2c8] sm:$0xf]
  %v214 = vld [vmem:[%s1 + $0x2cc] sm:$0xf]
  %v215 = vld [vmem:[%s1 + $0x2d0] sm:$0xf]
  %v216 = vld [vmem:[%s1 + $0x2d4] sm:$0xf]
  %v217 = vld [vmem:[%s1 + $0x2d8] sm:$0xf]
  %v218 = vld [vmem:[%s1 + $0x2dc] sm:$0xf]
  %v219 = vld [vmem:[%s1 + $0x2e0] sm:$0xf]
  %v220 = vld [vmem:[%s1 + $0x2e4] sm:$0xf]
  %v221 = vld [vmem:[%s1 + $0x2e8] sm:$0xf]
  %v222 = vld [vmem:[%s1 + $0x2ec] sm:$0xf]
  %v223 = vld [vmem:[%s1 + $0x2f0] sm:$0xf]
  %v224 = vld [vmem:[%s1 + $0x2f4] sm:$0xf]
  %v225 = vld [vmem:[%s1 + $0x2f8] sm:$0xf]
  %v226 = vld [vmem:[%s1 + $0x2fc] sm:$0xf]
  %v227 = vld [vmem:[%s1 + $0x300] sm:$0xf]
  %v228 = vld [vmem:[%s1 + $0x304] sm:$0xf]
  %v229 = vld [vmem:[%s1 + $0x308] sm:$0xf]
  %v230 = vld [vmem:[%s1 + $0x30c] sm:$0xf]
  %v231 = vld [vmem:[%s2] sm:$0x1]
  %v233 = vlaneseq
  %v234 = vshrl.u32 %v233, 7
  %v235 = vsub.s32 0, %v234
  %v236 = vrot.slane %v231, %v235
  %v252 = vunpack.c.l.b16 %v21
  %v253 = vunpack.c.h.b16 %v21
  %v254 = vunpack.c.l.b16 %v22
  %v255 = vunpack.c.h.b16 %v22
  %v256 = vunpack.c.l.b16 %v23
  %v257 = vunpack.c.h.b16 %v23
  %v258 = vunpack.c.l.b16 %v24
  %v259 = vunpack.c.h.b16 %v24
  %v260 = vunpack.c.l.b16 %v25
  %v261 = vunpack.c.h.b16 %v25
  %v262 = vunpack.c.l.b16 %v26
  %v263 = vunpack.c.h.b16 %v26
  %v264 = vunpack.c.l.b16 %v27
  %v265 = vunpack.c.l.b16 %v28
  %v266 = vunpack.c.h.b16 %v28
  %v267 = vunpack.c.l.b16 %v29
  %v268 = vunpack.c.h.b16 %v29
  %v269 = vunpack.c.l.b16 %v30
  %v270 = vunpack.c.h.b16 %v30
  %v271 = vunpack.c.l.b16 %v31
  %v272 = vunpack.c.h.b16 %v31
  %v273 = vunpack.c.l.b16 %v32
  %v274 = vunpack.c.h.b16 %v32
  %v275 = vunpack.c.l.b16 %v33
  %v276 = vunpack.c.h.b16 %v33
  %v277 = vunpack.c.l.b16 %v34
  %v278 = vpack.c.b16 %v265, %v252
  %v279 = vpack.c.b16 %v266, %v253
  %v280 = vpack.c.b16 %v267, %v254
  %v281 = vpack.c.b16 %v268, %v255
  %v282 = vpack.c.b16 %v269, %v256
  %v283 = vpack.c.b16 %v270, %v257
  %v284 = vpack.c.b16 %v271, %v258
  %v285 = vpack.c.b16 %v272, %v259
  %v286 = vpack.c.b16 %v273, %v260
  %v287 = vpack.c.b16 %v274, %v261
  %v288 = vpack.c.b16 %v275, %v262
  %v289 = vpack.c.b16 %v276, %v263
  %v290 = vpack.c.b16 %v277, %v264
  %v499 = vunpack.c.l.b16 %v35
  %v500 = vunpack.c.l.b16 %v36
  %v501 = vunpack.c.l.b16 %v37
  %v502 = vunpack.c.l.b16 %v38
  %v503 = vunpack.c.l.b16 %v39
  %v504 = vunpack.c.l.b16 %v40
  %v505 = vunpack.c.l.b16 %v41
  %v506 = vunpack.c.l.b16 %v42
  %v507 = vunpack.c.l.b16 %v43
  %v508 = vunpack.c.l.b16 %v44
  %v509 = vunpack.c.l.b16 %v45
  %v510 = vunpack.c.l.b16 %v46
  %v511 = vunpack.c.l.b16 %v47
  %v512 = vunpack.c.l.b16 %v48
  %v513 = vunpack.c.l.b16 %v49
  %v514 = vunpack.c.l.b16 %v50
  %v515 = vunpack.c.l.b16 %v51
  %v516 = vunpack.c.l.b16 %v52
  %v517 = vunpack.c.l.b16 %v53
  %v518 = vunpack.c.l.b16 %v54
  %v519 = vunpack.c.l.b16 %v55
  %v520 = vunpack.c.l.b16 %v56
  %v521 = vunpack.c.l.b16 %v57
  %v522 = vunpack.c.l.b16 %v58
  %v523 = vunpack.c.l.b16 %v59
  %v524 = vunpack.c.l.b16 %v60
  %v525 = vunpack.c.l.b16 %v61
  %v526 = vunpack.c.l.b16 %v62
  %v527 = vunpack.c.l.b16 %v63
  %v528 = vunpack.c.l.b16 %v64
  %v529 = vunpack.c.l.b16 %v65
  %v530 = vunpack.c.l.b16 %v66
  %v531 = vunpack.c.l.b16 %v67
  %v532 = vunpack.c.l.b16 %v68
  %v533 = vunpack.c.l.b16 %v69
  %v534 = vunpack.c.l.b16 %v70
  %v535 = vunpack.c.l.b16 %v71
  %v536 = vunpack.c.l.b16 %v72
  %v537 = vunpack.c.l.b16 %v73
  %v538 = vunpack.c.l.b16 %v74
  %v539 = vunpack.c.l.b16 %v75
  %v540 = vunpack.c.l.b16 %v76
  %v541 = vunpack.c.l.b16 %v77
  %v542 = vunpack.c.l.b16 %v78
  %v543 = vunpack.c.l.b16 %v79
  %v544 = vunpack.c.l.b16 %v80
  %v545 = vunpack.c.l.b16 %v81
  %v546 = vunpack.c.l.b16 %v82
  %v547 = vunpack.c.l.b16 %v83
  %v548 = vunpack.c.l.b16 %v84
  %v549 = vunpack.c.l.b16 %v85
  %v550 = vunpack.c.l.b16 %v86
  %v551 = vunpack.c.l.b16 %v87
  %v552 = vunpack.c.l.b16 %v88
  %v553 = vunpack.c.l.b16 %v89
  %v554 = vunpack.c.l.b16 %v90
  %v555 = vunpack.c.l.b16 %v91
  %v556 = vunpack.c.l.b16 %v92
  %v557 = vunpack.c.l.b16 %v93
  %v558 = vunpack.c.l.b16 %v94
  %v559 = vunpack.c.l.b16 %v95
  %v560 = vunpack.c.l.b16 %v96
  %v561 = vunpack.c.l.b16 %v97
  %v562 = vunpack.c.l.b16 %v98
  %v563 = vunpack.c.l.b16 %v99
  %v564 = vunpack.c.l.b16 %v100
  %v565 = vunpack.c.l.b16 %v101
  %v566 = vunpack.c.l.b16 %v102
  %v567 = vunpack.c.l.b16 %v103
  %v568 = vunpack.c.l.b16 %v104
  %v569 = vunpack.c.l.b16 %v105
  %v570 = vunpack.c.l.b16 %v106
  %v571 = vunpack.c.l.b16 %v107
  %v572 = vunpack.c.l.b16 %v108
  %v573 = vunpack.c.l.b16 %v109
  %v574 = vunpack.c.l.b16 %v110
  %v575 = vunpack.c.l.b16 %v111
  %v576 = vunpack.c.l.b16 %v112
  %v577 = vunpack.c.l.b16 %v113
  %v578 = vunpack.c.l.b16 %v114
  %v579 = vunpack.c.l.b16 %v115
  %v580 = vunpack.c.l.b16 %v116
  %v581 = vunpack.c.l.b16 %v117
  %v582 = vunpack.c.l.b16 %v118
  %v583 = vunpack.c.l.b16 %v119
  %v584 = vunpack.c.l.b16 %v120
  %v585 = vunpack.c.l.b16 %v121
  %v586 = vunpack.c.l.b16 %v122
  %v587 = vunpack.c.l.b16 %v123
  %v588 = vunpack.c.l.b16 %v124
  %v589 = vunpack.c.l.b16 %v125
  %v590 = vunpack.c.l.b16 %v126
  %v591 = vunpack.c.l.b16 %v127
  %v592 = vunpack.c.l.b16 %v128
  %v593 = vunpack.c.l.b16 %v129
  %v594 = vunpack.c.l.b16 %v130
  %v595 = vunpack.c.l.b16 %v131
  %v596 = vunpack.c.l.b16 %v132
  %v597 = vunpack.c.l.b16 %v133
  %v598 = vunpack.c.l.b16 %v134
  %v599 = vunpack.c.l.b16 %v135
  %v600 = vunpack.c.l.b16 %v136
  %v601 = vunpack.c.l.b16 %v137
  %v602 = vunpack.c.l.b16 %v138
  %v603 = vunpack.c.l.b16 %v139
  %v604 = vunpack.c.l.b16 %v140
  %v605 = vunpack.c.l.b16 %v141
  %v606 = vunpack.c.l.b16 %v142
  %v607 = vunpack.c.l.b16 %v143
  %v608 = vunpack.c.l.b16 %v144
  %v609 = vunpack.c.l.b16 %v145
  %v610 = vunpack.c.l.b16 %v146
  %v611 = vunpack.c.l.b16 %v147
  %v612 = vunpack.c.l.b16 %v148
  %v613 = vunpack.c.l.b16 %v149
  %v614 = vunpack.c.l.b16 %v150
  %v615 = vunpack.c.l.b16 %v151
  %v616 = vunpack.c.l.b16 %v152
  %v617 = vunpack.c.l.b16 %v153
  %v618 = vunpack.c.l.b16 %v154
  %v619 = vunpack.c.l.b16 %v155
  %v620 = vunpack.c.l.b16 %v156
  %v621 = vunpack.c.l.b16 %v157
  %v622 = vunpack.c.l.b16 %v158
  %v623 = vunpack.c.l.b16 %v159
  %v624 = vunpack.c.l.b16 %v160
  %v625 = vunpack.c.l.b16 %v161
  %v626 = vunpack.c.l.b16 %v162
  %v627 = vunpack.c.l.b16 %v163
  %v628 = vunpack.c.l.b16 %v164
  %v629 = vunpack.c.l.b16 %v165
  %v630 = vunpack.c.l.b16 %v166
  %v631 = vunpack.c.l.b16 %v167
  %v632 = vunpack.c.l.b16 %v168
  %v633 = vunpack.c.l.b16 %v169
  %v634 = vunpack.c.l.b16 %v170
  %v635 = vunpack.c.l.b16 %v171
  %v636 = vunpack.c.l.b16 %v172
  %v637 = vunpack.c.l.b16 %v173
  %v638 = vunpack.c.l.b16 %v174
  %v639 = vunpack.c.l.b16 %v175
  %v640 = vunpack.c.l.b16 %v176
  %v641 = vunpack.c.l.b16 %v177
  %v642 = vunpack.c.l.b16 %v178
  %v643 = vunpack.c.l.b16 %v179
  %v644 = vunpack.c.l.b16 %v180
  %v645 = vunpack.c.l.b16 %v181
  %v646 = vunpack.c.l.b16 %v182
  %v647 = vunpack.c.l.b16 %v183
  %v648 = vunpack.c.l.b16 %v184
  %v649 = vunpack.c.l.b16 %v185
  %v650 = vunpack.c.l.b16 %v186
  %v651 = vunpack.c.l.b16 %v187
  %v652 = vunpack.c.l.b16 %v188
  %v653 = vunpack.c.l.b16 %v189
  %v654 = vunpack.c.l.b16 %v190
  %v655 = vunpack.c.l.b16 %v191
  %v656 = vunpack.c.l.b16 %v192
  %v657 = vunpack.c.l.b16 %v193
  %v658 = vunpack.c.l.b16 %v194
  %v659 = vunpack.c.l.b16 %v195
  %v660 = vunpack.c.l.b16 %v196
  %v661 = vunpack.c.l.b16 %v197
  %v662 = vunpack.c.l.b16 %v198
  %v663 = vunpack.c.l.b16 %v199
  %v664 = vunpack.c.l.b16 %v200
  %v665 = vunpack.c.l.b16 %v201
  %v666 = vunpack.c.l.b16 %v202
  %v667 = vunpack.c.l.b16 %v203
  %v668 = vunpack.c.l.b16 %v204
  %v669 = vunpack.c.l.b16 %v205
  %v670 = vunpack.c.l.b16 %v206
  %v671 = vunpack.c.l.b16 %v207
  %v672 = vunpack.c.l.b16 %v208
  %v673 = vunpack.c.l.b16 %v209
  %v674 = vunpack.c.l.b16 %v210
  %v675 = vunpack.c.l.b16 %v211
  %v676 = vunpack.c.l.b16 %v212
  %v677 = vunpack.c.l.b16 %v213
  %v678 = vunpack.c.l.b16 %v214
  %v679 = vunpack.c.l.b16 %v215
  %v680 = vunpack.c.l.b16 %v216
  %v681 = vunpack.c.l.b16 %v217
  %v682 = vunpack.c.l.b16 %v218
  %v683 = vunpack.c.l.b16 %v219
  %v684 = vunpack.c.l.b16 %v220
  %v685 = vunpack.c.l.b16 %v221
  %v686 = vunpack.c.l.b16 %v222
  %v687 = vunpack.c.l.b16 %v223
  %v688 = vunpack.c.l.b16 %v224
  %v689 = vunpack.c.l.b16 %v225
  %v690 = vunpack.c.l.b16 %v226
  %v691 = vunpack.c.l.b16 %v227
  %v692 = vunpack.c.l.b16 %v228
  %v693 = vunpack.c.l.b16 %v229
  %v694 = vunpack.c.l.b16 %v230
  %v695 = vpack.c.b16 %v500, %v499
  %v696 = vpack.c.b16 %v502, %v501
  %v697 = vpack.c.b16 %v504, %v503
  %v698 = vpack.c.b16 %v506, %v505
  %v699 = vpack.c.b16 %v508, %v507
  %v700 = vpack.c.b16 %v510, %v509
  %v701 = vpack.c.b16 %v512, %v511
  %v702 = vpack.c.b16 %v514, %v513
  %v703 = vpack.c.b16 %v516, %v515
  %v704 = vpack.c.b16 %v518, %v517
  %v705 = vpack.c.b16 %v520, %v519
  %v706 = vpack.c.b16 %v522, %v521
  %v707 = vpack.c.b16 %v524, %v523
  %v708 = vpack.c.b16 %v526, %v525
  %v709 = vpack.c.b16 %v528, %v527
  %v710 = vpack.c.b16 %v530, %v529
  %v711 = vpack.c.b16 %v532, %v531
  %v712 = vpack.c.b16 %v534, %v533
  %v713 = vpack.c.b16 %v536, %v535
  %v714 = vpack.c.b16 %v538, %v537
  %v715 = vpack.c.b16 %v540, %v539
  %v716 = vpack.c.b16 %v542, %v541
  %v717 = vpack.c.b16 %v544, %v543
  %v718 = vpack.c.b16 %v546, %v545
  %v719 = vpack.c.b16 %v548, %v547
  %v720 = vpack.c.b16 %v550, %v549
  %v721 = vpack.c.b16 %v552, %v551
  %v722 = vpack.c.b16 %v554, %v553
  %v723 = vpack.c.b16 %v556, %v555
  %v724 = vpack.c.b16 %v558, %v557
  %v725 = vpack.c.b16 %v560, %v559
  %v726 = vpack.c.b16 %v562, %v561
  %v727 = vpack.c.b16 %v564, %v563
  %v728 = vpack.c.b16 %v566, %v565
  %v729 = vpack.c.b16 %v568, %v567
  %v730 = vpack.c.b16 %v570, %v569
  %v731 = vpack.c.b16 %v572, %v571
  %v732 = vpack.c.b16 %v574, %v573
  %v733 = vpack.c.b16 %v576, %v575
  %v734 = vpack.c.b16 %v578, %v577
  %v735 = vpack.c.b16 %v580, %v579
  %v736 = vpack.c.b16 %v582, %v581
  %v737 = vpack.c.b16 %v584, %v583
  %v738 = vpack.c.b16 %v586, %v585
  %v739 = vpack.c.b16 %v588, %v587
  %v740 = vpack.c.b16 %v590, %v589
  %v741 = vpack.c.b16 %v592, %v591
  %v742 = vpack.c.b16 %v594, %v593
  %v743 = vpack.c.b16 %v596, %v595
  %v744 = vpack.c.b16 %v598, %v597
  %v745 = vpack.c.b16 %v600, %v599
  %v746 = vpack.c.b16 %v602, %v601
  %v747 = vpack.c.b16 %v604, %v603
  %v748 = vpack.c.b16 %v606, %v605
  %v749 = vpack.c.b16 %v608, %v607
  %v750 = vpack.c.b16 %v610, %v609
  %v751 = vpack.c.b16 %v612, %v611
  %v752 = vpack.c.b16 %v614, %v613
  %v753 = vpack.c.b16 %v616, %v615
  %v754 = vpack.c.b16 %v618, %v617
  %v755 = vpack.c.b16 %v620, %v619
  %v756 = vpack.c.b16 %v622, %v621
  %v757 = vpack.c.b16 %v624, %v623
  %v758 = vpack.c.b16 %v626, %v625
  %v759 = vpack.c.b16 %v628, %v627
  %v760 = vpack.c.b16 %v630, %v629
  %v761 = vpack.c.b16 %v632, %v631
  %v762 = vpack.c.b16 %v634, %v633
  %v763 = vpack.c.b16 %v636, %v635
  %v764 = vpack.c.b16 %v638, %v637
  %v765 = vpack.c.b16 %v640, %v639
  %v766 = vpack.c.b16 %v642, %v641
  %v767 = vpack.c.b16 %v644, %v643
  %v768 = vpack.c.b16 %v646, %v645
  %v769 = vpack.c.b16 %v648, %v647
  %v770 = vpack.c.b16 %v650, %v649
  %v771 = vpack.c.b16 %v652, %v651
  %v772 = vpack.c.b16 %v654, %v653
  %v773 = vpack.c.b16 %v656, %v655
  %v774 = vpack.c.b16 %v658, %v657
  %v775 = vpack.c.b16 %v660, %v659
  %v776 = vpack.c.b16 %v662, %v661
  %v777 = vpack.c.b16 %v664, %v663
  %v778 = vpack.c.b16 %v666, %v665
  %v779 = vpack.c.b16 %v668, %v667
  %v780 = vpack.c.b16 %v670, %v669
  %v781 = vpack.c.b16 %v672, %v671
  %v782 = vpack.c.b16 %v674, %v673
  %v783 = vpack.c.b16 %v676, %v675
  %v784 = vpack.c.b16 %v678, %v677
  %v785 = vpack.c.b16 %v680, %v679
  %v786 = vpack.c.b16 %v682, %v681
  %v787 = vpack.c.b16 %v684, %v683
  %v788 = vpack.c.b16 %v686, %v685
  %v789 = vpack.c.b16 %v688, %v687
  %v790 = vpack.c.b16 %v690, %v689
  %v791 = vpack.c.b16 %v692, %v691
  %v792 = vpack.c.b16 %v694, %v693
  %vm891 = vcmask 261120
  %v893 = vsel %vm891, %v290, 0
  %895 = vmatprep.subr.bf16.mxu0 0
  %896 = vmatpush1.bf16.msra.mxu0 %v702
  %897 = vmatprep.subr.bf16.mxu0 0
  %898 = vmatpush1.bf16.msra.mxu0 %v701
  %899 = vmatprep.subr.bf16.mxu0 0
  %900 = vmatpush1.bf16.msra.mxu0 %v700
  %901 = vmatprep.subr.bf16.mxu0 0
  %902 = vmatpush1.bf16.msra.mxu0 %v699
  %903 = vmatprep.subr.bf16.mxu0 0
  %904 = vmatpush1.bf16.msra.mxu0 %v698
  %905 = vmatprep.subr.bf16.mxu0 0
  %906 = vmatpush1.bf16.msra.mxu0 %v697
  %907 = vmatprep.subr.bf16.mxu0 0
  %908 = vmatpush1.bf16.msra.mxu0 %v696
  %909 = vmatprep.subr.bf16.mxu0 0
  %910 = vmatpush1.bf16.msra.mxu0 %v695
  %911 = vmatprep.subr.bf16.mxu0 0
  %912 = vmatpush2.bf16.msra.mxu0 %v710
  %913 = vmatprep.subr.bf16.mxu0 0
  %914 = vmatpush2.bf16.msra.mxu0 %v709
  %915 = vmatprep.subr.bf16.mxu0 0
  %916 = vmatpush2.bf16.msra.mxu0 %v708
  %917 = vmatprep.subr.bf16.mxu0 0
  %918 = vmatpush2.bf16.msra.mxu0 %v707
  %919 = vmatprep.subr.bf16.mxu0 0
  %920 = vmatpush2.bf16.msra.mxu0 %v706
  %921 = vmatprep.subr.bf16.mxu0 0
  %922 = vmatpush2.bf16.msra.mxu0 %v705
  %923 = vmatprep.subr.bf16.mxu0 0
  %924 = vmatpush2.bf16.msra.mxu0 %v704
  %925 = vmatprep.subr.bf16.mxu0 0
  %926 = vmatpush2.bf16.msra.mxu0 %v703
  %927 = vmatprep.mubr.bf16.mxu0 %v279
  %928 = vmatmul.mubr.bf16.gmra.mxu0 %v278
  %v929 = vpop.f32.mrf.mxu0
  %v930 = vadd.f32 %v236, %v929
  %v931 = vpop.f32.mrf.mxu0
  %v932 = vpop.f32.mrf.mxu0
  %v933 = vadd.f32 %v236, %v932
  %v934 = vpop.f32.mrf.mxu0
  %935 = vdwg.mxu0
  %936 = vmatprep.subr.bf16.mxu0 0
  %937 = vmatpush1.bf16.msra.mxu0 %v718
  %938 = vmatprep.subr.bf16.mxu0 0
  %939 = vmatpush1.bf16.msra.mxu0 %v717
  %940 = vmatprep.subr.bf16.mxu0 0
  %941 = vmatpush1.bf16.msra.mxu0 %v716
  %942 = vmatprep.subr.bf16.mxu0 0
  %943 = vmatpush1.bf16.msra.mxu0 %v715
  %944 = vmatprep.subr.bf16.mxu0 0
  %945 = vmatpush1.bf16.msra.mxu0 %v714
  %946 = vmatprep.subr.bf16.mxu0 0
  %947 = vmatpush1.bf16.msra.mxu0 %v713
  %948 = vmatprep.subr.bf16.mxu0 0
  %949 = vmatpush1.bf16.msra.mxu0 %v712
  %950 = vmatprep.subr.bf16.mxu0 0
  %951 = vmatpush1.bf16.msra.mxu0 %v711
  %952 = vmatprep.subr.bf16.mxu0 0
  %953 = vmatpush2.bf16.msra.mxu0 %v726
  %954 = vmatprep.subr.bf16.mxu0 0
  %955 = vmatpush2.bf16.msra.mxu0 %v725
  %956 = vmatprep.subr.bf16.mxu0 0
  %957 = vmatpush2.bf16.msra.mxu0 %v724
  %958 = vmatprep.subr.bf16.mxu0 0
  %959 = vmatpush2.bf16.msra.mxu0 %v723
  %960 = vmatprep.subr.bf16.mxu0 0
  %961 = vmatpush2.bf16.msra.mxu0 %v722
  %962 = vmatprep.subr.bf16.mxu0 0
  %963 = vmatpush2.bf16.msra.mxu0 %v721
  %964 = vmatprep.subr.bf16.mxu0 0
  %965 = vmatpush2.bf16.msra.mxu0 %v720
  %966 = vmatprep.subr.bf16.mxu0 0
  %967 = vmatpush2.bf16.msra.mxu0 %v719
  %968 = vmatprep.mubr.bf16.mxu0 %v281
  %969 = vmatmul.mubr.bf16.gmra.mxu0 %v280
  %v970 = vpop.f32.mrf.mxu0
  %v971 = vadd.f32 %v930, %v970
  %v972 = vpop.f32.mrf.mxu0
  %v973 = vpop.f32.mrf.mxu0
  %v974 = vadd.f32 %v933, %v973
  %v975 = vpop.f32.mrf.mxu0
  %976 = vdwg.mxu0
  %977 = vmatprep.subr.bf16.mxu0 0
  %978 = vmatpush1.bf16.msra.mxu0 %v734
  %979 = vmatprep.subr.bf16.mxu0 0
  %980 = vmatpush1.bf16.msra.mxu0 %v733
  %981 = vmatprep.subr.bf16.mxu0 0
  %982 = vmatpush1.bf16.msra.mxu0 %v732
  %983 = vmatprep.subr.bf16.mxu0 0
  %984 = vmatpush1.bf16.msra.mxu0 %v731
  %985 = vmatprep.subr.bf16.mxu0 0
  %986 = vmatpush1.bf16.msra.mxu0 %v730
  %987 = vmatprep.subr.bf16.mxu0 0
  %988 = vmatpush1.bf16.msra.mxu0 %v729
  %989 = vmatprep.subr.bf16.mxu0 0
  %990 = vmatpush1.bf16.msra.mxu0 %v728
  %991 = vmatprep.subr.bf16.mxu0 0
  %992 = vmatpush1.bf16.msra.mxu0 %v727
  %993 = vmatprep.subr.bf16.mxu0 0
  %994 = vmatpush2.bf16.msra.mxu0 %v742
  %995 = vmatprep.subr.bf16.mxu0 0
  %996 = vmatpush2.bf16.msra.mxu0 %v741
  %997 = vmatprep.subr.bf16.mxu0 0
  %998 = vmatpush2.bf16.msra.mxu0 %v740
  %999 = vmatprep.subr.bf16.mxu0 0
  %1000 = vmatpush2.bf16.msra.mxu0 %v739
  %1001 = vmatprep.subr.bf16.mxu0 0
  %1002 = vmatpush2.bf16.msra.mxu0 %v738
  %1003 = vmatprep.subr.bf16.mxu0 0
  %1004 = vmatpush2.bf16.msra.mxu0 %v737
  %1005 = vmatprep.subr.bf16.mxu0 0
  %1006 = vmatpush2.bf16.msra.mxu0 %v736
  %1007 = vmatprep.subr.bf16.mxu0 0
  %1008 = vmatpush2.bf16.msra.mxu0 %v735
  %1009 = vmatprep.mubr.bf16.mxu0 %v283
  %1010 = vmatmul.mubr.bf16.gmra.mxu0 %v282
  %v1011 = vpop.f32.mrf.mxu0
  %v1012 = vadd.f32 %v971, %v1011
  %v1013 = vpop.f32.mrf.mxu0
  %v1014 = vpop.f32.mrf.mxu0
  %v1015 = vadd.f32 %v974, %v1014
  %v1016 = vpop.f32.mrf.mxu0
  %1017 = vdwg.mxu0
  %1018 = vmatprep.subr.bf16.mxu0 0
  %1019 = vmatpush1.bf16.msra.mxu0 %v750
  %1020 = vmatprep.subr.bf16.mxu0 0
  %1021 = vmatpush1.bf16.msra.mxu0 %v749
  %1022 = vmatprep.subr.bf16.mxu0 0
  %1023 = vmatpush1.bf16.msra.mxu0 %v748
  %1024 = vmatprep.subr.bf16.mxu0 0
  %1025 = vmatpush1.bf16.msra.mxu0 %v747
  %1026 = vmatprep.subr.bf16.mxu0 0
  %1027 = vmatpush1.bf16.msra.mxu0 %v746
  %1028 = vmatprep.subr.bf16.mxu0 0
  %1029 = vmatpush1.bf16.msra.mxu0 %v745
  %1030 = vmatprep.subr.bf16.mxu0 0
  %1031 = vmatpush1.bf16.msra.mxu0 %v744
  %1032 = vmatprep.subr.bf16.mxu0 0
  %1033 = vmatpush1.bf16.msra.mxu0 %v743
  %1034 = vmatprep.subr.bf16.mxu0 0
  %1035 = vmatpush2.bf16.msra.mxu0 %v758
  %1036 = vmatprep.subr.bf16.mxu0 0
  %1037 = vmatpush2.bf16.msra.mxu0 %v757
  %1038 = vmatprep.subr.bf16.mxu0 0
  %1039 = vmatpush2.bf16.msra.mxu0 %v756
  %1040 = vmatprep.subr.bf16.mxu0 0
  %1041 = vmatpush2.bf16.msra.mxu0 %v755
  %1042 = vmatprep.subr.bf16.mxu0 0
  %1043 = vmatpush2.bf16.msra.mxu0 %v754
  %1044 = vmatprep.subr.bf16.mxu0 0
  %1045 = vmatpush2.bf16.msra.mxu0 %v753
  %1046 = vmatprep.subr.bf16.mxu0 0
  %1047 = vmatpush2.bf16.msra.mxu0 %v752
  %1048 = vmatprep.subr.bf16.mxu0 0
  %1049 = vmatpush2.bf16.msra.mxu0 %v751
  %1050 = vmatprep.mubr.bf16.mxu0 %v285
  %1051 = vmatmul.mubr.bf16.gmra.mxu0 %v284
  %v1052 = vpop.f32.mrf.mxu0
  %v1053 = vadd.f32 %v1012, %v1052
  %v1054 = vpop.f32.mrf.mxu0
  %v1055 = vpop.f32.mrf.mxu0
  %v1056 = vadd.f32 %v1015, %v1055
  %v1057 = vpop.f32.mrf.mxu0
  %1058 = vdwg.mxu0
  %1059 = vmatprep.subr.bf16.mxu0 0
  %1060 = vmatpush1.bf16.msra.mxu0 %v766
  %1061 = vmatprep.subr.bf16.mxu0 0
  %1062 = vmatpush1.bf16.msra.mxu0 %v765
  %1063 = vmatprep.subr.bf16.mxu0 0
  %1064 = vmatpush1.bf16.msra.mxu0 %v764
  %1065 = vmatprep.subr.bf16.mxu0 0
  %1066 = vmatpush1.bf16.msra.mxu0 %v763
  %1067 = vmatprep.subr.bf16.mxu0 0
  %1068 = vmatpush1.bf16.msra.mxu0 %v762
  %1069 = vmatprep.subr.bf16.mxu0 0
  %1070 = vmatpush1.bf16.msra.mxu0 %v761
  %1071 = vmatprep.subr.bf16.mxu0 0
  %1072 = vmatpush1.bf16.msra.mxu0 %v760
  %1073 = vmatprep.subr.bf16.mxu0 0
  %1074 = vmatpush1.bf16.msra.mxu0 %v759
  %1075 = vmatprep.subr.bf16.mxu0 0
  %1076 = vmatpush2.bf16.msra.mxu0 %v774
  %1077 = vmatprep.subr.bf16.mxu0 0
  %1078 = vmatpush2.bf16.msra.mxu0 %v773
  %1079 = vmatprep.subr.bf16.mxu0 0
  %1080 = vmatpush2.bf16.msra.mxu0 %v772
  %1081 = vmatprep.subr.bf16.mxu0 0
  %1082 = vmatpush2.bf16.msra.mxu0 %v771
  %1083 = vmatprep.subr.bf16.mxu0 0
  %1084 = vmatpush2.bf16.msra.mxu0 %v770
  %1085 = vmatprep.subr.bf16.mxu0 0
  %1086 = vmatpush2.bf16.msra.mxu0 %v769
  %1087 = vmatprep.subr.bf16.mxu0 0
  %1088 = vmatpush2.bf16.msra.mxu0 %v768
  %1089 = vmatprep.subr.bf16.mxu0 0
  %1090 = vmatpush2.bf16.msra.mxu0 %v767
  %1091 = vmatprep.mubr.bf16.mxu0 %v287
  %1092 = vmatmul.mubr.bf16.gmra.mxu0 %v286
  %v1093 = vpop.f32.mrf.mxu0
  %v1094 = vadd.f32 %v1053, %v1093
  %v1095 = vpop.f32.mrf.mxu0
  %v1096 = vpop.f32.mrf.mxu0
  %v1097 = vadd.f32 %v1056, %v1096
  %v1098 = vpop.f32.mrf.mxu0
  %1099 = vdwg.mxu0
  %1100 = vmatprep.subr.bf16.mxu0 0
  %1101 = vmatpush1.bf16.msra.mxu0 %v782
  %1102 = vmatprep.subr.bf16.mxu0 0
  %1103 = vmatpush1.bf16.msra.mxu0 %v781
  %1104 = vmatprep.subr.bf16.mxu0 0
  %1105 = vmatpush1.bf16.msra.mxu0 %v780
  %1106 = vmatprep.subr.bf16.mxu0 0
  %1107 = vmatpush1.bf16.msra.mxu0 %v779
  %1108 = vmatprep.subr.bf16.mxu0 0
  %1109 = vmatpush1.bf16.msra.mxu0 %v778
  %1110 = vmatprep.subr.bf16.mxu0 0
  %1111 = vmatpush1.bf16.msra.mxu0 %v777
  %1112 = vmatprep.subr.bf16.mxu0 0
  %1113 = vmatpush1.bf16.msra.mxu0 %v776
  %1114 = vmatprep.subr.bf16.mxu0 0
  %1115 = vmatpush1.bf16.msra.mxu0 %v775
  %1116 = vmatprep.subr.bf16.mxu0 0
  %1117 = vmatpush2.bf16.msra.mxu0 %v790
  %1118 = vmatprep.subr.bf16.mxu0 0
  %1119 = vmatpush2.bf16.msra.mxu0 %v789
  %1120 = vmatprep.subr.bf16.mxu0 0
  %1121 = vmatpush2.bf16.msra.mxu0 %v788
  %1122 = vmatprep.subr.bf16.mxu0 0
  %1123 = vmatpush2.bf16.msra.mxu0 %v787
  %1124 = vmatprep.subr.bf16.mxu0 0
  %1125 = vmatpush2.bf16.msra.mxu0 %v786
  %1126 = vmatprep.subr.bf16.mxu0 0
  %1127 = vmatpush2.bf16.msra.mxu0 %v785
  %1128 = vmatprep.subr.bf16.mxu0 0
  %1129 = vmatpush2.bf16.msra.mxu0 %v784
  %1130 = vmatprep.subr.bf16.mxu0 0
  %1131 = vmatpush2.bf16.msra.mxu0 %v783
  %1132 = vmatprep.mubr.bf16.mxu0 %v289
  %1133 = vmatmul.mubr.bf16.gmra.mxu0 %v288
  %v1134 = vpop.f32.mrf.mxu0
  %v1135 = vadd.f32 %v1094, %v1134
  %v1136 = vpop.f32.mrf.mxu0
  %v1137 = vpop.f32.mrf.mxu0
  %v1138 = vadd.f32 %v1097, %v1137
  %v1139 = vpop.f32.mrf.mxu0
  %1140 = vdwg.mxu0
  %1141 = vmatprep.subr.bf16.mxu0 0
  %1142 = vmatpush1.bf16.msra.mxu0 0
  %1143 = vmatprep.subr.bf16.mxu0 0
  %1144 = vmatpush1.bf16.msra.mxu0 0
  %1145 = vmatprep.subr.bf16.mxu0 0
  %1146 = vmatpush1.bf16.msra.mxu0 0
  %1147 = vmatprep.subr.bf16.mxu0 0
  %1148 = vmatpush1.bf16.msra.mxu0 0
  %1149 = vmatprep.subr.bf16.mxu0 0
  %1150 = vmatpush1.bf16.msra.mxu0 0
  %1151 = vmatprep.subr.bf16.mxu0 0
  %1152 = vmatpush1.bf16.msra.mxu0 0
  %1153 = vmatprep.subr.bf16.mxu0 0
  %1154 = vmatpush1.bf16.msra.mxu0 %v792
  %1155 = vmatprep.subr.bf16.mxu0 0
  %1156 = vmatpush1.bf16.msra.mxu0 %v791
  %1157 = vmatprep.subr.bf16.mxu0 0
  %1158 = vmatpush2.bf16.msra.mxu0 0
  %1159 = vmatprep.subr.bf16.mxu0 0
  %1160 = vmatpush2.bf16.msra.mxu0 0
  %1161 = vmatprep.subr.bf16.mxu0 0
  %1162 = vmatpush2.bf16.msra.mxu0 0
  %1163 = vmatprep.subr.bf16.mxu0 0
  %1164 = vmatpush2.bf16.msra.mxu0 0
  %1165 = vmatprep.subr.bf16.mxu0 0
  %1166 = vmatpush2.bf16.msra.mxu0 0
  %1167 = vmatprep.subr.bf16.mxu0 0
  %1168 = vmatpush2.bf16.msra.mxu0 0
  %1169 = vmatprep.subr.bf16.mxu0 0
  %1170 = vmatpush2.bf16.msra.mxu0 0
  %1171 = vmatprep.subr.bf16.mxu0 0
  %1172 = vmatpush2.bf16.msra.mxu0 0
  %1173 = vmatprep.mubr.bf16.mxu0 0
  %1174 = vmatmul.mubr.bf16.gmra.mxu0 %v893
  %v1175 = vpop.f32.mrf.mxu0
  %v1176 = vadd.f32 %v1135, %v1175
  %v1177 = vpop.f32.mrf.mxu0
  %v1178 = vpop.f32.mrf.mxu0
  %v1179 = vadd.f32 %v1138, %v1178
  %v1180 = vpop.f32.mrf.mxu0
  %1181 = vdwg.mxu0
  %v1182 = vpack.c.bf16 %v1179, %v1176
  %v1183 = vld [vmem:[%s3] sm:$0xff]
  %v1184 = vld [vmem:[%s3 + $0x8] sm:$0xff]
  %v1185 = vld [vmem:[%s3 + $0x10] sm:$0xff]
  %v1186 = vld [vmem:[%s3 + $0x18] sm:$0xff]
  %v1187 = vld [vmem:[%s3 + $0x20] sm:$0xff]
  %v1188 = vld [vmem:[%s3 + $0x28] sm:$0xff]
  %v1189 = vld [vmem:[%s3 + $0x30] sm:$0xf]
  %v1190 = vld [vmem:[%s3 + $0x34] sm:$0xff]
  %v1191 = vld [vmem:[%s3 + $0x3c] sm:$0xff]
  %v1192 = vld [vmem:[%s3 + $0x44] sm:$0xff]
  %v1193 = vld [vmem:[%s3 + $0x4c] sm:$0xff]
  %v1194 = vld [vmem:[%s3 + $0x54] sm:$0xff]
  %v1195 = vld [vmem:[%s3 + $0x5c] sm:$0xff]
  %v1196 = vld [vmem:[%s3 + $0x64] sm:$0xf]
  %v1197 = vld [vmem:[%s3 + $0x68] sm:$0xff]
  %v1198 = vld [vmem:[%s3 + $0x70] sm:$0xff]
  %v1199 = vld [vmem:[%s3 + $0x78] sm:$0xff]
  %v1200 = vld [vmem:[%s3 + $0x80] sm:$0xff]
  %v1201 = vld [vmem:[%s3 + $0x88] sm:$0xff]
  %v1202 = vld [vmem:[%s3 + $0x90] sm:$0xff]
  %v1203 = vld [vmem:[%s3 + $0x98] sm:$0xf]
  %v1204 = vld [vmem:[%s3 + $0x9c] sm:$0xff]
  %v1205 = vld [vmem:[%s3 + $0xa4] sm:$0xff]
  %v1206 = vld [vmem:[%s3 + $0xac] sm:$0xff]
  %v1207 = vld [vmem:[%s3 + $0xb4] sm:$0xff]
  %v1208 = vld [vmem:[%s3 + $0xbc] sm:$0xff]
  %v1209 = vld [vmem:[%s3 + $0xc4] sm:$0xff]
  %v1210 = vld [vmem:[%s3 + $0xcc] sm:$0xf]
  %v1211 = vld [vmem:[%s3 + $0xd0] sm:$0xff]
  %v1212 = vld [vmem:[%s3 + $0xd8] sm:$0xff]
  %v1213 = vld [vmem:[%s3 + $0xe0] sm:$0xff]
  %v1214 = vld [vmem:[%s3 + $0xe8] sm:$0xff]
  %v1215 = vld [vmem:[%s3 + $0xf0] sm:$0xff]
  %v1216 = vld [vmem:[%s3 + $0xf8] sm:$0xff]
  %v1217 = vld [vmem:[%s3 + $0x100] sm:$0xf]
  %v1218 = vld [vmem:[%s3 + $0x104] sm:$0xff]
  %v1219 = vld [vmem:[%s3 + $0x10c] sm:$0xff]
  %v1220 = vld [vmem:[%s3 + $0x114] sm:$0xff]
  %v1221 = vld [vmem:[%s3 + $0x11c] sm:$0xff]
  %v1222 = vld [vmem:[%s3 + $0x124] sm:$0xff]
  %v1223 = vld [vmem:[%s3 + $0x12c] sm:$0xff]
  %v1224 = vld [vmem:[%s3 + $0x134] sm:$0xf]
  %v1225 = vld [vmem:[%s3 + $0x138] sm:$0xff]
  %v1226 = vld [vmem:[%s3 + $0x140] sm:$0xff]
  %v1227 = vld [vmem:[%s3 + $0x148] sm:$0xff]
  %v1228 = vld [vmem:[%s3 + $0x150] sm:$0xff]
  %v1229 = vld [vmem:[%s3 + $0x158] sm:$0xff]
  %v1230 = vld [vmem:[%s3 + $0x160] sm:$0xff]
  %v1231 = vld [vmem:[%s3 + $0x168] sm:$0xf]
  %v1232 = vld [vmem:[%s3 + $0x16c] sm:$0xff]
  %v1233 = vld [vmem:[%s3 + $0x174] sm:$0xff]
  %v1234 = vld [vmem:[%s3 + $0x17c] sm:$0xff]
  %v1235 = vld [vmem:[%s3 + $0x184] sm:$0xff]
  %v1236 = vld [vmem:[%s3 + $0x18c] sm:$0xff]
  %v1237 = vld [vmem:[%s3 + $0x194] sm:$0xff]
  %v1238 = vld [vmem:[%s3 + $0x19c] sm:$0xf]
  %v1239 = vld [vmem:[%s3 + $0x1a0] sm:$0xff]
  %v1240 = vld [vmem:[%s3 + $0x1a8] sm:$0xff]
  %v1241 = vld [vmem:[%s3 + $0x1b0] sm:$0xff]
  %v1242 = vld [vmem:[%s3 + $0x1b8] sm:$0xff]
  %v1243 = vld [vmem:[%s3 + $0x1c0] sm:$0xff]
  %v1244 = vld [vmem:[%s3 + $0x1c8] sm:$0xff]
  %v1245 = vld [vmem:[%s3 + $0x1d0] sm:$0xf]
  %v1246 = vld [vmem:[%s3 + $0x1d4] sm:$0xff]
  %v1247 = vld [vmem:[%s3 + $0x1dc] sm:$0xff]
  %v1248 = vld [vmem:[%s3 + $0x1e4] sm:$0xff]
  %v1249 = vld [vmem:[%s3 + $0x1ec] sm:$0xff]
  %v1250 = vld [vmem:[%s3 + $0x1f4] sm:$0xff]
  %v1251 = vld [vmem:[%s3 + $0x1fc] sm:$0xff]
  %v1252 = vld [vmem:[%s3 + $0x204] sm:$0xf]
  %v1253 = vld [vmem:[%s3 + $0x208] sm:$0xff]
  %v1254 = vld [vmem:[%s3 + $0x210] sm:$0xff]
  %v1255 = vld [vmem:[%s3 + $0x218] sm:$0xff]
  %v1256 = vld [vmem:[%s3 + $0x220] sm:$0xff]
  %v1257 = vld [vmem:[%s3 + $0x228] sm:$0xff]
  %v1258 = vld [vmem:[%s3 + $0x230] sm:$0xff]
  %v1259 = vld [vmem:[%s3 + $0x238] sm:$0xf]
  %v1260 = vld [vmem:[%s3 + $0x23c] sm:$0xff]
  %v1261 = vld [vmem:[%s3 + $0x244] sm:$0xff]
  %v1262 = vld [vmem:[%s3 + $0x24c] sm:$0xff]
  %v1263 = vld [vmem:[%s3 + $0x254] sm:$0xff]
  %v1264 = vld [vmem:[%s3 + $0x25c] sm:$0xff]
  %v1265 = vld [vmem:[%s3 + $0x264] sm:$0xff]
  %v1266 = vld [vmem:[%s3 + $0x26c] sm:$0xf]
  %v1267 = vld [vmem:[%s3 + $0x270] sm:$0xff]
  %v1268 = vld [vmem:[%s3 + $0x278] sm:$0xff]
  %v1269 = vld [vmem:[%s3 + $0x280] sm:$0xff]
  %v1270 = vld [vmem:[%s3 + $0x288] sm:$0xff]
  %v1271 = vld [vmem:[%s3 + $0x290] sm:$0xff]
  %v1272 = vld [vmem:[%s3 + $0x298] sm:$0xff]
  %v1273 = vld [vmem:[%s3 + $0x2a0] sm:$0xf]
  %v1274 = vld [vmem:[%s3 + $0x2a4] sm:$0xff]
  %v1275 = vld [vmem:[%s3 + $0x2ac] sm:$0xff]
  %v1276 = vld [vmem:[%s3 + $0x2b4] sm:$0xff]
  %v1277 = vld [vmem:[%s3 + $0x2bc] sm:$0xff]
  %v1278 = vld [vmem:[%s3 + $0x2c4] sm:$0xff]
  %v1279 = vld [vmem:[%s3 + $0x2cc] sm:$0xff]
  %v1280 = vld [vmem:[%s3 + $0x2d4] sm:$0xf]
  %v1281 = vld [vmem:[%s3 + $0x2d8] sm:$0xff]
  %v1282 = vld [vmem:[%s3 + $0x2e0] sm:$0xff]
  %v1283 = vld [vmem:[%s3 + $0x2e8] sm:$0xff]
  %v1284 = vld [vmem:[%s3 + $0x2f0] sm:$0xff]
  %v1285 = vld [vmem:[%s3 + $0x2f8] sm:$0xff]
  %v1286 = vld [vmem:[%s3 + $0x300] sm:$0xff]
  %v1287 = vld [vmem:[%s3 + $0x308] sm:$0xf]
  %v1288 = vld [vmem:[%s3 + $0x30c] sm:$0xff]
  %v1289 = vld [vmem:[%s3 + $0x314] sm:$0xff]
  %v1290 = vld [vmem:[%s3 + $0x31c] sm:$0xff]
  %v1291 = vld [vmem:[%s3 + $0x324] sm:$0xff]
  %v1292 = vld [vmem:[%s3 + $0x32c] sm:$0xff]
  %v1293 = vld [vmem:[%s3 + $0x334] sm:$0xff]
  %v1294 = vld [vmem:[%s3 + $0x33c] sm:$0xf]
  %v1295 = vld [vmem:[%s4] sm:$0xff]
  %v1296 = vld [vmem:[%s4 + $0x8] sm:$0x1f]
  %v1299 = vlaneseq
  %v1300 = vshrl.u32 %v1299, 7
  %v1301 = vsub.s32 0, %v1300
  %v1302 = vrot.slane %v1295, %v1301
  %v1303 = vlaneseq
  %v1304 = vshrl.u32 %v1303, 7
  %v1305 = vsub.s32 1, %v1304
  %v1306 = vrot.slane %v1295, %v1305
  %v1307 = vlaneseq
  %v1308 = vshrl.u32 %v1307, 7
  %v1309 = vsub.s32 2, %v1308
  %v1310 = vrot.slane %v1295, %v1309
  %v1311 = vlaneseq
  %v1312 = vshrl.u32 %v1311, 7
  %v1313 = vsub.s32 3, %v1312
  %v1314 = vrot.slane %v1295, %v1313
  %v1315 = vlaneseq
  %v1316 = vshrl.u32 %v1315, 7
  %v1317 = vsub.s32 4, %v1316
  %v1318 = vrot.slane %v1295, %v1317
  %v1319 = vlaneseq
  %v1320 = vshrl.u32 %v1319, 7
  %v1321 = vsub.s32 5, %v1320
  %v1322 = vrot.slane %v1295, %v1321
  %v1323 = vlaneseq
  %v1324 = vshrl.u32 %v1323, 7
  %v1325 = vsub.s32 6, %v1324
  %v1326 = vrot.slane %v1295, %v1325
  %v1327 = vlaneseq
  %v1328 = vshrl.u32 %v1327, 7
  %v1329 = vsub.s32 7, %v1328
  %v1330 = vrot.slane %v1295, %v1329
  %v1331 = vlaneseq
  %v1332 = vshrl.u32 %v1331, 7
  %v1333 = vsub.s32 0, %v1332
  %v1334 = vrot.slane %v1296, %v1333
  %v1335 = vlaneseq
  %v1336 = vshrl.u32 %v1335, 7
  %v1337 = vsub.s32 1, %v1336
  %v1338 = vrot.slane %v1296, %v1337
  %v1339 = vlaneseq
  %v1340 = vshrl.u32 %v1339, 7
  %v1341 = vsub.s32 2, %v1340
  %v1342 = vrot.slane %v1296, %v1341
  %v1343 = vlaneseq
  %v1344 = vshrl.u32 %v1343, 7
  %v1345 = vsub.s32 3, %v1344
  %v1346 = vrot.slane %v1296, %v1345
  %v1347 = vlaneseq
  %v1348 = vshrl.u32 %v1347, 7
  %v1349 = vsub.s32 4, %v1348
  %v1350 = vrot.slane %v1296, %v1349
  %v1476 = vunpack.c.l.b16 %v1183
  %v1477 = vunpack.c.h.b16 %v1183
  %v1478 = vunpack.c.l.b16 %v1184
  %v1479 = vunpack.c.h.b16 %v1184
  %v1480 = vunpack.c.l.b16 %v1185
  %v1481 = vunpack.c.h.b16 %v1185
  %v1482 = vunpack.c.l.b16 %v1186
  %v1483 = vunpack.c.h.b16 %v1186
  %v1484 = vunpack.c.l.b16 %v1187
  %v1485 = vunpack.c.h.b16 %v1187
  %v1486 = vunpack.c.l.b16 %v1188
  %v1487 = vunpack.c.h.b16 %v1188
  %v1488 = vunpack.c.l.b16 %v1189
  %v1489 = vunpack.c.l.b16 %v1190
  %v1490 = vunpack.c.h.b16 %v1190
  %v1491 = vunpack.c.l.b16 %v1191
  %v1492 = vunpack.c.h.b16 %v1191
  %v1493 = vunpack.c.l.b16 %v1192
  %v1494 = vunpack.c.h.b16 %v1192
  %v1495 = vunpack.c.l.b16 %v1193
  %v1496 = vunpack.c.h.b16 %v1193
  %v1497 = vunpack.c.l.b16 %v1194
  %v1498 = vunpack.c.h.b16 %v1194
  %v1499 = vunpack.c.l.b16 %v1195
  %v1500 = vunpack.c.h.b16 %v1195
  %v1501 = vunpack.c.l.b16 %v1196
  %v1502 = vunpack.c.l.b16 %v1197
  %v1503 = vunpack.c.h.b16 %v1197
  %v1504 = vunpack.c.l.b16 %v1198
  %v1505 = vunpack.c.h.b16 %v1198
  %v1506 = vunpack.c.l.b16 %v1199
  %v1507 = vunpack.c.h.b16 %v1199
  %v1508 = vunpack.c.l.b16 %v1200
  %v1509 = vunpack.c.h.b16 %v1200
  %v1510 = vunpack.c.l.b16 %v1201
  %v1511 = vunpack.c.h.b16 %v1201
  %v1512 = vunpack.c.l.b16 %v1202
  %v1513 = vunpack.c.h.b16 %v1202
  %v1514 = vunpack.c.l.b16 %v1203
  %v1515 = vunpack.c.l.b16 %v1204
  %v1516 = vunpack.c.h.b16 %v1204
  %v1517 = vunpack.c.l.b16 %v1205
  %v1518 = vunpack.c.h.b16 %v1205
  %v1519 = vunpack.c.l.b16 %v1206
  %v1520 = vunpack.c.h.b16 %v1206
  %v1521 = vunpack.c.l.b16 %v1207
  %v1522 = vunpack.c.h.b16 %v1207
  %v1523 = vunpack.c.l.b16 %v1208
  %v1524 = vunpack.c.h.b16 %v1208
  %v1525 = vunpack.c.l.b16 %v1209
  %v1526 = vunpack.c.h.b16 %v1209
  %v1527 = vunpack.c.l.b16 %v1210
  %v1528 = vunpack.c.l.b16 %v1211
  %v1529 = vunpack.c.h.b16 %v1211
  %v1530 = vunpack.c.l.b16 %v1212
  %v1531 = vunpack.c.h.b16 %v1212
  %v1532 = vunpack.c.l.b16 %v1213
  %v1533 = vunpack.c.h.b16 %v1213
  %v1534 = vunpack.c.l.b16 %v1214
  %v1535 = vunpack.c.h.b16 %v1214
  %v1536 = vunpack.c.l.b16 %v1215
  %v1537 = vunpack.c.h.b16 %v1215
  %v1538 = vunpack.c.l.b16 %v1216
  %v1539 = vunpack.c.h.b16 %v1216
  %v1540 = vunpack.c.l.b16 %v1217
  %v1541 = vunpack.c.l.b16 %v1218
  %v1542 = vunpack.c.h.b16 %v1218
  %v1543 = vunpack.c.l.b16 %v1219
  %v1544 = vunpack.c.h.b16 %v1219
  %v1545 = vunpack.c.l.b16 %v1220
  %v1546 = vunpack.c.h.b16 %v1220
  %v1547 = vunpack.c.l.b16 %v1221
  %v1548 = vunpack.c.h.b16 %v1221
  %v1549 = vunpack.c.l.b16 %v1222
  %v1550 = vunpack.c.h.b16 %v1222
  %v1551 = vunpack.c.l.b16 %v1223
  %v1552 = vunpack.c.h.b16 %v1223
  %v1553 = vunpack.c.l.b16 %v1224
  %v1554 = vunpack.c.l.b16 %v1225
  %v1555 = vunpack.c.h.b16 %v1225
  %v1556 = vunpack.c.l.b16 %v1226
  %v1557 = vunpack.c.h.b16 %v1226
  %v1558 = vunpack.c.l.b16 %v1227
  %v1559 = vunpack.c.h.b16 %v1227
  %v1560 = vunpack.c.l.b16 %v1228
  %v1561 = vunpack.c.h.b16 %v1228
  %v1562 = vunpack.c.l.b16 %v1229
  %v1563 = vunpack.c.h.b16 %v1229
  %v1564 = vunpack.c.l.b16 %v1230
  %v1565 = vunpack.c.h.b16 %v1230
  %v1566 = vunpack.c.l.b16 %v1231
  %v1567 = vunpack.c.l.b16 %v1232
  %v1568 = vunpack.c.h.b16 %v1232
  %v1569 = vunpack.c.l.b16 %v1233
  %v1570 = vunpack.c.h.b16 %v1233
  %v1571 = vunpack.c.l.b16 %v1234
  %v1572 = vunpack.c.h.b16 %v1234
  %v1573 = vunpack.c.l.b16 %v1235
  %v1574 = vunpack.c.h.b16 %v1235
  %v1575 = vunpack.c.l.b16 %v1236
  %v1576 = vunpack.c.h.b16 %v1236
  %v1577 = vunpack.c.l.b16 %v1237
  %v1578 = vunpack.c.h.b16 %v1237
  %v1579 = vunpack.c.l.b16 %v1238
  %v1580 = vunpack.c.l.b16 %v1239
  %v1581 = vunpack.c.h.b16 %v1239
  %v1582 = vunpack.c.l.b16 %v1240
  %v1583 = vunpack.c.h.b16 %v1240
  %v1584 = vunpack.c.l.b16 %v1241
  %v1585 = vunpack.c.h.b16 %v1241
  %v1586 = vunpack.c.l.b16 %v1242
  %v1587 = vunpack.c.h.b16 %v1242
  %v1588 = vunpack.c.l.b16 %v1243
  %v1589 = vunpack.c.h.b16 %v1243
  %v1590 = vunpack.c.l.b16 %v1244
  %v1591 = vunpack.c.h.b16 %v1244
  %v1592 = vunpack.c.l.b16 %v1245
  %v1593 = vunpack.c.l.b16 %v1246
  %v1594 = vunpack.c.h.b16 %v1246
  %v1595 = vunpack.c.l.b16 %v1247
  %v1596 = vunpack.c.h.b16 %v1247
  %v1597 = vunpack.c.l.b16 %v1248
  %v1598 = vunpack.c.h.b16 %v1248
  %v1599 = vunpack.c.l.b16 %v1249
  %v1600 = vunpack.c.h.b16 %v1249
  %v1601 = vunpack.c.l.b16 %v1250
  %v1602 = vunpack.c.h.b16 %v1250
  %v1603 = vunpack.c.l.b16 %v1251
  %v1604 = vunpack.c.h.b16 %v1251
  %v1605 = vunpack.c.l.b16 %v1252
  %v1606 = vunpack.c.l.b16 %v1253
  %v1607 = vunpack.c.h.b16 %v1253
  %v1608 = vunpack.c.l.b16 %v1254
  %v1609 = vunpack.c.h.b16 %v1254
  %v1610 = vunpack.c.l.b16 %v1255
  %v1611 = vunpack.c.h.b16 %v1255
  %v1612 = vunpack.c.l.b16 %v1256
  %v1613 = vunpack.c.h.b16 %v1256
  %v1614 = vunpack.c.l.b16 %v1257
  %v1615 = vunpack.c.h.b16 %v1257
  %v1616 = vunpack.c.l.b16 %v1258
  %v1617 = vunpack.c.h.b16 %v1258
  %v1618 = vunpack.c.l.b16 %v1259
  %v1619 = vunpack.c.l.b16 %v1260
  %v1620 = vunpack.c.h.b16 %v1260
  %v1621 = vunpack.c.l.b16 %v1261
  %v1622 = vunpack.c.h.b16 %v1261
  %v1623 = vunpack.c.l.b16 %v1262
  %v1624 = vunpack.c.h.b16 %v1262
  %v1625 = vunpack.c.l.b16 %v1263
  %v1626 = vunpack.c.h.b16 %v1263
  %v1627 = vunpack.c.l.b16 %v1264
  %v1628 = vunpack.c.h.b16 %v1264
  %v1629 = vunpack.c.l.b16 %v1265
  %v1630 = vunpack.c.h.b16 %v1265
  %v1631 = vunpack.c.l.b16 %v1266
  %v1632 = vunpack.c.l.b16 %v1267
  %v1633 = vunpack.c.h.b16 %v1267
  %v1634 = vunpack.c.l.b16 %v1268
  %v1635 = vunpack.c.h.b16 %v1268
  %v1636 = vunpack.c.l.b16 %v1269
  %v1637 = vunpack.c.h.b16 %v1269
  %v1638 = vunpack.c.l.b16 %v1270
  %v1639 = vunpack.c.h.b16 %v1270
  %v1640 = vunpack.c.l.b16 %v1271
  %v1641 = vunpack.c.h.b16 %v1271
  %v1642 = vunpack.c.l.b16 %v1272
  %v1643 = vunpack.c.h.b16 %v1272
  %v1644 = vunpack.c.l.b16 %v1273
  %v1645 = vunpack.c.l.b16 %v1274
  %v1646 = vunpack.c.h.b16 %v1274
  %v1647 = vunpack.c.l.b16 %v1275
  %v1648 = vunpack.c.h.b16 %v1275
  %v1649 = vunpack.c.l.b16 %v1276
  %v1650 = vunpack.c.h.b16 %v1276
  %v1651 = vunpack.c.l.b16 %v1277
  %v1652 = vunpack.c.h.b16 %v1277
  %v1653 = vunpack.c.l.b16 %v1278
  %v1654 = vunpack.c.h.b16 %v1278
  %v1655 = vunpack.c.l.b16 %v1279
  %v1656 = vunpack.c.h.b16 %v1279
  %v1657 = vunpack.c.l.b16 %v1280
  %v1658 = vunpack.c.l.b16 %v1281
  %v1659 = vunpack.c.h.b16 %v1281
  %v1660 = vunpack.c.l.b16 %v1282
  %v1661 = vunpack.c.h.b16 %v1282
  %v1662 = vunpack.c.l.b16 %v1283
  %v1663 = vunpack.c.h.b16 %v1283
  %v1664 = vunpack.c.l.b16 %v1284
  %v1665 = vunpack.c.h.b16 %v1284
  %v1666 = vunpack.c.l.b16 %v1285
  %v1667 = vunpack.c.h.b16 %v1285
  %v1668 = vunpack.c.l.b16 %v1286
  %v1669 = vunpack.c.h.b16 %v1286
  %v1670 = vunpack.c.l.b16 %v1287
  %v1671 = vunpack.c.l.b16 %v1288
  %v1672 = vunpack.c.h.b16 %v1288
  %v1673 = vunpack.c.l.b16 %v1289
  %v1674 = vunpack.c.h.b16 %v1289
  %v1675 = vunpack.c.l.b16 %v1290
  %v1676 = vunpack.c.h.b16 %v1290
  %v1677 = vunpack.c.l.b16 %v1291
  %v1678 = vunpack.c.h.b16 %v1291
  %v1679 = vunpack.c.l.b16 %v1292
  %v1680 = vunpack.c.h.b16 %v1292
  %v1681 = vunpack.c.l.b16 %v1293
  %v1682 = vunpack.c.h.b16 %v1293
  %v1683 = vunpack.c.l.b16 %v1294
  %v1684 = vpack.c.b16 %v1489, %v1476
  %v1685 = vpack.c.b16 %v1490, %v1477
  %v1686 = vpack.c.b16 %v1491, %v1478
  %v1687 = vpack.c.b16 %v1492, %v1479
  %v1688 = vpack.c.b16 %v1493, %v1480
  %v1689 = vpack.c.b16 %v1494, %v1481
  %v1690 = vpack.c.b16 %v1495, %v1482
  %v1691 = vpack.c.b16 %v1496, %v1483
  %v1692 = vpack.c.b16 %v1497, %v1484
  %v1693 = vpack.c.b16 %v1498, %v1485
  %v1694 = vpack.c.b16 %v1499, %v1486
  %v1695 = vpack.c.b16 %v1500, %v1487
  %v1696 = vpack.c.b16 %v1501, %v1488
  %v1697 = vpack.c.b16 %v1515, %v1502
  %v1698 = vpack.c.b16 %v1516, %v1503
  %v1699 = vpack.c.b16 %v1517, %v1504
  %v1700 = vpack.c.b16 %v1518, %v1505
  %v1701 = vpack.c.b16 %v1519, %v1506
  %v1702 = vpack.c.b16 %v1520, %v1507
  %v1703 = vpack.c.b16 %v1521, %v1508
  %v1704 = vpack.c.b16 %v1522, %v1509
  %v1705 = vpack.c.b16 %v1523, %v1510
  %v1706 = vpack.c.b16 %v1524, %v1511
  %v1707 = vpack.c.b16 %v1525, %v1512
  %v1708 = vpack.c.b16 %v1526, %v1513
  %v1709 = vpack.c.b16 %v1527, %v1514
  %v1710 = vpack.c.b16 %v1541, %v1528
  %v1711 = vpack.c.b16 %v1542, %v1529
  %v1712 = vpack.c.b16 %v1543, %v1530
  %v1713 = vpack.c.b16 %v1544, %v1531
  %v1714 = vpack.c.b16 %v1545, %v1532
  %v1715 = vpack.c.b16 %v1546, %v1533
  %v1716 = vpack.c.b16 %v1547, %v1534
  %v1717 = vpack.c.b16 %v1548, %v1535
  %v1718 = vpack.c.b16 %v1549, %v1536
  %v1719 = vpack.c.b16 %v1550, %v1537
  %v1720 = vpack.c.b16 %v1551, %v1538
  %v1721 = vpack.c.b16 %v1552, %v1539
  %v1722 = vpack.c.b16 %v1553, %v1540
  %v1723 = vpack.c.b16 %v1567, %v1554
  %v1724 = vpack.c.b16 %v1568, %v1555
  %v1725 = vpack.c.b16 %v1569, %v1556
  %v1726 = vpack.c.b16 %v1570, %v1557
  %v1727 = vpack.c.b16 %v1571, %v1558
  %v1728 = vpack.c.b16 %v1572, %v1559
  %v1729 = vpack.c.b16 %v1573, %v1560
  %v1730 = vpack.c.b16 %v1574, %v1561
  %v1731 = vpack.c.b16 %v1575, %v1562
  %v1732 = vpack.c.b16 %v1576, %v1563
  %v1733 = vpack.c.b16 %v1577, %v1564
  %v1734 = vpack.c.b16 %v1578, %v1565
  %v1735 = vpack.c.b16 %v1579, %v1566
  %v1736 = vpack.c.b16 %v1593, %v1580
  %v1737 = vpack.c.b16 %v1594, %v1581
  %v1738 = vpack.c.b16 %v1595, %v1582
  %v1739 = vpack.c.b16 %v1596, %v1583
  %v1740 = vpack.c.b16 %v1597, %v1584
  %v1741 = vpack.c.b16 %v1598, %v1585
  %v1742 = vpack.c.b16 %v1599, %v1586
  %v1743 = vpack.c.b16 %v1600, %v1587
  %v1744 = vpack.c.b16 %v1601, %v1588
  %v1745 = vpack.c.b16 %v1602, %v1589
  %v1746 = vpack.c.b16 %v1603, %v1590
  %v1747 = vpack.c.b16 %v1604, %v1591
  %v1748 = vpack.c.b16 %v1605, %v1592
  %v1749 = vpack.c.b16 %v1619, %v1606
  %v1750 = vpack.c.b16 %v1620, %v1607
  %v1751 = vpack.c.b16 %v1621, %v1608
  %v1752 = vpack.c.b16 %v1622, %v1609
  %v1753 = vpack.c.b16 %v1623, %v1610
  %v1754 = vpack.c.b16 %v1624, %v1611
  %v1755 = vpack.c.b16 %v1625, %v1612
  %v1756 = vpack.c.b16 %v1626, %v1613
  %v1757 = vpack.c.b16 %v1627, %v1614
  %v1758 = vpack.c.b16 %v1628, %v1615
  %v1759 = vpack.c.b16 %v1629, %v1616
  %v1760 = vpack.c.b16 %v1630, %v1617
  %v1761 = vpack.c.b16 %v1631, %v1618
  %v1762 = vpack.c.b16 %v1645, %v1632
  %v1763 = vpack.c.b16 %v1646, %v1633
  %v1764 = vpack.c.b16 %v1647, %v1634
  %v1765 = vpack.c.b16 %v1648, %v1635
  %v1766 = vpack.c.b16 %v1649, %v1636
  %v1767 = vpack.c.b16 %v1650, %v1637
  %v1768 = vpack.c.b16 %v1651, %v1638
  %v1769 = vpack.c.b16 %v1652, %v1639
  %v1770 = vpack.c.b16 %v1653, %v1640
  %v1771 = vpack.c.b16 %v1654, %v1641
  %v1772 = vpack.c.b16 %v1655, %v1642
  %v1773 = vpack.c.b16 %v1656, %v1643
  %v1774 = vpack.c.b16 %v1657, %v1644
  %v1775 = vpack.c.b16 %v1671, %v1658
  %v1776 = vpack.c.b16 %v1672, %v1659
  %v1777 = vpack.c.b16 %v1673, %v1660
  %v1778 = vpack.c.b16 %v1674, %v1661
  %v1779 = vpack.c.b16 %v1675, %v1662
  %v1780 = vpack.c.b16 %v1676, %v1663
  %v1781 = vpack.c.b16 %v1677, %v1664
  %v1782 = vpack.c.b16 %v1678, %v1665
  %v1783 = vpack.c.b16 %v1679, %v1666
  %v1784 = vpack.c.b16 %v1680, %v1667
  %v1785 = vpack.c.b16 %v1681, %v1668
  %v1786 = vpack.c.b16 %v1682, %v1669
  %v1787 = vpack.c.b16 %v1683, %v1670
  %1892 = vmatprep.subr.bf16.mxu0 %v1776
  %1893 = vmatpush1.bf16.msra.mxu0 %v1775
  %1894 = vmatprep.subr.bf16.mxu0 %v1763
  %1895 = vmatpush1.bf16.msra.mxu0 %v1762
  %1896 = vmatprep.subr.bf16.mxu0 %v1750
  %1897 = vmatpush1.bf16.msra.mxu0 %v1749
  %1898 = vmatprep.subr.bf16.mxu0 %v1737
  %1899 = vmatpush1.bf16.msra.mxu0 %v1736
  %1900 = vmatprep.subr.bf16.mxu0 %v1724
  %1901 = vmatpush1.bf16.msra.mxu0 %v1723
  %1902 = vmatprep.subr.bf16.mxu0 %v1711
  %1903 = vmatpush1.bf16.msra.mxu0 %v1710
  %1904 = vmatprep.subr.bf16.mxu0 %v1698
  %1905 = vmatpush1.bf16.msra.mxu0 %v1697
  %1906 = vmatprep.subr.bf16.mxu0 %v1685
  %1907 = vmatpush1.bf16.msra.mxu0 %v1684
  %1908 = vmatprep.subr.bf16.mxu0 0
  %1909 = vmatpush2.bf16.msra.mxu0 0
  %1910 = vmatprep.subr.bf16.mxu0 0
  %1911 = vmatpush2.bf16.msra.mxu0 0
  %1912 = vmatprep.subr.bf16.mxu0 0
  %1913 = vmatpush2.bf16.msra.mxu0 0
  %1914 = vmatprep.subr.bf16.mxu0 0
  %1915 = vmatpush2.bf16.msra.mxu0 0
  %1916 = vmatprep.subr.bf16.mxu0 0
  %1917 = vmatpush2.bf16.msra.mxu0 0
  %1918 = vmatprep.subr.bf16.mxu0 0
  %1919 = vmatpush2.bf16.msra.mxu0 0
  %1920 = vmatprep.subr.bf16.mxu0 0
  %1921 = vmatpush2.bf16.msra.mxu0 0
  %1922 = vmatprep.subr.bf16.mxu0 0
  %1923 = vmatpush2.bf16.msra.mxu0 0
  %1924 = vmatprep.mubr.bf16.mxu0 0
  %1925 = vmatmul.mubr.bf16.gmra.mxu0 %v1182
  %v1926 = vpop.f32.mrf.mxu0
  %v1927 = vadd.f32 %v1302, %v1926
  %v1928 = vpop.f32.mrf.mxu0
  %v1929 = vadd.f32 %v1306, %v1928
  %v1930 = vpop.f32.mrf.mxu0
  %v1931 = vadd.f32 %v1302, %v1930
  %v1932 = vpop.f32.mrf.mxu0
  %v1933 = vadd.f32 %v1306, %v1932
  %1934 = vdwg.mxu0
  %1935 = vmatprep.subr.bf16.mxu0 %v1778
  %1936 = vmatpush1.bf16.msra.mxu0 %v1777
  %1937 = vmatprep.subr.bf16.mxu0 %v1765
  %1938 = vmatpush1.bf16.msra.mxu0 %v1764
  %1939 = vmatprep.subr.bf16.mxu0 %v1752
  %1940 = vmatpush1.bf16.msra.mxu0 %v1751
  %1941 = vmatprep.subr.bf16.mxu0 %v1739
  %1942 = vmatpush1.bf16.msra.mxu0 %v1738
  %1943 = vmatprep.subr.bf16.mxu0 %v1726
  %1944 = vmatpush1.bf16.msra.mxu0 %v1725
  %1945 = vmatprep.subr.bf16.mxu0 %v1713
  %1946 = vmatpush1.bf16.msra.mxu0 %v1712
  %1947 = vmatprep.subr.bf16.mxu0 %v1700
  %1948 = vmatpush1.bf16.msra.mxu0 %v1699
  %1949 = vmatprep.subr.bf16.mxu0 %v1687
  %1950 = vmatpush1.bf16.msra.mxu0 %v1686
  %1951 = vmatprep.subr.bf16.mxu0 0
  %1952 = vmatpush2.bf16.msra.mxu0 0
  %1953 = vmatprep.subr.bf16.mxu0 0
  %1954 = vmatpush2.bf16.msra.mxu0 0
  %1955 = vmatprep.subr.bf16.mxu0 0
  %1956 = vmatpush2.bf16.msra.mxu0 0
  %1957 = vmatprep.subr.bf16.mxu0 0
  %1958 = vmatpush2.bf16.msra.mxu0 0
  %1959 = vmatprep.subr.bf16.mxu0 0
  %1960 = vmatpush2.bf16.msra.mxu0 0
  %1961 = vmatprep.subr.bf16.mxu0 0
  %1962 = vmatpush2.bf16.msra.mxu0 0
  %1963 = vmatprep.subr.bf16.mxu0 0
  %1964 = vmatpush2.bf16.msra.mxu0 0
  %1965 = vmatprep.subr.bf16.mxu0 0
  %1966 = vmatpush2.bf16.msra.mxu0 0
  %1967 = vmatprep.mubr.bf16.mxu0 0
  %1968 = vmatmul.mubr.bf16.gmra.mxu0 %v1182
  %v1969 = vpop.f32.mrf.mxu0
  %v1970 = vadd.f32 %v1310, %v1969
  %v1971 = vpop.f32.mrf.mxu0
  %v1972 = vadd.f32 %v1314, %v1971
  %v1973 = vpop.f32.mrf.mxu0
  %v1974 = vadd.f32 %v1310, %v1973
  %v1975 = vpop.f32.mrf.mxu0
  %v1976 = vadd.f32 %v1314, %v1975
  %1977 = vdwg.mxu0
  %1978 = vmatprep.subr.bf16.mxu0 %v1780
  %1979 = vmatpush1.bf16.msra.mxu0 %v1779
  %1980 = vmatprep.subr.bf16.mxu0 %v1767
  %1981 = vmatpush1.bf16.msra.mxu0 %v1766
  %1982 = vmatprep.subr.bf16.mxu0 %v1754
  %1983 = vmatpush1.bf16.msra.mxu0 %v1753
  %1984 = vmatprep.subr.bf16.mxu0 %v1741
  %1985 = vmatpush1.bf16.msra.mxu0 %v1740
  %1986 = vmatprep.subr.bf16.mxu0 %v1728
  %1987 = vmatpush1.bf16.msra.mxu0 %v1727
  %1988 = vmatprep.subr.bf16.mxu0 %v1715
  %1989 = vmatpush1.bf16.msra.mxu0 %v1714
  %1990 = vmatprep.subr.bf16.mxu0 %v1702
  %1991 = vmatpush1.bf16.msra.mxu0 %v1701
  %1992 = vmatprep.subr.bf16.mxu0 %v1689
  %1993 = vmatpush1.bf16.msra.mxu0 %v1688
  %1994 = vmatprep.subr.bf16.mxu0 0
  %1995 = vmatpush2.bf16.msra.mxu0 0
  %1996 = vmatprep.subr.bf16.mxu0 0
  %1997 = vmatpush2.bf16.msra.mxu0 0
  %1998 = vmatprep.subr.bf16.mxu0 0
  %1999 = vmatpush2.bf16.msra.mxu0 0
  %2000 = vmatprep.subr.bf16.mxu0 0
  %2001 = vmatpush2.bf16.msra.mxu0 0
  %2002 = vmatprep.subr.bf16.mxu0 0
  %2003 = vmatpush2.bf16.msra.mxu0 0
  %2004 = vmatprep.subr.bf16.mxu0 0
  %2005 = vmatpush2.bf16.msra.mxu0 0
  %2006 = vmatprep.subr.bf16.mxu0 0
  %2007 = vmatpush2.bf16.msra.mxu0 0
  %2008 = vmatprep.subr.bf16.mxu0 0
  %2009 = vmatpush2.bf16.msra.mxu0 0
  %2010 = vmatprep.mubr.bf16.mxu0 0
  %2011 = vmatmul.mubr.bf16.gmra.mxu0 %v1182
  %v2012 = vpop.f32.mrf.mxu0
  %v2013 = vadd.f32 %v1318, %v2012
  %v2014 = vpop.f32.mrf.mxu0
  %v2015 = vadd.f32 %v1322, %v2014
  %v2016 = vpop.f32.mrf.mxu0
  %v2017 = vadd.f32 %v1318, %v2016
  %v2018 = vpop.f32.mrf.mxu0
  %v2019 = vadd.f32 %v1322, %v2018
  %2020 = vdwg.mxu0
  %2021 = vmatprep.subr.bf16.mxu0 %v1782
  %2022 = vmatpush1.bf16.msra.mxu0 %v1781
  %2023 = vmatprep.subr.bf16.mxu0 %v1769
  %2024 = vmatpush1.bf16.msra.mxu0 %v1768
  %2025 = vmatprep.subr.bf16.mxu0 %v1756
  %2026 = vmatpush1.bf16.msra.mxu0 %v1755
  %2027 = vmatprep.subr.bf16.mxu0 %v1743
  %2028 = vmatpush1.bf16.msra.mxu0 %v1742
  %2029 = vmatprep.subr.bf16.mxu0 %v1730
  %2030 = vmatpush1.bf16.msra.mxu0 %v1729
  %2031 = vmatprep.subr.bf16.mxu0 %v1717
  %2032 = vmatpush1.bf16.msra.mxu0 %v1716
  %2033 = vmatprep.subr.bf16.mxu0 %v1704
  %2034 = vmatpush1.bf16.msra.mxu0 %v1703
  %2035 = vmatprep.subr.bf16.mxu0 %v1691
  %2036 = vmatpush1.bf16.msra.mxu0 %v1690
  %2037 = vmatprep.subr.bf16.mxu0 0
  %2038 = vmatpush2.bf16.msra.mxu0 0
  %2039 = vmatprep.subr.bf16.mxu0 0
  %2040 = vmatpush2.bf16.msra.mxu0 0
  %2041 = vmatprep.subr.bf16.mxu0 0
  %2042 = vmatpush2.bf16.msra.mxu0 0
  %2043 = vmatprep.subr.bf16.mxu0 0
  %2044 = vmatpush2.bf16.msra.mxu0 0
  %2045 = vmatprep.subr.bf16.mxu0 0
  %2046 = vmatpush2.bf16.msra.mxu0 0
  %2047 = vmatprep.subr.bf16.mxu0 0
  %2048 = vmatpush2.bf16.msra.mxu0 0
  %2049 = vmatprep.subr.bf16.mxu0 0
  %2050 = vmatpush2.bf16.msra.mxu0 0
  %2051 = vmatprep.subr.bf16.mxu0 0
  %2052 = vmatpush2.bf16.msra.mxu0 0
  %2053 = vmatprep.mubr.bf16.mxu0 0
  %2054 = vmatmul.mubr.bf16.gmra.mxu0 %v1182
  %v2055 = vpop.f32.mrf.mxu0
  %v2056 = vadd.f32 %v1326, %v2055
  %v2057 = vpop.f32.mrf.mxu0
  %v2058 = vadd.f32 %v1330, %v2057
  %v2059 = vpop.f32.mrf.mxu0
  %v2060 = vadd.f32 %v1326, %v2059
  %v2061 = vpop.f32.mrf.mxu0
  %v2062 = vadd.f32 %v1330, %v2061
  %2063 = vdwg.mxu0
  %2064 = vmatprep.subr.bf16.mxu0 %v1784
  %2065 = vmatpush1.bf16.msra.mxu0 %v1783
  %2066 = vmatprep.subr.bf16.mxu0 %v1771
  %2067 = vmatpush1.bf16.msra.mxu0 %v1770
  %2068 = vmatprep.subr.bf16.mxu0 %v1758
  %2069 = vmatpush1.bf16.msra.mxu0 %v1757
  %2070 = vmatprep.subr.bf16.mxu0 %v1745
  %2071 = vmatpush1.bf16.msra.mxu0 %v1744
  %2072 = vmatprep.subr.bf16.mxu0 %v1732
  %2073 = vmatpush1.bf16.msra.mxu0 %v1731
  %2074 = vmatprep.subr.bf16.mxu0 %v1719
  %2075 = vmatpush1.bf16.msra.mxu0 %v1718
  %2076 = vmatprep.subr.bf16.mxu0 %v1706
  %2077 = vmatpush1.bf16.msra.mxu0 %v1705
  %2078 = vmatprep.subr.bf16.mxu0 %v1693
  %2079 = vmatpush1.bf16.msra.mxu0 %v1692
  %2080 = vmatprep.subr.bf16.mxu0 0
  %2081 = vmatpush2.bf16.msra.mxu0 0
  %2082 = vmatprep.subr.bf16.mxu0 0
  %2083 = vmatpush2.bf16.msra.mxu0 0
  %2084 = vmatprep.subr.bf16.mxu0 0
  %2085 = vmatpush2.bf16.msra.mxu0 0
  %2086 = vmatprep.subr.bf16.mxu0 0
  %2087 = vmatpush2.bf16.msra.mxu0 0
  %2088 = vmatprep.subr.bf16.mxu0 0
  %2089 = vmatpush2.bf16.msra.mxu0 0
  %2090 = vmatprep.subr.bf16.mxu0 0
  %2091 = vmatpush2.bf16.msra.mxu0 0
  %2092 = vmatprep.subr.bf16.mxu0 0
  %2093 = vmatpush2.bf16.msra.mxu0 0
  %2094 = vmatprep.subr.bf16.mxu0 0
  %2095 = vmatpush2.bf16.msra.mxu0 0
  %2096 = vmatprep.mubr.bf16.mxu0 0
  %2097 = vmatmul.mubr.bf16.gmra.mxu0 %v1182
  %v2098 = vpop.f32.mrf.mxu0
  %v2099 = vadd.f32 %v1334, %v2098
  %v2100 = vpop.f32.mrf.mxu0
  %v2101 = vadd.f32 %v1338, %v2100
  %v2102 = vpop.f32.mrf.mxu0
  %v2103 = vadd.f32 %v1334, %v2102
  %v2104 = vpop.f32.mrf.mxu0
  %v2105 = vadd.f32 %v1338, %v2104
  %2106 = vdwg.mxu0
  %2107 = vmatprep.subr.bf16.mxu0 %v1786
  %2108 = vmatpush1.bf16.msra.mxu0 %v1785
  %2109 = vmatprep.subr.bf16.mxu0 %v1773
  %2110 = vmatpush1.bf16.msra.mxu0 %v1772
  %2111 = vmatprep.subr.bf16.mxu0 %v1760
  %2112 = vmatpush1.bf16.msra.mxu0 %v1759
  %2113 = vmatprep.subr.bf16.mxu0 %v1747
  %2114 = vmatpush1.bf16.msra.mxu0 %v1746
  %2115 = vmatprep.subr.bf16.mxu0 %v1734
  %2116 = vmatpush1.bf16.msra.mxu0 %v1733
  %2117 = vmatprep.subr.bf16.mxu0 %v1721
  %2118 = vmatpush1.bf16.msra.mxu0 %v1720
  %2119 = vmatprep.subr.bf16.mxu0 %v1708
  %2120 = vmatpush1.bf16.msra.mxu0 %v1707
  %2121 = vmatprep.subr.bf16.mxu0 %v1695
  %2122 = vmatpush1.bf16.msra.mxu0 %v1694
  %2123 = vmatprep.subr.bf16.mxu0 0
  %2124 = vmatpush2.bf16.msra.mxu0 0
  %2125 = vmatprep.subr.bf16.mxu0 0
  %2126 = vmatpush2.bf16.msra.mxu0 0
  %2127 = vmatprep.subr.bf16.mxu0 0
  %2128 = vmatpush2.bf16.msra.mxu0 0
  %2129 = vmatprep.subr.bf16.mxu0 0
  %2130 = vmatpush2.bf16.msra.mxu0 0
  %2131 = vmatprep.subr.bf16.mxu0 0
  %2132 = vmatpush2.bf16.msra.mxu0 0
  %2133 = vmatprep.subr.bf16.mxu0 0
  %2134 = vmatpush2.bf16.msra.mxu0 0
  %2135 = vmatprep.subr.bf16.mxu0 0
  %2136 = vmatpush2.bf16.msra.mxu0 0
  %2137 = vmatprep.subr.bf16.mxu0 0
  %2138 = vmatpush2.bf16.msra.mxu0 0
  %2139 = vmatprep.mubr.bf16.mxu0 0
  %2140 = vmatmul.mubr.bf16.gmra.mxu0 %v1182
  %v2141 = vpop.f32.mrf.mxu0
  %v2142 = vadd.f32 %v1342, %v2141
  %v2143 = vpop.f32.mrf.mxu0
  %v2144 = vadd.f32 %v1346, %v2143
  %v2145 = vpop.f32.mrf.mxu0
  %v2146 = vadd.f32 %v1342, %v2145
  %v2147 = vpop.f32.mrf.mxu0
  %v2148 = vadd.f32 %v1346, %v2147
  %2149 = vdwg.mxu0
  %2150 = vmatprep.subr.bf16.mxu0 0
  %2151 = vmatpush1.bf16.msra.mxu0 %v1787
  %2152 = vmatprep.subr.bf16.mxu0 0
  %2153 = vmatpush1.bf16.msra.mxu0 %v1774
  %2154 = vmatprep.subr.bf16.mxu0 0
  %2155 = vmatpush1.bf16.msra.mxu0 %v1761
  %2156 = vmatprep.subr.bf16.mxu0 0
  %2157 = vmatpush1.bf16.msra.mxu0 %v1748
  %2158 = vmatprep.subr.bf16.mxu0 0
  %2159 = vmatpush1.bf16.msra.mxu0 %v1735
  %2160 = vmatprep.subr.bf16.mxu0 0
  %2161 = vmatpush1.bf16.msra.mxu0 %v1722
  %2162 = vmatprep.subr.bf16.mxu0 0
  %2163 = vmatpush1.bf16.msra.mxu0 %v1709
  %2164 = vmatprep.subr.bf16.mxu0 0
  %2165 = vmatpush1.bf16.msra.mxu0 %v1696
  %2166 = vmatprep.subr.bf16.mxu0 0
  %2167 = vmatpush2.bf16.msra.mxu0 0
  %2168 = vmatprep.subr.bf16.mxu0 0
  %2169 = vmatpush2.bf16.msra.mxu0 0
  %2170 = vmatprep.subr.bf16.mxu0 0
  %2171 = vmatpush2.bf16.msra.mxu0 0
  %2172 = vmatprep.subr.bf16.mxu0 0
  %2173 = vmatpush2.bf16.msra.mxu0 0
  %2174 = vmatprep.subr.bf16.mxu0 0
  %2175 = vmatpush2.bf16.msra.mxu0 0
  %2176 = vmatprep.subr.bf16.mxu0 0
  %2177 = vmatpush2.bf16.msra.mxu0 0
  %2178 = vmatprep.subr.bf16.mxu0 0
  %2179 = vmatpush2.bf16.msra.mxu0 0
  %2180 = vmatprep.subr.bf16.mxu0 0
  %2181 = vmatpush2.bf16.msra.mxu0 0
  %2182 = vmatprep.mubr.bf16.mxu0 0
  %2183 = vmatmul.mubr.bf16.gmra.mxu0 %v1182
  %v2184 = vpop.f32.mrf.mxu0
  %v2185 = vadd.f32 %v1350, %v2184
  %v2186 = vpop.f32.mrf.mxu0
  %v2187 = vpop.f32.mrf.mxu0
  %v2188 = vadd.f32 %v1350, %v2187
  %v2189 = vpop.f32.mrf.mxu0
  %2190 = vdwg.mxu0
  %v2191 = vmax.f32 %v1927, 0.0
  %v2192 = vmax.f32 %v1929, 0.0
  %v2193 = vmax.f32 %v1970, 0.0
  %v2194 = vmax.f32 %v1972, 0.0
  %v2195 = vmax.f32 %v2013, 0.0
  %v2196 = vmax.f32 %v2015, 0.0
  %v2197 = vmax.f32 %v2056, 0.0
  %v2198 = vmax.f32 %v2058, 0.0
  %v2199 = vmax.f32 %v2099, 0.0
  %v2200 = vmax.f32 %v2101, 0.0
  %v2201 = vmax.f32 %v2142, 0.0
  %v2202 = vmax.f32 %v2144, 0.0
  %v2203 = vmax.f32 %v2185, 0.0
  %v2204 = vmax.f32 %v1931, 0.0
  %v2205 = vmax.f32 %v1933, 0.0
  %v2206 = vmax.f32 %v1974, 0.0
  %v2207 = vmax.f32 %v1976, 0.0
  %v2208 = vmax.f32 %v2017, 0.0
  %v2209 = vmax.f32 %v2019, 0.0
  %v2210 = vmax.f32 %v2060, 0.0
  %v2211 = vmax.f32 %v2062, 0.0
  %v2212 = vmax.f32 %v2103, 0.0
  %v2213 = vmax.f32 %v2105, 0.0
  %v2214 = vmax.f32 %v2146, 0.0
  %v2215 = vmax.f32 %v2148, 0.0
  %v2216 = vmax.f32 %v2188, 0.0
  %2217 = vst [vmem:[%s5] sm:$0xff] %v2191
  %2218 = vst [vmem:[%s5 + $0x8] sm:$0xff] %v2192
  %2219 = vst [vmem:[%s5 + $0x10] sm:$0xff] %v2193
  %2220 = vst [vmem:[%s5 + $0x18] sm:$0xff] %v2194
  %2221 = vst [vmem:[%s5 + $0x20] sm:$0xff] %v2195
  %2222 = vst [vmem:[%s5 + $0x28] sm:$0xff] %v2196
  %2223 = vst [vmem:[%s5 + $0x30] sm:$0xff] %v2197
  %2224 = vst [vmem:[%s5 + $0x38] sm:$0xff] %v2198
  %2225 = vst [vmem:[%s5 + $0x40] sm:$0xff] %v2199
  %2226 = vst [vmem:[%s5 + $0x48] sm:$0xff] %v2200
  %2227 = vst [vmem:[%s5 + $0x50] sm:$0xff] %v2201
  %2228 = vst [vmem:[%s5 + $0x58] sm:$0xff] %v2202
  %2229 = vst [vmem:[%s5 + $0x60] sm:$0xff] %v2203
  %2230 = vst [vmem:[%s5 + $0x68] sm:$0xff] %v2204
  %2231 = vst [vmem:[%s5 + $0x70] sm:$0xff] %v2205
  %2232 = vst [vmem:[%s5 + $0x78] sm:$0xff] %v2206
  %2233 = vst [vmem:[%s5 + $0x80] sm:$0xff] %v2207
  %2234 = vst [vmem:[%s5 + $0x88] sm:$0xff] %v2208
  %2235 = vst [vmem:[%s5 + $0x90] sm:$0xff] %v2209
  %2236 = vst [vmem:[%s5 + $0x98] sm:$0xff] %v2210
  %2237 = vst [vmem:[%s5 + $0xa0] sm:$0xff] %v2211
  %2238 = vst [vmem:[%s5 + $0xa8] sm:$0xff] %v2212
  %2239 = vst [vmem:[%s5 + $0xb0] sm:$0xff] %v2213
  %2240 = vst [vmem:[%s5 + $0xb8] sm:$0xff] %v2214
  %2241 = vst [vmem:[%s5 + $0xc0] sm:$0xff] %v2215
  %2242 = vst [vmem:[%s5 + $0xc8] sm:$0xff] %v2216
  // Predicated region
  $region22: #{autoencoder_forward.7} parent=0 // pred_check
    _
  $region23: #{autoencoder_forward.7} parent=0 // pred_check_branch
    %2244 = sbr.rel (0) target = $region25
  $region24: #{autoencoder_forward.7} parent=0 // pred_region
    _
  $region25: #{autoencoder_forward.7} parent=0 // pred_fallthru
    _
  // Predicated region
  $region26: #{autoencoder_forward.7} parent=0 // pred_check
    _
  $region27: #{autoencoder_forward.7} parent=0 // pred_check_branch
    %2246 = sbr.rel (0) target = $region29
  $region28: #{autoencoder_forward.7} parent=0 // pred_region
    _
  $region29: #{autoencoder_forward.7} parent=0 // pred_fallthru
    _

// kernel: tile.23
$region0: #{tile.23}
  #allocation0 [shape = 's32[1]{0}', space=sflag, size = 0x4, scoped, tag = 'scoped memory for tile.23']
  %s0 = inlined_call_operand.vmem [shape: f32[16], index: 0, kind: input, shape index: {}]
  %s1 = inlined_call_operand.vmem [shape: f32[4,16], index: 1, kind: output, shape index: {}]
  // Predicated region
  $region2: #{tile.23} parent=0 // pred_check
    _
  $region3: #{tile.23} parent=0 // pred_check_branch
    %3 = sbr.rel (0) target = $region5
  $region4: #{tile.23} parent=0 // pred_region
    _
  $region5: #{tile.23} parent=0 // pred_fallthru
    _
  %v4 = vld [vmem:[%s0] ss:$0 sm:$0xff]
  %5 = vst [vmem:[%s1] sm:$0xf] %v4

// kernel: tile.24
$region0: #{tile.24}
  %s0 = inlined_call_operand.vmem [shape: f32[4,16], index: 0, kind: input, shape index: {}]
  %s1 = inlined_call_operand.vmem [shape: f32[1,64], index: 1, kind: output, shape index: {}]
  $region1: #{tile.24} parent=0
    #allocation0 [shape = 'u8[4096]{0}', space=vmem, size = 0x1000, scoped, tag = 'scoped mem for output reshape']
    #allocation1 [shape = 'u8[4096]{0}', space=vmem, size = 0x1000, scoped, tag = 'scoped mem for input reshape']
    %s3 = sshll.u32 1, 4
    %s4 = ssub.s32 %s3, 1
    %v5 = vld [vmem:[%s0] sm:%s4]
    %6 = vst [vmem:[#allocation1] sm:%s4] %v5
    %v7 = vld [vmem:[#allocation1] sm:$0x1]
    %vm8 = vcmask 130048
    %9 = vst.msk [vmem:[#allocation0] sm:$0x1] %vm8, %v7
    %s10 = scalar_lea.vmem [#allocation1], 3
    %v11 = vld [vmem:[%s10] sm:$0x1]
    %12 = vrot.lane.b32.xlu0 %v11, 48
    %v13 = vpop.permute.xlu0 %12
    %vm14 = vcmask 523648
    %15 = vst.msk [vmem:[#allocation0] sm:$0x1] %vm14, %v13
    %s16 = scalar_lea.vmem [#allocation1], 2
    %v17 = vld [vmem:[%s16] sm:$0x1]
    %18 = vrot.lane.b32.xlu0 %v17, 32
    %v19 = vpop.permute.xlu0 %18
    %vm20 = vcmask 392448
    %21 = vst.msk [vmem:[#allocation0] sm:$0x1] %vm20, %v19
    %s22 = scalar_lea.vmem [#allocation1], 1
    %v23 = vld [vmem:[%s22] sm:$0x1]
    %24 = vrot.lane.b32.xlu0 %v23, 16
    %v25 = vpop.permute.xlu0 %24
    %vm26 = vcmask 261248
    %27 = vst.msk [vmem:[#allocation0] sm:$0x1] %vm26, %v25
    %s29 = sshll.u32 1, 1
    %s30 = ssub.s32 %s29, 1
    %v32 = vld [vmem:[#allocation0] sm:%s30]
    %s33 = sshll.u32 1, 1
    %s34 = ssub.s32 %s33, 1
    %35 = vst [vmem:[%s1] sm:%s34] %v32

// kernel: autoencoder_forward.8
$region0: #{autoencoder_forward.8}
  #allocation0 [shape = 'u32[]', space=smem, size = 0x4, offset = 0x4, fixed_abs, tag = 'smem constant byte address 0x4 - core index']
  #allocation1 [shape = 'u32[144,128]{1,0:T(1,128)}', space=vmem, size = 0x12000, scoped, tag = 'internal scratch']
  %s0 = inlined_call_operand.vmem [shape: bf16[112,128], index: 0, kind: input, shape index: {}]
  %s1 = inlined_call_operand.vmem [shape: bf16[128,128], index: 1, kind: input, shape index: {}]
  %s2 = inlined_call_operand.vmem [shape: f32[1,128], index: 2, kind: input, shape index: {}]
  %s3 = inlined_call_operand.vmem [shape: f32[112,128], index: 3, kind: output, shape index: {}]
  %s4 = sld [smem:[#allocation0]]
  $region22: #{autoencoder_forward.8} parent=0
    _
  %s6 = ssub.s32 1, %s4
  %s7 = scalar_select 0, %s6, %s4
  // Predicated region
  $region2: #{autoencoder_forward.8} parent=0 // pred_check
    _
  $region3: #{autoencoder_forward.8} parent=0 // pred_check_branch
    %9 = sbr.rel (0) target = $region5
  $region4: #{autoencoder_forward.8} parent=0 // pred_region
    _
  $region5: #{autoencoder_forward.8} parent=0 // pred_fallthru
    _
  // Predicated region
  $region6: #{autoencoder_forward.8} parent=0 // pred_check
    _
  $region7: #{autoencoder_forward.8} parent=0 // pred_check_branch
    %11 = sbr.rel (0) target = $region9
  $region8: #{autoencoder_forward.8} parent=0 // pred_region
    _
  $region9: #{autoencoder_forward.8} parent=0 // pred_fallthru
    _
  // Predicated region
  $region10: #{autoencoder_forward.8} parent=0 // pred_check
    _
  $region11: #{autoencoder_forward.8} parent=0 // pred_check_branch
    %13 = sbr.rel (0) target = $region13
  $region12: #{autoencoder_forward.8} parent=0 // pred_region
    _
  $region13: #{autoencoder_forward.8} parent=0 // pred_fallthru
    _
  %v15 = vld [vmem:[%s0] sm:$0xf]
  %v16 = vld [vmem:[%s0 + $0x4] sm:$0xf]
  %v17 = vld [vmem:[%s0 + $0x8] sm:$0xf]
  %v18 = vld [vmem:[%s0 + $0xc] sm:$0xf]
  %v19 = vld [vmem:[%s0 + $0x10] sm:$0xf]
  %v20 = vld [vmem:[%s0 + $0x14] sm:$0xf]
  %v21 = vld [vmem:[%s0 + $0x18] sm:$0xf]
  %v22 = vld [vmem:[%s0 + $0x1c] sm:$0xf]
  %v23 = vld [vmem:[%s0 + $0x20] sm:$0xf]
  %v24 = vld [vmem:[%s0 + $0x24] sm:$0xf]
  %v25 = vld [vmem:[%s0 + $0x28] sm:$0xf]
  %v26 = vld [vmem:[%s0 + $0x2c] sm:$0xf]
  %v27 = vld [vmem:[%s0 + $0x30] sm:$0xf]
  %v28 = vld [vmem:[%s0 + $0x34] sm:$0xf]
  %v29 = vld [vmem:[%s1] sm:$0xf]
  %v30 = vld [vmem:[%s1 + $0x4] sm:$0xf]
  %v31 = vld [vmem:[%s1 + $0x8] sm:$0xf]
  %v32 = vld [vmem:[%s1 + $0xc] sm:$0xf]
  %v33 = vld [vmem:[%s1 + $0x10] sm:$0xf]
  %v34 = vld [vmem:[%s1 + $0x14] sm:$0xf]
  %v35 = vld [vmem:[%s1 + $0x18] sm:$0xf]
  %v36 = vld [vmem:[%s1 + $0x1c] sm:$0xf]
  %v37 = vld [vmem:[%s1 + $0x20] sm:$0xf]
  %v38 = vld [vmem:[%s1 + $0x24] sm:$0xf]
  %v39 = vld [vmem:[%s1 + $0x28] sm:$0xf]
  %v40 = vld [vmem:[%s1 + $0x2c] sm:$0xf]
  %v41 = vld [vmem:[%s1 + $0x30] sm:$0xf]
  %v42 = vld [vmem:[%s1 + $0x34] sm:$0xf]
  %v43 = vld [vmem:[%s1 + $0x38] sm:$0xf]
  %v44 = vld [vmem:[%s1 + $0x3c] sm:$0xf]
  %v45 = vld [vmem:[%s2] sm:$0x1]
  %v47 = vlaneseq
  %v48 = vshrl.u32 %v47, 7
  %v49 = vsub.s32 0, %v48
  %v50 = vrot.slane %v45, %v49
  %v66 = vunpack.c.l.b16 %v15
  %v67 = vunpack.c.l.b16 %v16
  %v68 = vunpack.c.l.b16 %v17
  %v69 = vunpack.c.l.b16 %v18
  %v70 = vunpack.c.l.b16 %v19
  %v71 = vunpack.c.l.b16 %v20
  %v72 = vunpack.c.l.b16 %v21
  %v73 = vunpack.c.l.b16 %v22
  %v74 = vunpack.c.l.b16 %v23
  %v75 = vunpack.c.l.b16 %v24
  %v76 = vunpack.c.l.b16 %v25
  %v77 = vunpack.c.l.b16 %v26
  %v78 = vunpack.c.l.b16 %v27
  %v79 = vunpack.c.l.b16 %v28
  %v80 = vpack.c.b16 %v67, %v66
  %v81 = vpack.c.b16 %v69, %v68
  %v82 = vpack.c.b16 %v71, %v70
  %v83 = vpack.c.b16 %v73, %v72
  %v84 = vpack.c.b16 %v75, %v74
  %v85 = vpack.c.b16 %v77, %v76
  %v86 = vpack.c.b16 %v79, %v78
  %v110 = vunpack.c.l.b16 %v29
  %v111 = vunpack.c.l.b16 %v30
  %v112 = vunpack.c.l.b16 %v31
  %v113 = vunpack.c.l.b16 %v32
  %v114 = vunpack.c.l.b16 %v33
  %v115 = vunpack.c.l.b16 %v34
  %v116 = vunpack.c.l.b16 %v35
  %v117 = vunpack.c.l.b16 %v36
  %v118 = vunpack.c.l.b16 %v37
  %v119 = vunpack.c.l.b16 %v38
  %v120 = vunpack.c.l.b16 %v39
  %v121 = vunpack.c.l.b16 %v40
  %v122 = vunpack.c.l.b16 %v41
  %v123 = vunpack.c.l.b16 %v42
  %v124 = vunpack.c.l.b16 %v43
  %v125 = vunpack.c.l.b16 %v44
  %v126 = vpack.c.b16 %v111, %v110
  %v127 = vpack.c.b16 %v113, %v112
  %v128 = vpack.c.b16 %v115, %v114
  %v129 = vpack.c.b16 %v117, %v116
  %v130 = vpack.c.b16 %v119, %v118
  %v131 = vpack.c.b16 %v121, %v120
  %v132 = vpack.c.b16 %v123, %v122
  %v133 = vpack.c.b16 %v125, %v124
  %142 = vmatprep.subr.bf16.mxu0 0
  %143 = vmatpush1.bf16.msra.mxu0 %v133
  %144 = vmatprep.subr.bf16.mxu0 0
  %145 = vmatpush1.bf16.msra.mxu0 %v132
  %146 = vmatprep.subr.bf16.mxu0 0
  %147 = vmatpush1.bf16.msra.mxu0 %v131
  %148 = vmatprep.subr.bf16.mxu0 0
  %149 = vmatpush1.bf16.msra.mxu0 %v130
  %150 = vmatprep.subr.bf16.mxu0 0
  %151 = vmatpush1.bf16.msra.mxu0 %v129
  %152 = vmatprep.subr.bf16.mxu0 0
  %153 = vmatpush1.bf16.msra.mxu0 %v128
  %154 = vmatprep.subr.bf16.mxu0 0
  %155 = vmatpush1.bf16.msra.mxu0 %v127
  %156 = vmatprep.subr.bf16.mxu0 0
  %157 = vmatpush1.bf16.msra.mxu0 %v126
  %158 = vmatprep.subr.bf16.mxu0 0
  %159 = vmatpush2.bf16.msra.mxu0 0
  %160 = vmatprep.subr.bf16.mxu0 0
  %161 = vmatpush2.bf16.msra.mxu0 0
  %162 = vmatprep.subr.bf16.mxu0 0
  %163 = vmatpush2.bf16.msra.mxu0 0
  %164 = vmatprep.subr.bf16.mxu0 0
  %165 = vmatpush2.bf16.msra.mxu0 0
  %166 = vmatprep.subr.bf16.mxu0 0
  %167 = vmatpush2.bf16.msra.mxu0 0
  %168 = vmatprep.subr.bf16.mxu0 0
  %169 = vmatpush2.bf16.msra.mxu0 0
  %170 = vmatprep.subr.bf16.mxu0 0
  %171 = vmatpush2.bf16.msra.mxu0 0
  %172 = vmatprep.subr.bf16.mxu0 0
  %173 = vmatpush2.bf16.msra.mxu0 0
  %174 = vmatprep.mubr.bf16.mxu0 0
  %175 = vmatmul.mubr.bf16.gmra.mxu0 %v80
  %v176 = vpop.f32.mrf.mxu0
  %v177 = vadd.f32 %v50, %v176
  %v178 = vpop.f32.mrf.mxu0
  %v179 = vpop.f32.mrf.mxu0
  %v180 = vadd.f32 %v50, %v179
  %v181 = vpop.f32.mrf.mxu0
  %182 = vmatprep.mubr.bf16.mxu0 0
  %183 = vmatmul.mubr.bf16.gmra.mxu0 %v81
  %v184 = vpop.f32.mrf.mxu0
  %v185 = vadd.f32 %v50, %v184
  %v186 = vpop.f32.mrf.mxu0
  %v187 = vpop.f32.mrf.mxu0
  %v188 = vadd.f32 %v50, %v187
  %v189 = vpop.f32.mrf.mxu0
  %190 = vmatprep.mubr.bf16.mxu0 0
  %191 = vmatmul.mubr.bf16.gmra.mxu0 %v82
  %v192 = vpop.f32.mrf.mxu0
  %v193 = vadd.f32 %v50, %v192
  %v194 = vpop.f32.mrf.mxu0
  %v195 = vpop.f32.mrf.mxu0
  %v196 = vadd.f32 %v50, %v195
  %v197 = vpop.f32.mrf.mxu0
  %198 = vmatprep.mubr.bf16.mxu0 0
  %199 = vmatmul.mubr.bf16.gmra.mxu0 %v83
  %v200 = vpop.f32.mrf.mxu0
  %v201 = vadd.f32 %v50, %v200
  %v202 = vpop.f32.mrf.mxu0
  %v203 = vpop.f32.mrf.mxu0
  %v204 = vadd.f32 %v50, %v203
  %v205 = vpop.f32.mrf.mxu0
  %206 = vmatprep.mubr.bf16.mxu0 0
  %207 = vmatmul.mubr.bf16.gmra.mxu0 %v84
  %v208 = vpop.f32.mrf.mxu0
  %v209 = vadd.f32 %v50, %v208
  %v210 = vpop.f32.mrf.mxu0
  %v211 = vpop.f32.mrf.mxu0
  %v212 = vadd.f32 %v50, %v211
  %v213 = vpop.f32.mrf.mxu0
  %214 = vmatprep.mubr.bf16.mxu0 0
  %215 = vmatmul.mubr.bf16.gmra.mxu0 %v85
  %v216 = vpop.f32.mrf.mxu0
  %v217 = vadd.f32 %v50, %v216
  %v218 = vpop.f32.mrf.mxu0
  %v219 = vpop.f32.mrf.mxu0
  %v220 = vadd.f32 %v50, %v219
  %v221 = vpop.f32.mrf.mxu0
  %222 = vmatprep.mubr.bf16.mxu0 0
  %223 = vmatmul.mubr.bf16.gmra.mxu0 %v86
  %v224 = vpop.f32.mrf.mxu0
  %v225 = vadd.f32 %v50, %v224
  %v226 = vpop.f32.mrf.mxu0
  %v227 = vpop.f32.mrf.mxu0
  %v228 = vadd.f32 %v50, %v227
  %v229 = vpop.f32.mrf.mxu0
  %230 = vdwg.mxu0
  %v231 = vmax.f32 %v177, 0.0
  %v232 = vmax.f32 %v180, 0.0
  %v233 = vmax.f32 %v185, 0.0
  %v234 = vmax.f32 %v188, 0.0
  %v235 = vmax.f32 %v193, 0.0
  %v236 = vmax.f32 %v196, 0.0
  %v237 = vmax.f32 %v201, 0.0
  %v238 = vmax.f32 %v204, 0.0
  %v239 = vmax.f32 %v209, 0.0
  %v240 = vmax.f32 %v212, 0.0
  %v241 = vmax.f32 %v217, 0.0
  %v242 = vmax.f32 %v220, 0.0
  %v243 = vmax.f32 %v225, 0.0
  %v244 = vmax.f32 %v228, 0.0
  %245 = vst [vmem:[%s3] sm:$0xff] %v231
  %246 = vst [vmem:[%s3 + $0x8] sm:$0xff] %v232
  %247 = vst [vmem:[%s3 + $0x10] sm:$0xff] %v233
  %248 = vst [vmem:[%s3 + $0x18] sm:$0xff] %v234
  %249 = vst [vmem:[%s3 + $0x20] sm:$0xff] %v235
  %250 = vst [vmem:[%s3 + $0x28] sm:$0xff] %v236
  %251 = vst [vmem:[%s3 + $0x30] sm:$0xff] %v237
  %252 = vst [vmem:[%s3 + $0x38] sm:$0xff] %v238
  %253 = vst [vmem:[%s3 + $0x40] sm:$0xff] %v239
  %254 = vst [vmem:[%s3 + $0x48] sm:$0xff] %v240
  %255 = vst [vmem:[%s3 + $0x50] sm:$0xff] %v241
  %256 = vst [vmem:[%s3 + $0x58] sm:$0xff] %v242
  %257 = vst [vmem:[%s3 + $0x60] sm:$0xff] %v243
  %258 = vst [vmem:[%s3 + $0x68] sm:$0xff] %v244
  // Predicated region
  $region14: #{autoencoder_forward.8} parent=0 // pred_check
    _
  $region15: #{autoencoder_forward.8} parent=0 // pred_check_branch
    %260 = sbr.rel (0) target = $region17
  $region16: #{autoencoder_forward.8} parent=0 // pred_region
    _
  $region17: #{autoencoder_forward.8} parent=0 // pred_fallthru
    _
  // Predicated region
  $region18: #{autoencoder_forward.8} parent=0 // pred_check
    _
  $region19: #{autoencoder_forward.8} parent=0 // pred_check_branch
    %262 = sbr.rel (0) target = $region21
  $region20: #{autoencoder_forward.8} parent=0 // pred_region
    _
  $region21: #{autoencoder_forward.8} parent=0 // pred_fallthru
    _

// kernel: autoencoder_forward.9
$region0: #{autoencoder_forward.9}
  #allocation0 [shape = 'u32[]', space=smem, size = 0x4, offset = 0x4, fixed_abs, tag = 'smem constant byte address 0x4 - core index']
  #allocation1 [shape = 'u32[144,128]{1,0:T(1,128)}', space=vmem, size = 0x12000, scoped, tag = 'internal scratch']
  %s0 = inlined_call_operand.vmem [shape: bf16[400,64], index: 0, kind: input, shape index: {}]
  %s1 = inlined_call_operand.vmem [shape: bf16[64,128], index: 1, kind: input, shape index: {}]
  %s2 = inlined_call_operand.vmem [shape: f32[1,128], index: 2, kind: input, shape index: {}]
  %s3 = inlined_call_operand.vmem [shape: f32[400,128], index: 3, kind: output, shape index: {}]
  %s4 = sld [smem:[#allocation0]]
  $region22: #{autoencoder_forward.9} parent=0
    _
  %s6 = ssub.s32 1, %s4
  %s7 = scalar_select 0, %s6, %s4
  // Predicated region
  $region2: #{autoencoder_forward.9} parent=0 // pred_check
    _
  $region3: #{autoencoder_forward.9} parent=0 // pred_check_branch
    %9 = sbr.rel (0) target = $region5
  $region4: #{autoencoder_forward.9} parent=0 // pred_region
    _
  $region5: #{autoencoder_forward.9} parent=0 // pred_fallthru
    _
  // Predicated region
  $region6: #{autoencoder_forward.9} parent=0 // pred_check
    _
  $region7: #{autoencoder_forward.9} parent=0 // pred_check_branch
    %11 = sbr.rel (0) target = $region9
  $region8: #{autoencoder_forward.9} parent=0 // pred_region
    _
  $region9: #{autoencoder_forward.9} parent=0 // pred_fallthru
    _
  // Predicated region
  $region10: #{autoencoder_forward.9} parent=0 // pred_check
    _
  $region11: #{autoencoder_forward.9} parent=0 // pred_check_branch
    %13 = sbr.rel (0) target = $region13
  $region12: #{autoencoder_forward.9} parent=0 // pred_region
    _
  $region13: #{autoencoder_forward.9} parent=0 // pred_fallthru
    _
  %v15 = vld [vmem:[%s0] sm:$0xf]
  %v16 = vld [vmem:[%s0 + $0x4] sm:$0xf]
  %v17 = vld [vmem:[%s0 + $0x8] sm:$0xf]
  %v18 = vld [vmem:[%s0 + $0xc] sm:$0xf]
  %v19 = vld [vmem:[%s0 + $0x10] sm:$0xf]
  %v20 = vld [vmem:[%s0 + $0x14] sm:$0xf]
  %v21 = vld [vmem:[%s0 + $0x18] sm:$0xf]
  %v22 = vld [vmem:[%s0 + $0x1c] sm:$0xf]
  %v23 = vld [vmem:[%s0 + $0x20] sm:$0xf]
  %v24 = vld [vmem:[%s0 + $0x24] sm:$0xf]
  %v25 = vld [vmem:[%s0 + $0x28] sm:$0xf]
  %v26 = vld [vmem:[%s0 + $0x2c] sm:$0xf]
  %v27 = vld [vmem:[%s0 + $0x30] sm:$0xf]
  %v28 = vld [vmem:[%s0 + $0x34] sm:$0xf]
  %v29 = vld [vmem:[%s0 + $0x38] sm:$0xf]
  %v30 = vld [vmem:[%s0 + $0x3c] sm:$0xf]
  %v31 = vld [vmem:[%s0 + $0x40] sm:$0xf]
  %v32 = vld [vmem:[%s0 + $0x44] sm:$0xf]
  %v33 = vld [vmem:[%s0 + $0x48] sm:$0xf]
  %v34 = vld [vmem:[%s0 + $0x4c] sm:$0xf]
  %v35 = vld [vmem:[%s0 + $0x50] sm:$0xf]
  %v36 = vld [vmem:[%s0 + $0x54] sm:$0xf]
  %v37 = vld [vmem:[%s0 + $0x58] sm:$0xf]
  %v38 = vld [vmem:[%s0 + $0x5c] sm:$0xf]
  %v39 = vld [vmem:[%s0 + $0x60] sm:$0xf]
  %v40 = vld [vmem:[%s0 + $0x64] sm:$0xf]
  %v41 = vld [vmem:[%s0 + $0x68] sm:$0xf]
  %v42 = vld [vmem:[%s0 + $0x6c] sm:$0xf]
  %v43 = vld [vmem:[%s0 + $0x70] sm:$0xf]
  %v44 = vld [vmem:[%s0 + $0x74] sm:$0xf]
  %v45 = vld [vmem:[%s0 + $0x78] sm:$0xf]
  %v46 = vld [vmem:[%s0 + $0x7c] sm:$0xf]
  %v47 = vld [vmem:[%s0 + $0x80] sm:$0xf]
  %v48 = vld [vmem:[%s0 + $0x84] sm:$0xf]
  %v49 = vld [vmem:[%s0 + $0x88] sm:$0xf]
  %v50 = vld [vmem:[%s0 + $0x8c] sm:$0xf]
  %v51 = vld [vmem:[%s0 + $0x90] sm:$0xf]
  %v52 = vld [vmem:[%s0 + $0x94] sm:$0xf]
  %v53 = vld [vmem:[%s0 + $0x98] sm:$0xf]
  %v54 = vld [vmem:[%s0 + $0x9c] sm:$0xf]
  %v55 = vld [vmem:[%s0 + $0xa0] sm:$0xf]
  %v56 = vld [vmem:[%s0 + $0xa4] sm:$0xf]
  %v57 = vld [vmem:[%s0 + $0xa8] sm:$0xf]
  %v58 = vld [vmem:[%s0 + $0xac] sm:$0xf]
  %v59 = vld [vmem:[%s0 + $0xb0] sm:$0xf]
  %v60 = vld [vmem:[%s0 + $0xb4] sm:$0xf]
  %v61 = vld [vmem:[%s0 + $0xb8] sm:$0xf]
  %v62 = vld [vmem:[%s0 + $0xbc] sm:$0xf]
  %v63 = vld [vmem:[%s0 + $0xc0] sm:$0xf]
  %v64 = vld [vmem:[%s0 + $0xc4] sm:$0xf]
  %v65 = vld [vmem:[%s1] sm:$0xf]
  %v66 = vld [vmem:[%s1 + $0x4] sm:$0xf]
  %v67 = vld [vmem:[%s1 + $0x8] sm:$0xf]
  %v68 = vld [vmem:[%s1 + $0xc] sm:$0xf]
  %v69 = vld [vmem:[%s1 + $0x10] sm:$0xf]
  %v70 = vld [vmem:[%s1 + $0x14] sm:$0xf]
  %v71 = vld [vmem:[%s1 + $0x18] sm:$0xf]
  %v72 = vld [vmem:[%s1 + $0x1c] sm:$0xf]
  %v73 = vld [vmem:[%s2] sm:$0x1]
  %v75 = vlaneseq
  %v76 = vshrl.u32 %v75, 7
  %v77 = vsub.s32 0, %v76
  %v78 = vrot.slane %v73, %v77
  %v130 = vunpack.c.l.b16 %v15
  %v131 = vunpack.c.l.b16 %v16
  %v132 = vunpack.c.l.b16 %v17
  %v133 = vunpack.c.l.b16 %v18
  %v134 = vunpack.c.l.b16 %v19
  %v135 = vunpack.c.l.b16 %v20
  %v136 = vunpack.c.l.b16 %v21
  %v137 = vunpack.c.l.b16 %v22
  %v138 = vunpack.c.l.b16 %v23
  %v139 = vunpack.c.l.b16 %v24
  %v140 = vunpack.c.l.b16 %v25
  %v141 = vunpack.c.l.b16 %v26
  %v142 = vunpack.c.l.b16 %v27
  %v143 = vunpack.c.l.b16 %v28
  %v144 = vunpack.c.l.b16 %v29
  %v145 = vunpack.c.l.b16 %v30
  %v146 = vunpack.c.l.b16 %v31
  %v147 = vunpack.c.l.b16 %v32
  %v148 = vunpack.c.l.b16 %v33
  %v149 = vunpack.c.l.b16 %v34
  %v150 = vunpack.c.l.b16 %v35
  %v151 = vunpack.c.l.b16 %v36
  %v152 = vunpack.c.l.b16 %v37
  %v153 = vunpack.c.l.b16 %v38
  %v154 = vunpack.c.l.b16 %v39
  %v155 = vunpack.c.l.b16 %v40
  %v156 = vunpack.c.l.b16 %v41
  %v157 = vunpack.c.l.b16 %v42
  %v158 = vunpack.c.l.b16 %v43
  %v159 = vunpack.c.l.b16 %v44
  %v160 = vunpack.c.l.b16 %v45
  %v161 = vunpack.c.l.b16 %v46
  %v162 = vunpack.c.l.b16 %v47
  %v163 = vunpack.c.l.b16 %v48
  %v164 = vunpack.c.l.b16 %v49
  %v165 = vunpack.c.l.b16 %v50
  %v166 = vunpack.c.l.b16 %v51
  %v167 = vunpack.c.l.b16 %v52
  %v168 = vunpack.c.l.b16 %v53
  %v169 = vunpack.c.l.b16 %v54
  %v170 = vunpack.c.l.b16 %v55
  %v171 = vunpack.c.l.b16 %v56
  %v172 = vunpack.c.l.b16 %v57
  %v173 = vunpack.c.l.b16 %v58
  %v174 = vunpack.c.l.b16 %v59
  %v175 = vunpack.c.l.b16 %v60
  %v176 = vunpack.c.l.b16 %v61
  %v177 = vunpack.c.l.b16 %v62
  %v178 = vunpack.c.l.b16 %v63
  %v179 = vunpack.c.l.b16 %v64
  %v180 = vpack.c.b16 %v131, %v130
  %v181 = vpack.c.b16 %v133, %v132
  %v182 = vpack.c.b16 %v135, %v134
  %v183 = vpack.c.b16 %v137, %v136
  %v184 = vpack.c.b16 %v139, %v138
  %v185 = vpack.c.b16 %v141, %v140
  %v186 = vpack.c.b16 %v143, %v142
  %v187 = vpack.c.b16 %v145, %v144
  %v188 = vpack.c.b16 %v147, %v146
  %v189 = vpack.c.b16 %v149, %v148
  %v190 = vpack.c.b16 %v151, %v150
  %v191 = vpack.c.b16 %v153, %v152
  %v192 = vpack.c.b16 %v155, %v154
  %v193 = vpack.c.b16 %v157, %v156
  %v194 = vpack.c.b16 %v159, %v158
  %v195 = vpack.c.b16 %v161, %v160
  %v196 = vpack.c.b16 %v163, %v162
  %v197 = vpack.c.b16 %v165, %v164
  %v198 = vpack.c.b16 %v167, %v166
  %v199 = vpack.c.b16 %v169, %v168
  %v200 = vpack.c.b16 %v171, %v170
  %v201 = vpack.c.b16 %v173, %v172
  %v202 = vpack.c.b16 %v175, %v174
  %v203 = vpack.c.b16 %v177, %v176
  %v204 = vpack.c.b16 %v179, %v178
  %v213 = vunpack.c.l.b16 %v65
  %v214 = vunpack.c.l.b16 %v66
  %v215 = vunpack.c.l.b16 %v67
  %v216 = vunpack.c.l.b16 %v68
  %v217 = vunpack.c.l.b16 %v69
  %v218 = vunpack.c.l.b16 %v70
  %v219 = vunpack.c.l.b16 %v71
  %v220 = vunpack.c.l.b16 %v72
  %v221 = vpack.c.b16 %v214, %v213
  %v222 = vpack.c.b16 %v216, %v215
  %v223 = vpack.c.b16 %v218, %v217
  %v224 = vpack.c.b16 %v220, %v219
  %vm229 = vcmask 523264
  %v231 = vsel %vm229, %v180, 0
  %v234 = vsel %vm229, %v181, 0
  %v237 = vsel %vm229, %v182, 0
  %v240 = vsel %vm229, %v183, 0
  %v243 = vsel %vm229, %v184, 0
  %v246 = vsel %vm229, %v185, 0
  %v249 = vsel %vm229, %v186, 0
  %v252 = vsel %vm229, %v187, 0
  %v255 = vsel %vm229, %v188, 0
  %v258 = vsel %vm229, %v189, 0
  %v261 = vsel %vm229, %v190, 0
  %v264 = vsel %vm229, %v191, 0
  %v267 = vsel %vm229, %v192, 0
  %v270 = vsel %vm229, %v193, 0
  %v273 = vsel %vm229, %v194, 0
  %v276 = vsel %vm229, %v195, 0
  %v279 = vsel %vm229, %v196, 0
  %v282 = vsel %vm229, %v197, 0
  %v285 = vsel %vm229, %v198, 0
  %v288 = vsel %vm229, %v199, 0
  %v291 = vsel %vm229, %v200, 0
  %v294 = vsel %vm229, %v201, 0
  %v297 = vsel %vm229, %v202, 0
  %v300 = vsel %vm229, %v203, 0
  %v303 = vsel %vm229, %v204, 0
  %305 = vmatprep.subr.bf16.mxu0 0
  %306 = vmatpush1.bf16.msra.mxu0 0
  %307 = vmatprep.subr.bf16.mxu0 0
  %308 = vmatpush1.bf16.msra.mxu0 0
  %309 = vmatprep.subr.bf16.mxu0 0
  %310 = vmatpush1.bf16.msra.mxu0 0
  %311 = vmatprep.subr.bf16.mxu0 0
  %312 = vmatpush1.bf16.msra.mxu0 0
  %313 = vmatprep.subr.bf16.mxu0 0
  %314 = vmatpush1.bf16.msra.mxu0 %v224
  %315 = vmatprep.subr.bf16.mxu0 0
  %316 = vmatpush1.bf16.msra.mxu0 %v223
  %317 = vmatprep.subr.bf16.mxu0 0
  %318 = vmatpush1.bf16.msra.mxu0 %v222
  %319 = vmatprep.subr.bf16.mxu0 0
  %320 = vmatpush1.bf16.msra.mxu0 %v221
  %321 = vmatprep.subr.bf16.mxu0 0
  %322 = vmatpush2.bf16.msra.mxu0 0
  %323 = vmatprep.subr.bf16.mxu0 0
  %324 = vmatpush2.bf16.msra.mxu0 0
  %325 = vmatprep.subr.bf16.mxu0 0
  %326 = vmatpush2.bf16.msra.mxu0 0
  %327 = vmatprep.subr.bf16.mxu0 0
  %328 = vmatpush2.bf16.msra.mxu0 0
  %329 = vmatprep.subr.bf16.mxu0 0
  %330 = vmatpush2.bf16.msra.mxu0 0
  %331 = vmatprep.subr.bf16.mxu0 0
  %332 = vmatpush2.bf16.msra.mxu0 0
  %333 = vmatprep.subr.bf16.mxu0 0
  %334 = vmatpush2.bf16.msra.mxu0 0
  %335 = vmatprep.subr.bf16.mxu0 0
  %336 = vmatpush2.bf16.msra.mxu0 0
  %337 = vmatprep.mubr.bf16.mxu0 0
  %338 = vmatmul.mubr.bf16.gmra.mxu0 %v231
  %v339 = vpop.f32.mrf.mxu0
  %v340 = vadd.f32 %v78, %v339
  %v341 = vpop.f32.mrf.mxu0
  %v342 = vpop.f32.mrf.mxu0
  %v343 = vadd.f32 %v78, %v342
  %v344 = vpop.f32.mrf.mxu0
  %345 = vmatprep.mubr.bf16.mxu0 0
  %346 = vmatmul.mubr.bf16.gmra.mxu0 %v234
  %v347 = vpop.f32.mrf.mxu0
  %v348 = vadd.f32 %v78, %v347
  %v349 = vpop.f32.mrf.mxu0
  %v350 = vpop.f32.mrf.mxu0
  %v351 = vadd.f32 %v78, %v350
  %v352 = vpop.f32.mrf.mxu0
  %353 = vmatprep.mubr.bf16.mxu0 0
  %354 = vmatmul.mubr.bf16.gmra.mxu0 %v237
  %v355 = vpop.f32.mrf.mxu0
  %v356 = vadd.f32 %v78, %v355
  %v357 = vpop.f32.mrf.mxu0
  %v358 = vpop.f32.mrf.mxu0
  %v359 = vadd.f32 %v78, %v358
  %v360 = vpop.f32.mrf.mxu0
  %361 = vmatprep.mubr.bf16.mxu0 0
  %362 = vmatmul.mubr.bf16.gmra.mxu0 %v240
  %v363 = vpop.f32.mrf.mxu0
  %v364 = vadd.f32 %v78, %v363
  %v365 = vpop.f32.mrf.mxu0
  %v366 = vpop.f32.mrf.mxu0
  %v367 = vadd.f32 %v78, %v366
  %v368 = vpop.f32.mrf.mxu0
  %369 = vmatprep.mubr.bf16.mxu0 0
  %370 = vmatmul.mubr.bf16.gmra.mxu0 %v243
  %v371 = vpop.f32.mrf.mxu0
  %v372 = vadd.f32 %v78, %v371
  %v373 = vpop.f32.mrf.mxu0
  %v374 = vpop.f32.mrf.mxu0
  %v375 = vadd.f32 %v78, %v374
  %v376 = vpop.f32.mrf.mxu0
  %377 = vmatprep.mubr.bf16.mxu0 0
  %378 = vmatmul.mubr.bf16.gmra.mxu0 %v246
  %v379 = vpop.f32.mrf.mxu0
  %v380 = vadd.f32 %v78, %v379
  %v381 = vpop.f32.mrf.mxu0
  %v382 = vpop.f32.mrf.mxu0
  %v383 = vadd.f32 %v78, %v382
  %v384 = vpop.f32.mrf.mxu0
  %385 = vmatprep.mubr.bf16.mxu0 0
  %386 = vmatmul.mubr.bf16.gmra.mxu0 %v249
  %v387 = vpop.f32.mrf.mxu0
  %v388 = vadd.f32 %v78, %v387
  %v389 = vpop.f32.mrf.mxu0
  %v390 = vpop.f32.mrf.mxu0
  %v391 = vadd.f32 %v78, %v390
  %v392 = vpop.f32.mrf.mxu0
  %393 = vmatprep.mubr.bf16.mxu0 0
  %394 = vmatmul.mubr.bf16.gmra.mxu0 %v252
  %v395 = vpop.f32.mrf.mxu0
  %v396 = vadd.f32 %v78, %v395
  %v397 = vpop.f32.mrf.mxu0
  %v398 = vpop.f32.mrf.mxu0
  %v399 = vadd.f32 %v78, %v398
  %v400 = vpop.f32.mrf.mxu0
  %401 = vmatprep.mubr.bf16.mxu0 0
  %402 = vmatmul.mubr.bf16.gmra.mxu0 %v255
  %v403 = vpop.f32.mrf.mxu0
  %v404 = vadd.f32 %v78, %v403
  %v405 = vpop.f32.mrf.mxu0
  %v406 = vpop.f32.mrf.mxu0
  %v407 = vadd.f32 %v78, %v406
  %v408 = vpop.f32.mrf.mxu0
  %409 = vmatprep.mubr.bf16.mxu0 0
  %410 = vmatmul.mubr.bf16.gmra.mxu0 %v258
  %v411 = vpop.f32.mrf.mxu0
  %v412 = vadd.f32 %v78, %v411
  %v413 = vpop.f32.mrf.mxu0
  %v414 = vpop.f32.mrf.mxu0
  %v415 = vadd.f32 %v78, %v414
  %v416 = vpop.f32.mrf.mxu0
  %417 = vmatprep.mubr.bf16.mxu0 0
  %418 = vmatmul.mubr.bf16.gmra.mxu0 %v261
  %v419 = vpop.f32.mrf.mxu0
  %v420 = vadd.f32 %v78, %v419
  %v421 = vpop.f32.mrf.mxu0
  %v422 = vpop.f32.mrf.mxu0
  %v423 = vadd.f32 %v78, %v422
  %v424 = vpop.f32.mrf.mxu0
  %425 = vmatprep.mubr.bf16.mxu0 0
  %426 = vmatmul.mubr.bf16.gmra.mxu0 %v264
  %v427 = vpop.f32.mrf.mxu0
  %v428 = vadd.f32 %v78, %v427
  %v429 = vpop.f32.mrf.mxu0
  %v430 = vpop.f32.mrf.mxu0
  %v431 = vadd.f32 %v78, %v430
  %v432 = vpop.f32.mrf.mxu0
  %433 = vmatprep.mubr.bf16.mxu0 0
  %434 = vmatmul.mubr.bf16.gmra.mxu0 %v267
  %v435 = vpop.f32.mrf.mxu0
  %v436 = vadd.f32 %v78, %v435
  %v437 = vpop.f32.mrf.mxu0
  %v438 = vpop.f32.mrf.mxu0
  %v439 = vadd.f32 %v78, %v438
  %v440 = vpop.f32.mrf.mxu0
  %441 = vmatprep.mubr.bf16.mxu0 0
  %442 = vmatmul.mubr.bf16.gmra.mxu0 %v270
  %v443 = vpop.f32.mrf.mxu0
  %v444 = vadd.f32 %v78, %v443
  %v445 = vpop.f32.mrf.mxu0
  %v446 = vpop.f32.mrf.mxu0
  %v447 = vadd.f32 %v78, %v446
  %v448 = vpop.f32.mrf.mxu0
  %449 = vmatprep.mubr.bf16.mxu0 0
  %450 = vmatmul.mubr.bf16.gmra.mxu0 %v273
  %v451 = vpop.f32.mrf.mxu0
  %v452 = vadd.f32 %v78, %v451
  %v453 = vpop.f32.mrf.mxu0
  %v454 = vpop.f32.mrf.mxu0
  %v455 = vadd.f32 %v78, %v454
  %v456 = vpop.f32.mrf.mxu0
  %457 = vmatprep.mubr.bf16.mxu0 0
  %458 = vmatmul.mubr.bf16.gmra.mxu0 %v276
  %v459 = vpop.f32.mrf.mxu0
  %v460 = vadd.f32 %v78, %v459
  %v461 = vpop.f32.mrf.mxu0
  %v462 = vpop.f32.mrf.mxu0
  %v463 = vadd.f32 %v78, %v462
  %v464 = vpop.f32.mrf.mxu0
  %465 = vmatprep.mubr.bf16.mxu0 0
  %466 = vmatmul.mubr.bf16.gmra.mxu0 %v279
  %v467 = vpop.f32.mrf.mxu0
  %v468 = vadd.f32 %v78, %v467
  %v469 = vpop.f32.mrf.mxu0
  %v470 = vpop.f32.mrf.mxu0
  %v471 = vadd.f32 %v78, %v470
  %v472 = vpop.f32.mrf.mxu0
  %473 = vmatprep.mubr.bf16.mxu0 0
  %474 = vmatmul.mubr.bf16.gmra.mxu0 %v282
  %v475 = vpop.f32.mrf.mxu0
  %v476 = vadd.f32 %v78, %v475
  %v477 = vpop.f32.mrf.mxu0
  %v478 = vpop.f32.mrf.mxu0
  %v479 = vadd.f32 %v78, %v478
  %v480 = vpop.f32.mrf.mxu0
  %481 = vmatprep.mubr.bf16.mxu0 0
  %482 = vmatmul.mubr.bf16.gmra.mxu0 %v285
  %v483 = vpop.f32.mrf.mxu0
  %v484 = vadd.f32 %v78, %v483
  %v485 = vpop.f32.mrf.mxu0
  %v486 = vpop.f32.mrf.mxu0
  %v487 = vadd.f32 %v78, %v486
  %v488 = vpop.f32.mrf.mxu0
  %489 = vmatprep.mubr.bf16.mxu0 0
  %490 = vmatmul.mubr.bf16.gmra.mxu0 %v288
  %v491 = vpop.f32.mrf.mxu0
  %v492 = vadd.f32 %v78, %v491
  %v493 = vpop.f32.mrf.mxu0
  %v494 = vpop.f32.mrf.mxu0
  %v495 = vadd.f32 %v78, %v494
  %v496 = vpop.f32.mrf.mxu0
  %497 = vmatprep.mubr.bf16.mxu0 0
  %498 = vmatmul.mubr.bf16.gmra.mxu0 %v291
  %v499 = vpop.f32.mrf.mxu0
  %v500 = vadd.f32 %v78, %v499
  %v501 = vpop.f32.mrf.mxu0
  %v502 = vpop.f32.mrf.mxu0
  %v503 = vadd.f32 %v78, %v502
  %v504 = vpop.f32.mrf.mxu0
  %505 = vmatprep.mubr.bf16.mxu0 0
  %506 = vmatmul.mubr.bf16.gmra.mxu0 %v294
  %v507 = vpop.f32.mrf.mxu0
  %v508 = vadd.f32 %v78, %v507
  %v509 = vpop.f32.mrf.mxu0
  %v510 = vpop.f32.mrf.mxu0
  %v511 = vadd.f32 %v78, %v510
  %v512 = vpop.f32.mrf.mxu0
  %513 = vmatprep.mubr.bf16.mxu0 0
  %514 = vmatmul.mubr.bf16.gmra.mxu0 %v297
  %v515 = vpop.f32.mrf.mxu0
  %v516 = vadd.f32 %v78, %v515
  %v517 = vpop.f32.mrf.mxu0
  %v518 = vpop.f32.mrf.mxu0
  %v519 = vadd.f32 %v78, %v518
  %v520 = vpop.f32.mrf.mxu0
  %521 = vmatprep.mubr.bf16.mxu0 0
  %522 = vmatmul.mubr.bf16.gmra.mxu0 %v300
  %v523 = vpop.f32.mrf.mxu0
  %v524 = vadd.f32 %v78, %v523
  %v525 = vpop.f32.mrf.mxu0
  %v526 = vpop.f32.mrf.mxu0
  %v527 = vadd.f32 %v78, %v526
  %v528 = vpop.f32.mrf.mxu0
  %529 = vmatprep.mubr.bf16.mxu0 0
  %530 = vmatmul.mubr.bf16.gmra.mxu0 %v303
  %v531 = vpop.f32.mrf.mxu0
  %v532 = vadd.f32 %v78, %v531
  %v533 = vpop.f32.mrf.mxu0
  %v534 = vpop.f32.mrf.mxu0
  %v535 = vadd.f32 %v78, %v534
  %v536 = vpop.f32.mrf.mxu0
  %537 = vdwg.mxu0
  %v538 = vsub.f32 0.0, %v340
  %v539 = vsub.f32 0.0, %v343
  %v540 = vsub.f32 0.0, %v348
  %v541 = vsub.f32 0.0, %v351
  %v542 = vsub.f32 0.0, %v356
  %v543 = vsub.f32 0.0, %v359
  %v544 = vsub.f32 0.0, %v364
  %v545 = vsub.f32 0.0, %v367
  %v546 = vsub.f32 0.0, %v372
  %v547 = vsub.f32 0.0, %v375
  %v548 = vsub.f32 0.0, %v380
  %v549 = vsub.f32 0.0, %v383
  %v550 = vsub.f32 0.0, %v388
  %v551 = vsub.f32 0.0, %v391
  %v552 = vsub.f32 0.0, %v396
  %v553 = vsub.f32 0.0, %v399
  %v554 = vsub.f32 0.0, %v404
  %v555 = vsub.f32 0.0, %v407
  %v556 = vsub.f32 0.0, %v412
  %v557 = vsub.f32 0.0, %v415
  %v558 = vsub.f32 0.0, %v420
  %v559 = vsub.f32 0.0, %v423
  %v560 = vsub.f32 0.0, %v428
  %v561 = vsub.f32 0.0, %v431
  %v562 = vsub.f32 0.0, %v436
  %v563 = vsub.f32 0.0, %v439
  %v564 = vsub.f32 0.0, %v444
  %v565 = vsub.f32 0.0, %v447
  %v566 = vsub.f32 0.0, %v452
  %v567 = vsub.f32 0.0, %v455
  %v568 = vsub.f32 0.0, %v460
  %v569 = vsub.f32 0.0, %v463
  %v570 = vsub.f32 0.0, %v468
  %v571 = vsub.f32 0.0, %v471
  %v572 = vsub.f32 0.0, %v476
  %v573 = vsub.f32 0.0, %v479
  %v574 = vsub.f32 0.0, %v484
  %v575 = vsub.f32 0.0, %v487
  %v576 = vsub.f32 0.0, %v492
  %v577 = vsub.f32 0.0, %v495
  %v578 = vsub.f32 0.0, %v500
  %v579 = vsub.f32 0.0, %v503
  %v580 = vsub.f32 0.0, %v508
  %v581 = vsub.f32 0.0, %v511
  %v582 = vsub.f32 0.0, %v516
  %v583 = vsub.f32 0.0, %v519
  %v584 = vsub.f32 0.0, %v524
  %v585 = vsub.f32 0.0, %v527
  %v586 = vsub.f32 0.0, %v532
  %v587 = vsub.f32 0.0, %v535
  %v588 = vmul.f32 %v538, 1.442695
  %v589 = vpow.pop %v588
  %v590 = vmul.f32 %v539, 1.442695
  %v591 = vpow.pop %v590
  %v592 = vmul.f32 %v540, 1.442695
  %v593 = vpow.pop %v592
  %v594 = vmul.f32 %v541, 1.442695
  %v595 = vpow.pop %v594
  %v596 = vmul.f32 %v542, 1.442695
  %v597 = vpow.pop %v596
  %v598 = vmul.f32 %v543, 1.442695
  %v599 = vpow.pop %v598
  %v600 = vmul.f32 %v544, 1.442695
  %v601 = vpow.pop %v600
  %v602 = vmul.f32 %v545, 1.442695
  %v603 = vpow.pop %v602
  %v604 = vmul.f32 %v546, 1.442695
  %v605 = vpow.pop %v604
  %v606 = vmul.f32 %v547, 1.442695
  %v607 = vpow.pop %v606
  %v608 = vmul.f32 %v548, 1.442695
  %v609 = vpow.pop %v608
  %v610 = vmul.f32 %v549, 1.442695
  %v611 = vpow.pop %v610
  %v612 = vmul.f32 %v550, 1.442695
  %v613 = vpow.pop %v612
  %v614 = vmul.f32 %v551, 1.442695
  %v615 = vpow.pop %v614
  %v616 = vmul.f32 %v552, 1.442695
  %v617 = vpow.pop %v616
  %v618 = vmul.f32 %v553, 1.442695
  %v619 = vpow.pop %v618
  %v620 = vmul.f32 %v554, 1.442695
  %v621 = vpow.pop %v620
  %v622 = vmul.f32 %v555, 1.442695
  %v623 = vpow.pop %v622
  %v624 = vmul.f32 %v556, 1.442695
  %v625 = vpow.pop %v624
  %v626 = vmul.f32 %v557, 1.442695
  %v627 = vpow.pop %v626
  %v628 = vmul.f32 %v558, 1.442695
  %v629 = vpow.pop %v628
  %v630 = vmul.f32 %v559, 1.442695
  %v631 = vpow.pop %v630
  %v632 = vmul.f32 %v560, 1.442695
  %v633 = vpow.pop %v632
  %v634 = vmul.f32 %v561, 1.442695
  %v635 = vpow.pop %v634
  %v636 = vmul.f32 %v562, 1.442695
  %v637 = vpow.pop %v636
  %v638 = vmul.f32 %v563, 1.442695
  %v639 = vpow.pop %v638
  %v640 = vmul.f32 %v564, 1.442695
  %v641 = vpow.pop %v640
  %v642 = vmul.f32 %v565, 1.442695
  %v643 = vpow.pop %v642
  %v644 = vmul.f32 %v566, 1.442695
  %v645 = vpow.pop %v644
  %v646 = vmul.f32 %v567, 1.442695
  %v647 = vpow.pop %v646
  %v648 = vmul.f32 %v568, 1.442695
  %v649 = vpow.pop %v648
  %v650 = vmul.f32 %v569, 1.442695
  %v651 = vpow.pop %v650
  %v652 = vmul.f32 %v570, 1.442695
  %v653 = vpow.pop %v652
  %v654 = vmul.f32 %v571, 1.442695
  %v655 = vpow.pop %v654
  %v656 = vmul.f32 %v572, 1.442695
  %v657 = vpow.pop %v656
  %v658 = vmul.f32 %v573, 1.442695
  %v659 = vpow.pop %v658
  %v660 = vmul.f32 %v574, 1.442695
  %v661 = vpow.pop %v660
  %v662 = vmul.f32 %v575, 1.442695
  %v663 = vpow.pop %v662
  %v664 = vmul.f32 %v576, 1.442695
  %v665 = vpow.pop %v664
  %v666 = vmul.f32 %v577, 1.442695
  %v667 = vpow.pop %v666
  %v668 = vmul.f32 %v578, 1.442695
  %v669 = vpow.pop %v668
  %v670 = vmul.f32 %v579, 1.442695
  %v671 = vpow.pop %v670
  %v672 = vmul.f32 %v580, 1.442695
  %v673 = vpow.pop %v672
  %v674 = vmul.f32 %v581, 1.442695
  %v675 = vpow.pop %v674
  %v676 = vmul.f32 %v582, 1.442695
  %v677 = vpow.pop %v676
  %v678 = vmul.f32 %v583, 1.442695
  %v679 = vpow.pop %v678
  %v680 = vmul.f32 %v584, 1.442695
  %v681 = vpow.pop %v680
  %v682 = vmul.f32 %v585, 1.442695
  %v683 = vpow.pop %v682
  %v684 = vmul.f32 %v586, 1.442695
  %v685 = vpow.pop %v684
  %v686 = vmul.f32 %v587, 1.442695
  %v687 = vpow.pop %v686
  %v688 = vadd.f32 %v589, 1.0
  %v689 = vadd.f32 %v591, 1.0
  %v690 = vadd.f32 %v593, 1.0
  %v691 = vadd.f32 %v595, 1.0
  %v692 = vadd.f32 %v597, 1.0
  %v693 = vadd.f32 %v599, 1.0
  %v694 = vadd.f32 %v601, 1.0
  %v695 = vadd.f32 %v603, 1.0
  %v696 = vadd.f32 %v605, 1.0
  %v697 = vadd.f32 %v607, 1.0
  %v698 = vadd.f32 %v609, 1.0
  %v699 = vadd.f32 %v611, 1.0
  %v700 = vadd.f32 %v613, 1.0
  %v701 = vadd.f32 %v615, 1.0
  %v702 = vadd.f32 %v617, 1.0
  %v703 = vadd.f32 %v619, 1.0
  %v704 = vadd.f32 %v621, 1.0
  %v705 = vadd.f32 %v623, 1.0
  %v706 = vadd.f32 %v625, 1.0
  %v707 = vadd.f32 %v627, 1.0
  %v708 = vadd.f32 %v629, 1.0
  %v709 = vadd.f32 %v631, 1.0
  %v710 = vadd.f32 %v633, 1.0
  %v711 = vadd.f32 %v635, 1.0
  %v712 = vadd.f32 %v637, 1.0
  %v713 = vadd.f32 %v639, 1.0
  %v714 = vadd.f32 %v641, 1.0
  %v715 = vadd.f32 %v643, 1.0
  %v716 = vadd.f32 %v645, 1.0
  %v717 = vadd.f32 %v647, 1.0
  %v718 = vadd.f32 %v649, 1.0
  %v719 = vadd.f32 %v651, 1.0
  %v720 = vadd.f32 %v653, 1.0
  %v721 = vadd.f32 %v655, 1.0
  %v722 = vadd.f32 %v657, 1.0
  %v723 = vadd.f32 %v659, 1.0
  %v724 = vadd.f32 %v661, 1.0
  %v725 = vadd.f32 %v663, 1.0
  %v726 = vadd.f32 %v665, 1.0
  %v727 = vadd.f32 %v667, 1.0
  %v728 = vadd.f32 %v669, 1.0
  %v729 = vadd.f32 %v671, 1.0
  %v730 = vadd.f32 %v673, 1.0
  %v731 = vadd.f32 %v675, 1.0
  %v732 = vadd.f32 %v677, 1.0
  %v733 = vadd.f32 %v679, 1.0
  %v734 = vadd.f32 %v681, 1.0
  %v735 = vadd.f32 %v683, 1.0
  %v736 = vadd.f32 %v685, 1.0
  %v737 = vadd.f32 %v687, 1.0
  %v738 = vrcp.pop %v688
  %v739 = vrcp.pop %v689
  %v740 = vrcp.pop %v690
  %v741 = vrcp.pop %v691
  %v742 = vrcp.pop %v692
  %v743 = vrcp.pop %v693
  %v744 = vrcp.pop %v694
  %v745 = vrcp.pop %v695
  %v746 = vrcp.pop %v696
  %v747 = vrcp.pop %v697
  %v748 = vrcp.pop %v698
  %v749 = vrcp.pop %v699
  %v750 = vrcp.pop %v700
  %v751 = vrcp.pop %v701
  %v752 = vrcp.pop %v702
  %v753 = vrcp.pop %v703
  %v754 = vrcp.pop %v704
  %v755 = vrcp.pop %v705
  %v756 = vrcp.pop %v706
  %v757 = vrcp.pop %v707
  %v758 = vrcp.pop %v708
  %v759 = vrcp.pop %v709
  %v760 = vrcp.pop %v710
  %v761 = vrcp.pop %v711
  %v762 = vrcp.pop %v712
  %v763 = vrcp.pop %v713
  %v764 = vrcp.pop %v714
  %v765 = vrcp.pop %v715
  %v766 = vrcp.pop %v716
  %v767 = vrcp.pop %v717
  %v768 = vrcp.pop %v718
  %v769 = vrcp.pop %v719
  %v770 = vrcp.pop %v720
  %v771 = vrcp.pop %v721
  %v772 = vrcp.pop %v722
  %v773 = vrcp.pop %v723
  %v774 = vrcp.pop %v724
  %v775 = vrcp.pop %v725
  %v776 = vrcp.pop %v726
  %v777 = vrcp.pop %v727
  %v778 = vrcp.pop %v728
  %v779 = vrcp.pop %v729
  %v780 = vrcp.pop %v730
  %v781 = vrcp.pop %v731
  %v782 = vrcp.pop %v732
  %v783 = vrcp.pop %v733
  %v784 = vrcp.pop %v734
  %v785 = vrcp.pop %v735
  %v786 = vrcp.pop %v736
  %v787 = vrcp.pop %v737
  %v788 = vmax.f32 %v738, 0.0
  %v789 = vmax.f32 %v739, 0.0
  %v790 = vmax.f32 %v740, 0.0
  %v791 = vmax.f32 %v741, 0.0
  %v792 = vmax.f32 %v742, 0.0
  %v793 = vmax.f32 %v743, 0.0
  %v794 = vmax.f32 %v744, 0.0
  %v795 = vmax.f32 %v745, 0.0
  %v796 = vmax.f32 %v746, 0.0
  %v797 = vmax.f32 %v747, 0.0
  %v798 = vmax.f32 %v748, 0.0
  %v799 = vmax.f32 %v749, 0.0
  %v800 = vmax.f32 %v750, 0.0
  %v801 = vmax.f32 %v751, 0.0
  %v802 = vmax.f32 %v752, 0.0
  %v803 = vmax.f32 %v753, 0.0
  %v804 = vmax.f32 %v754, 0.0
  %v805 = vmax.f32 %v755, 0.0
  %v806 = vmax.f32 %v756, 0.0
  %v807 = vmax.f32 %v757, 0.0
  %v808 = vmax.f32 %v758, 0.0
  %v809 = vmax.f32 %v759, 0.0
  %v810 = vmax.f32 %v760, 0.0
  %v811 = vmax.f32 %v761, 0.0
  %v812 = vmax.f32 %v762, 0.0
  %v813 = vmax.f32 %v763, 0.0
  %v814 = vmax.f32 %v764, 0.0
  %v815 = vmax.f32 %v765, 0.0
  %v816 = vmax.f32 %v766, 0.0
  %v817 = vmax.f32 %v767, 0.0
  %v818 = vmax.f32 %v768, 0.0
  %v819 = vmax.f32 %v769, 0.0
  %v820 = vmax.f32 %v770, 0.0
  %v821 = vmax.f32 %v771, 0.0
  %v822 = vmax.f32 %v772, 0.0
  %v823 = vmax.f32 %v773, 0.0
  %v824 = vmax.f32 %v774, 0.0
  %v825 = vmax.f32 %v775, 0.0
  %v826 = vmax.f32 %v776, 0.0
  %v827 = vmax.f32 %v777, 0.0
  %v828 = vmax.f32 %v778, 0.0
  %v829 = vmax.f32 %v779, 0.0
  %v830 = vmax.f32 %v780, 0.0
  %v831 = vmax.f32 %v781, 0.0
  %v832 = vmax.f32 %v782, 0.0
  %v833 = vmax.f32 %v783, 0.0
  %v834 = vmax.f32 %v784, 0.0
  %v835 = vmax.f32 %v785, 0.0
  %v836 = vmax.f32 %v786, 0.0
  %v837 = vmax.f32 %v787, 0.0
  %v838 = vmin.f32 %v788, 1.0
  %v839 = vmin.f32 %v789, 1.0
  %v840 = vmin.f32 %v790, 1.0
  %v841 = vmin.f32 %v791, 1.0
  %v842 = vmin.f32 %v792, 1.0
  %v843 = vmin.f32 %v793, 1.0
  %v844 = vmin.f32 %v794, 1.0
  %v845 = vmin.f32 %v795, 1.0
  %v846 = vmin.f32 %v796, 1.0
  %v847 = vmin.f32 %v797, 1.0
  %v848 = vmin.f32 %v798, 1.0
  %v849 = vmin.f32 %v799, 1.0
  %v850 = vmin.f32 %v800, 1.0
  %v851 = vmin.f32 %v801, 1.0
  %v852 = vmin.f32 %v802, 1.0
  %v853 = vmin.f32 %v803, 1.0
  %v854 = vmin.f32 %v804, 1.0
  %v855 = vmin.f32 %v805, 1.0
  %v856 = vmin.f32 %v806, 1.0
  %v857 = vmin.f32 %v807, 1.0
  %v858 = vmin.f32 %v808, 1.0
  %v859 = vmin.f32 %v809, 1.0
  %v860 = vmin.f32 %v810, 1.0
  %v861 = vmin.f32 %v811, 1.0
  %v862 = vmin.f32 %v812, 1.0
  %v863 = vmin.f32 %v813, 1.0
  %v864 = vmin.f32 %v814, 1.0
  %v865 = vmin.f32 %v815, 1.0
  %v866 = vmin.f32 %v816, 1.0
  %v867 = vmin.f32 %v817, 1.0
  %v868 = vmin.f32 %v818, 1.0
  %v869 = vmin.f32 %v819, 1.0
  %v870 = vmin.f32 %v820, 1.0
  %v871 = vmin.f32 %v821, 1.0
  %v872 = vmin.f32 %v822, 1.0
  %v873 = vmin.f32 %v823, 1.0
  %v874 = vmin.f32 %v824, 1.0
  %v875 = vmin.f32 %v825, 1.0
  %v876 = vmin.f32 %v826, 1.0
  %v877 = vmin.f32 %v827, 1.0
  %v878 = vmin.f32 %v828, 1.0
  %v879 = vmin.f32 %v829, 1.0
  %v880 = vmin.f32 %v830, 1.0
  %v881 = vmin.f32 %v831, 1.0
  %v882 = vmin.f32 %v832, 1.0
  %v883 = vmin.f32 %v833, 1.0
  %v884 = vmin.f32 %v834, 1.0
  %v885 = vmin.f32 %v835, 1.0
  %v886 = vmin.f32 %v836, 1.0
  %v887 = vmin.f32 %v837, 1.0
  %888 = vst [vmem:[%s3] sm:$0xff] %v838
  %889 = vst [vmem:[%s3 + $0x8] sm:$0xff] %v839
  %890 = vst [vmem:[%s3 + $0x10] sm:$0xff] %v840
  %891 = vst [vmem:[%s3 + $0x18] sm:$0xff] %v841
  %892 = vst [vmem:[%s3 + $0x20] sm:$0xff] %v842
  %893 = vst [vmem:[%s3 + $0x28] sm:$0xff] %v843
  %894 = vst [vmem:[%s3 + $0x30] sm:$0xff] %v844
  %895 = vst [vmem:[%s3 + $0x38] sm:$0xff] %v845
  %896 = vst [vmem:[%s3 + $0x40] sm:$0xff] %v846
  %897 = vst [vmem:[%s3 + $0x48] sm:$0xff] %v847
  %898 = vst [vmem:[%s3 + $0x50] sm:$0xff] %v848
  %899 = vst [vmem:[%s3 + $0x58] sm:$0xff] %v849
  %900 = vst [vmem:[%s3 + $0x60] sm:$0xff] %v850
  %901 = vst [vmem:[%s3 + $0x68] sm:$0xff] %v851
  %902 = vst [vmem:[%s3 + $0x70] sm:$0xff] %v852
  %903 = vst [vmem:[%s3 + $0x78] sm:$0xff] %v853
  %904 = vst [vmem:[%s3 + $0x80] sm:$0xff] %v854
  %905 = vst [vmem:[%s3 + $0x88] sm:$0xff] %v855
  %906 = vst [vmem:[%s3 + $0x90] sm:$0xff] %v856
  %907 = vst [vmem:[%s3 + $0x98] sm:$0xff] %v857
  %908 = vst [vmem:[%s3 + $0xa0] sm:$0xff] %v858
  %909 = vst [vmem:[%s3 + $0xa8] sm:$0xff] %v859
  %910 = vst [vmem:[%s3 + $0xb0] sm:$0xff] %v860
  %911 = vst [vmem:[%s3 + $0xb8] sm:$0xff] %v861
  %912 = vst [vmem:[%s3 + $0xc0] sm:$0xff] %v862
  %913 = vst [vmem:[%s3 + $0xc8] sm:$0xff] %v863
  %914 = vst [vmem:[%s3 + $0xd0] sm:$0xff] %v864
  %915 = vst [vmem:[%s3 + $0xd8] sm:$0xff] %v865
  %916 = vst [vmem:[%s3 + $0xe0] sm:$0xff] %v866
  %917 = vst [vmem:[%s3 + $0xe8] sm:$0xff] %v867
  %918 = vst [vmem:[%s3 + $0xf0] sm:$0xff] %v868
  %919 = vst [vmem:[%s3 + $0xf8] sm:$0xff] %v869
  %920 = vst [vmem:[%s3 + $0x100] sm:$0xff] %v870
  %921 = vst [vmem:[%s3 + $0x108] sm:$0xff] %v871
  %922 = vst [vmem:[%s3 + $0x110] sm:$0xff] %v872
  %923 = vst [vmem:[%s3 + $0x118] sm:$0xff] %v873
  %924 = vst [vmem:[%s3 + $0x120] sm:$0xff] %v874
  %925 = vst [vmem:[%s3 + $0x128] sm:$0xff] %v875
  %926 = vst [vmem:[%s3 + $0x130] sm:$0xff] %v876
  %927 = vst [vmem:[%s3 + $0x138] sm:$0xff] %v877
  %928 = vst [vmem:[%s3 + $0x140] sm:$0xff] %v878
  %929 = vst [vmem:[%s3 + $0x148] sm:$0xff] %v879
  %930 = vst [vmem:[%s3 + $0x150] sm:$0xff] %v880
  %931 = vst [vmem:[%s3 + $0x158] sm:$0xff] %v881
  %932 = vst [vmem:[%s3 + $0x160] sm:$0xff] %v882
  %933 = vst [vmem:[%s3 + $0x168] sm:$0xff] %v883
  %934 = vst [vmem:[%s3 + $0x170] sm:$0xff] %v884
  %935 = vst [vmem:[%s3 + $0x178] sm:$0xff] %v885
  %936 = vst [vmem:[%s3 + $0x180] sm:$0xff] %v886
  %937 = vst [vmem:[%s3 + $0x188] sm:$0xff] %v887
  // Predicated region
  $region14: #{autoencoder_forward.9} parent=0 // pred_check
    _
  $region15: #{autoencoder_forward.9} parent=0 // pred_check_branch
    %939 = sbr.rel (0) target = $region17
  $region16: #{autoencoder_forward.9} parent=0 // pred_region
    _
  $region17: #{autoencoder_forward.9} parent=0 // pred_fallthru
    _
  // Predicated region
  $region18: #{autoencoder_forward.9} parent=0 // pred_check
    _
  $region19: #{autoencoder_forward.9} parent=0 // pred_check_branch
    %941 = sbr.rel (0) target = $region21
  $region20: #{autoencoder_forward.9} parent=0 // pred_region
    _
  $region21: #{autoencoder_forward.9} parent=0 // pred_fallthru
    _

</llo_original>
